<compile_context>
chip_gen: v7x
topology: tpu7x:2x2x1
jax: 0.10.0
libtpu: 0.0.40
codegen_flags: <defaults>
</compile_context>

<pallas_src>
import numpy as np
import jax
import jax.numpy as jnp
from jax.experimental import pallas as pl
from jax.experimental.pallas import tpu as pltpu

L = 360    # hardcoded by the module's reshape(-1, in_channels, 360)
LP = 384   # L padded up to 3 full 128-lane tiles
K = 3      # conv1d kernel size (padding=1, 'same')


def _round_up(x, m):
    return (x + m - 1) // m * m


def _bvp2abp_kernel(x_ref,
                    wt1_ref, bt1_ref, wt2_ref, bt2_ref,
                    wd1_ref, bd1_ref, wd2_ref, bd2_ref,
                    wl_ref, bl_ref,
                    lout_ref, d_ref):
    C = x_ref.shape[0]
    TB = x_ref.shape[1]

    lane = jax.lax.broadcasted_iota(jnp.int32, (TB, LP), 1)
    has_left = lane > 0          # x[l-1] exists
    has_right = lane < (L - 1)   # x[l+1] exists (zero 'same' padding at l=L-1)

    def taps(y):
        # (y[l-1], y[l], y[l+1]) with zero 'same' padding.  pltpu.roll is
        # circular, so the wrap-around lanes are explicitly zeroed.
        left = jnp.where(has_left, pltpu.roll(y, shift=1, axis=1), 0.0)
        # shift by LP-1 == circular shift by -1 (avoid negative shift).
        right = jnp.where(has_right, pltpu.roll(y, shift=LP - 1, axis=1), 0.0)
        return (left, y, right)

    def conv1d(tapped, w_ref, b_ref, c_out):
        # tapped: list over c_in of K-tuples of (TB, LP) arrays.
        # w_ref:  SMEM flat (K * c_out * c_in,) in [k, c_out, c_in] order.
        # b_ref:  SMEM flat (c_out,).
        # Tiny channel counts -> weight application as VPU FMAs (scalar*vector).
        c_in = len(tapped)
        outs = []
        for co in range(c_out):
            acc = jnp.zeros((TB, LP), jnp.float32)
            for ci in range(c_in):
                t = tapped[ci]
                for k in range(K):
                    w = w_ref[(k * c_out + co) * c_in + ci]
                    acc = acc + w * t[k]
            outs.append(acc + b_ref[co])
        return outs

    x = [x_ref[c] for c in range(C)]               # each (TB, LP)
    x_taps = [taps(x[c]) for c in range(C)]

    # Trend_module_1D: two sigmoid attention maps from the raw PPG.
    at1 = [jax.nn.sigmoid(a) for a in conv1d(x_taps, wt1_ref, bt1_ref, C)]
    at2 = [jax.nn.sigmoid(a) for a in conv1d(x_taps, wt2_ref, bt2_ref, C)]

    # Detail_module_1D: attention-gated convs -> single detail trace (TB, LP).
    g1_taps = [taps(x[c] * at1[c]) for c in range(C)]
    h = [jnp.maximum(a, 0.0) for a in conv1d(g1_taps, wd1_ref, bd1_ref, C)]

    g2_taps = [taps(h[c] * at2[c]) for c in range(C)]
    d = conv1d(g2_taps, wd2_ref, bd2_ref, 1)[0]    # (TB, LP)

    d_ref[...] = d

    # Linear_module_1D: dense 360 -> 360 (zero-padded to 384x384 so the garbage
    # pad lanes of d cannot contaminate the first 360 output columns).
    lout_ref[...] = (jnp.dot(d, wl_ref[...], preferred_element_type=jnp.float32)
                     + bl_ref[...])


def bvp2abp_forward(ple_input, params, in_channels):
    x = jnp.reshape(ple_input, (-1, in_channels, L)).astype(jnp.float32)
    B, C, _ = x.shape

    # Batch rows per tile: 128 keeps the linear-head matmul MXU-aligned on all
    # generations while staying far below v7x's 64 MiB VMEM.
    TB = min(128, _round_up(B, 8))
    B_pad = _round_up(B, TB)
    n_tiles = B_pad // TB

    # Layout (C, B_pad, LP): channels outermost, batch on sublanes, signal on
    # lanes (padded with zeros to 384).
    xt = jnp.transpose(x, (1, 0, 2))
    xt = jnp.pad(xt, ((0, 0), (0, B_pad - B), (0, LP - L)))

    flat32 = lambda a: jnp.asarray(a, jnp.float32).reshape(-1)
    wt1, bt1 = flat32(params["wt1"]), flat32(params["bt1"])
    wt2, bt2 = flat32(params["wt2"]), flat32(params["bt2"])
    wd1, bd1 = flat32(params["wd1"]), flat32(params["bd1"])
    wd2, bd2 = flat32(params["wd2"]), flat32(params["bd2"])

    wl = jnp.pad(jnp.asarray(params["wl"], jnp.float32),
                 ((0, LP - L), (0, LP - L)))
    bl = jnp.pad(jnp.asarray(params["bl"], jnp.float32).reshape(1, L),
                 ((0, 0), (0, LP - L)))

    smem = pl.BlockSpec(memory_space=pltpu.MemorySpace.SMEM)
    in_specs = [
        pl.BlockSpec((C, TB, LP), lambda i: (0, i, 0)),   # PPG tile
        smem, smem, smem, smem, smem, smem, smem, smem,   # small conv params
        pl.BlockSpec((LP, LP), lambda i: (0, 0)),         # wl (resident)
        pl.BlockSpec((1, LP), lambda i: (0, 0)),          # bl
    ]
    out_specs = [
        pl.BlockSpec((TB, LP), lambda i: (i, 0)),         # l_out (lane-dense)
        pl.BlockSpec((TB, LP), lambda i: (i, 0)),         # detail trace d
    ]
    out_shape = (jax.ShapeDtypeStruct((B_pad, LP), jnp.float32),
                 jax.ShapeDtypeStruct((B_pad, LP), jnp.float32))

    l_full, d_full = pl.pallas_call(
        _bvp2abp_kernel,
        grid=(n_tiles,),
        in_specs=in_specs,
        out_specs=out_specs,
        out_shape=out_shape,
        compiler_params=pltpu.CompilerParams(
            dimension_semantics=("parallel",),
            vmem_limit_bytes=48 * 1024 * 1024),
    )(xt, wt1, bt1, wt2, bt2, wd1, bd1, wd2, bd2, wl, bl)

    l_out = l_full[:B, :L]
    d_out = d_full[:B, :L]

    # Amplitude_module: DBP / SBP scalar heads as one tiny XLA matmul.
    w_ds = jnp.concatenate([jnp.asarray(params["wdbp"], jnp.float32),
                            jnp.asarray(params["wsbp"], jnp.float32)], axis=1)
    b_ds = jnp.concatenate([jnp.asarray(params["bdbp"], jnp.float32),
                            jnp.asarray(params["bsbp"], jnp.float32)])[None, :]
    heads = d_out @ w_ds + b_ds
    return l_out, heads[:, 0:1], heads[:, 1:2]


def init_params(key, in_channels):
    C = in_channels

    def w(k, shape, scale=0.05):
        return scale * jax.random.normal(k, shape, jnp.float32)

    ks = jax.random.split(key, 12)
    return dict(
        wt1=w(ks[0], (K, C, C)),  bt1=w(ks[1], (C,)),
        wt2=w(ks[2], (K, C, C)),  bt2=w(ks[3], (C,)),
        wd1=w(ks[4], (K, C, C)),  bd1=w(ks[5], (C,)),
        wd2=w(ks[6], (K, 1, C)),  bd2=w(ks[7], (1,)),
        wl=w(ks[8], (L, L)),      bl=w(ks[9], (L,)),
        wdbp=w(ks[10], (L, 1)),   bdbp=jnp.zeros((1,), jnp.float32),
        wsbp=w(ks[11], (L, 1)),   bsbp=jnp.zeros((1,), jnp.float32),
    )


def reference_forward(ple_input, params, in_channels):
    """Pure-JAX reference (same math, no Pallas)."""
    x = jnp.reshape(ple_input, (-1, in_channels, L)).astype(jnp.float32)

    def conv1d(y, w, b):   # y: (B,Cin,L), w: (K,Cout,Cin), b: (Cout,)
        yp = jnp.pad(y, ((0, 0), (0, 0), (1, 1)))
        t = jnp.stack([yp[..., 0:L], yp[..., 1:L + 1], yp[..., 2:L + 2]], 0)
        return jnp.einsum("koc,kbcl->bol", w, t) + b[None, :, None]

    at1 = jax.nn.sigmoid(conv1d(x, params["wt1"], params["bt1"]))
    at2 = jax.nn.sigmoid(conv1d(x, params["wt2"], params["bt2"]))
    h = jnp.maximum(conv1d(x * at1, params["wd1"], params["bd1"]), 0.0)
    d = conv1d(h * at2, params["wd2"], params["bd2"])[:, 0, :]     # (B, L)
    l = d @ params["wl"] + params["bl"][None, :]
    dbp = d @ params["wdbp"] + params["bdbp"][None, :]
    sbp = d @ params["wsbp"] + params["bsbp"][None, :]
    return l, dbp, sbp


if __name__ == "__main__":
    in_channels = 4
    B = 2
    key = jax.random.PRNGKey(0)
    k_x, k_p = jax.random.split(key)
    # flat PPG input; the module reshapes it to (-1, in_channels, 360)
    ple_input = jax.random.normal(k_x, (B, in_channels * L), jnp.float32)
    params = init_params(k_p, in_channels)

    l_out, dbp, sbp = bvp2abp_forward(ple_input, params, in_channels)
    jax.block_until_ready((l_out, dbp, sbp))

    l_ref, dbp_ref, sbp_ref = reference_forward(ple_input, params, in_channels)
    assert l_out.shape == (B, L) and dbp.shape == (B, 1) and sbp.shape == (B, 1)
    np.testing.assert_allclose(np.asarray(l_out), np.asarray(l_ref),
                               rtol=5e-2, atol=1e-2)
    np.testing.assert_allclose(np.asarray(dbp), np.asarray(dbp_ref),
                               rtol=5e-2, atol=1e-2)
    np.testing.assert_allclose(np.asarray(sbp), np.asarray(sbp_ref),
                               rtol=5e-2, atol=1e-2)
    print("KERNEL_OK")
</pallas_src>

<mosaic_0001>
module attributes {stable_mosaic.version = 11 : i64} {
  func.func @_bvp2abp_kernel(%arg0: i32, %arg1: memref<4x8x384xf32, #tpu.memory_space<vmem>>, %arg2: memref<48xf32, #tpu.memory_space<smem>>, %arg3: memref<4xf32, #tpu.memory_space<smem>>, %arg4: memref<48xf32, #tpu.memory_space<smem>>, %arg5: memref<4xf32, #tpu.memory_space<smem>>, %arg6: memref<48xf32, #tpu.memory_space<smem>>, %arg7: memref<4xf32, #tpu.memory_space<smem>>, %arg8: memref<12xf32, #tpu.memory_space<smem>>, %arg9: memref<1xf32, #tpu.memory_space<smem>>, %arg10: memref<384x384xf32, #tpu.memory_space<vmem>>, %arg11: memref<1x384xf32, #tpu.memory_space<vmem>>, %arg12: memref<8x384xf32, #tpu.memory_space<vmem>>, %arg13: memref<8x384xf32, #tpu.memory_space<vmem>>) attributes {dimension_semantics = [#tpu.dimension_semantics<parallel>], iteration_bounds = array<i64: 1>, scalar_prefetch = 0 : i64, scratch_operands = 0 : i64, tpu.core_type = #tpu.core_type<tc>, window_params = [{transform_indices = @transform_0, window_bounds = array<i64: 4, 8, 384>}, {transform_indices = @transform_1, window_bounds = array<i64: 48>}, {transform_indices = @transform_2, window_bounds = array<i64: 4>}, {transform_indices = @transform_3, window_bounds = array<i64: 48>}, {transform_indices = @transform_4, window_bounds = array<i64: 4>}, {transform_indices = @transform_5, window_bounds = array<i64: 48>}, {transform_indices = @transform_6, window_bounds = array<i64: 4>}, {transform_indices = @transform_7, window_bounds = array<i64: 12>}, {transform_indices = @transform_8, window_bounds = array<i64: 1>}, {pipeline_mode = #tpu.pipeline_mode<synchronous>, transform_indices = @transform_9, window_bounds = array<i64: 384, 384>}, {pipeline_mode = #tpu.pipeline_mode<synchronous>, transform_indices = @transform_10, window_bounds = array<i64: 1, 384>}, {transform_indices = @transform_11, window_bounds = array<i64: 8, 384>}, {transform_indices = @transform_12, window_bounds = array<i64: 8, 384>}]} {
    %0 = tpu.iota {dimensions = array<i32: 1>} : vector<8x384xi32>
    %c0_i32 = arith.constant 0 : i32
    %1 = vector.broadcast %c0_i32 : i32 to vector<8x384xi32>
    %2 = arith.cmpi sgt, %0, %1 : vector<8x384xi32>
    %c359_i32 = arith.constant 359 : i32
    %3 = vector.broadcast %c359_i32 : i32 to vector<8x384xi32>
    %4 = arith.cmpi slt, %0, %3 : vector<8x384xi32>
    %c0 = arith.constant 0 : index
    %c0_0 = arith.constant 0 : index
    %c0_1 = arith.constant 0 : index
    %5 = vector.load %arg1[%c0, %c0_0, %c0_1] : memref<4x8x384xf32, #tpu.memory_space<vmem>>, vector<1x8x384xf32>
    %6 = vector.shape_cast %5 : vector<1x8x384xf32> to vector<8x384xf32>
    %c1 = arith.constant 1 : index
    %c0_2 = arith.constant 0 : index
    %c0_3 = arith.constant 0 : index
    %7 = vector.load %arg1[%c1, %c0_2, %c0_3] : memref<4x8x384xf32, #tpu.memory_space<vmem>>, vector<1x8x384xf32>
    %8 = vector.shape_cast %7 : vector<1x8x384xf32> to vector<8x384xf32>
    %c2 = arith.constant 2 : index
    %c0_4 = arith.constant 0 : index
    %c0_5 = arith.constant 0 : index
    %9 = vector.load %arg1[%c2, %c0_4, %c0_5] : memref<4x8x384xf32, #tpu.memory_space<vmem>>, vector<1x8x384xf32>
    %10 = vector.shape_cast %9 : vector<1x8x384xf32> to vector<8x384xf32>
    %c3 = arith.constant 3 : index
    %c0_6 = arith.constant 0 : index
    %c0_7 = arith.constant 0 : index
    %11 = vector.load %arg1[%c3, %c0_6, %c0_7] : memref<4x8x384xf32, #tpu.memory_space<vmem>>, vector<1x8x384xf32>
    %12 = vector.shape_cast %11 : vector<1x8x384xf32> to vector<8x384xf32>
    %c1_i32 = arith.constant 1 : i32
    %13 = tpu.dynamic_rotate %6 by %c1_i32 dim 1 : vector<8x384xf32>, i32 -> vector<8x384xf32>
    %cst = arith.constant 0.000000e+00 : f32
    %14 = vector.broadcast %cst : f32 to vector<8x384xf32>
    %15 = arith.select %2, %13, %14 : vector<8x384xi1>, vector<8x384xf32>
    %c383_i32 = arith.constant 383 : i32
    %16 = tpu.dynamic_rotate %6 by %c383_i32 dim 1 : vector<8x384xf32>, i32 -> vector<8x384xf32>
    %cst_8 = arith.constant 0.000000e+00 : f32
    %17 = vector.broadcast %cst_8 : f32 to vector<8x384xf32>
    %18 = arith.select %4, %16, %17 : vector<8x384xi1>, vector<8x384xf32>
    %c1_i32_9 = arith.constant 1 : i32
    %19 = tpu.dynamic_rotate %8 by %c1_i32_9 dim 1 : vector<8x384xf32>, i32 -> vector<8x384xf32>
    %cst_10 = arith.constant 0.000000e+00 : f32
    %20 = vector.broadcast %cst_10 : f32 to vector<8x384xf32>
    %21 = arith.select %2, %19, %20 : vector<8x384xi1>, vector<8x384xf32>
    %c383_i32_11 = arith.constant 383 : i32
    %22 = tpu.dynamic_rotate %8 by %c383_i32_11 dim 1 : vector<8x384xf32>, i32 -> vector<8x384xf32>
    %cst_12 = arith.constant 0.000000e+00 : f32
    %23 = vector.broadcast %cst_12 : f32 to vector<8x384xf32>
    %24 = arith.select %4, %22, %23 : vector<8x384xi1>, vector<8x384xf32>
    %c1_i32_13 = arith.constant 1 : i32
    %25 = tpu.dynamic_rotate %10 by %c1_i32_13 dim 1 : vector<8x384xf32>, i32 -> vector<8x384xf32>
    %cst_14 = arith.constant 0.000000e+00 : f32
    %26 = vector.broadcast %cst_14 : f32 to vector<8x384xf32>
    %27 = arith.select %2, %25, %26 : vector<8x384xi1>, vector<8x384xf32>
    %c383_i32_15 = arith.constant 383 : i32
    %28 = tpu.dynamic_rotate %10 by %c383_i32_15 dim 1 : vector<8x384xf32>, i32 -> vector<8x384xf32>
    %cst_16 = arith.constant 0.000000e+00 : f32
    %29 = vector.broadcast %cst_16 : f32 to vector<8x384xf32>
    %30 = arith.select %4, %28, %29 : vector<8x384xi1>, vector<8x384xf32>
    %c1_i32_17 = arith.constant 1 : i32
    %31 = tpu.dynamic_rotate %12 by %c1_i32_17 dim 1 : vector<8x384xf32>, i32 -> vector<8x384xf32>
    %cst_18 = arith.constant 0.000000e+00 : f32
    %32 = vector.broadcast %cst_18 : f32 to vector<8x384xf32>
    %33 = arith.select %2, %31, %32 : vector<8x384xi1>, vector<8x384xf32>
    %c383_i32_19 = arith.constant 383 : i32
    %34 = tpu.dynamic_rotate %12 by %c383_i32_19 dim 1 : vector<8x384xf32>, i32 -> vector<8x384xf32>
    %cst_20 = arith.constant 0.000000e+00 : f32
    %35 = vector.broadcast %cst_20 : f32 to vector<8x384xf32>
    %36 = arith.select %4, %34, %35 : vector<8x384xi1>, vector<8x384xf32>
    %cst_21 = arith.constant 0.000000e+00 : f32
    %37 = vector.broadcast %cst_21 : f32 to vector<8x384xf32>
    %c0_22 = arith.constant 0 : index
    %38 = memref.load %arg2[%c0_22] : memref<48xf32, #tpu.memory_space<smem>>
    %39 = vector.broadcast %38 : f32 to vector<8x384xf32>
    %40 = arith.mulf %39, %15 : vector<8x384xf32>
    %41 = arith.addf %37, %40 : vector<8x384xf32>
    %c16 = arith.constant 16 : index
    %42 = memref.load %arg2[%c16] : memref<48xf32, #tpu.memory_space<smem>>
    %43 = vector.broadcast %42 : f32 to vector<8x384xf32>
    %44 = arith.mulf %43, %6 : vector<8x384xf32>
    %45 = arith.addf %41, %44 : vector<8x384xf32>
    %c32 = arith.constant 32 : index
    %46 = memref.load %arg2[%c32] : memref<48xf32, #tpu.memory_space<smem>>
    %47 = vector.broadcast %46 : f32 to vector<8x384xf32>
    %48 = arith.mulf %47, %18 : vector<8x384xf32>
    %49 = arith.addf %45, %48 : vector<8x384xf32>
    %c1_23 = arith.constant 1 : index
    %50 = memref.load %arg2[%c1_23] : memref<48xf32, #tpu.memory_space<smem>>
    %51 = vector.broadcast %50 : f32 to vector<8x384xf32>
    %52 = arith.mulf %51, %21 : vector<8x384xf32>
    %53 = arith.addf %49, %52 : vector<8x384xf32>
    %c17 = arith.constant 17 : index
    %54 = memref.load %arg2[%c17] : memref<48xf32, #tpu.memory_space<smem>>
    %55 = vector.broadcast %54 : f32 to vector<8x384xf32>
    %56 = arith.mulf %55, %8 : vector<8x384xf32>
    %57 = arith.addf %53, %56 : vector<8x384xf32>
    %c33 = arith.constant 33 : index
    %58 = memref.load %arg2[%c33] : memref<48xf32, #tpu.memory_space<smem>>
    %59 = vector.broadcast %58 : f32 to vector<8x384xf32>
    %60 = arith.mulf %59, %24 : vector<8x384xf32>
    %61 = arith.addf %57, %60 : vector<8x384xf32>
    %c2_24 = arith.constant 2 : index
    %62 = memref.load %arg2[%c2_24] : memref<48xf32, #tpu.memory_space<smem>>
    %63 = vector.broadcast %62 : f32 to vector<8x384xf32>
    %64 = arith.mulf %63, %27 : vector<8x384xf32>
    %65 = arith.addf %61, %64 : vector<8x384xf32>
    %c18 = arith.constant 18 : index
    %66 = memref.load %arg2[%c18] : memref<48xf32, #tpu.memory_space<smem>>
    %67 = vector.broadcast %66 : f32 to vector<8x384xf32>
    %68 = arith.mulf %67, %10 : vector<8x384xf32>
    %69 = arith.addf %65, %68 : vector<8x384xf32>
    %c34 = arith.constant 34 : index
    %70 = memref.load %arg2[%c34] : memref<48xf32, #tpu.memory_space<smem>>
    %71 = vector.broadcast %70 : f32 to vector<8x384xf32>
    %72 = arith.mulf %71, %30 : vector<8x384xf32>
    %73 = arith.addf %69, %72 : vector<8x384xf32>
    %c3_25 = arith.constant 3 : index
    %74 = memref.load %arg2[%c3_25] : memref<48xf32, #tpu.memory_space<smem>>
    %75 = vector.broadcast %74 : f32 to vector<8x384xf32>
    %76 = arith.mulf %75, %33 : vector<8x384xf32>
    %77 = arith.addf %73, %76 : vector<8x384xf32>
    %c19 = arith.constant 19 : index
    %78 = memref.load %arg2[%c19] : memref<48xf32, #tpu.memory_space<smem>>
    %79 = vector.broadcast %78 : f32 to vector<8x384xf32>
    %80 = arith.mulf %79, %12 : vector<8x384xf32>
    %81 = arith.addf %77, %80 : vector<8x384xf32>
    %c35 = arith.constant 35 : index
    %82 = memref.load %arg2[%c35] : memref<48xf32, #tpu.memory_space<smem>>
    %83 = vector.broadcast %82 : f32 to vector<8x384xf32>
    %84 = arith.mulf %83, %36 : vector<8x384xf32>
    %85 = arith.addf %81, %84 : vector<8x384xf32>
    %c0_26 = arith.constant 0 : index
    %86 = memref.load %arg3[%c0_26] : memref<4xf32, #tpu.memory_space<smem>>
    %87 = vector.broadcast %86 : f32 to vector<8x384xf32>
    %88 = arith.addf %85, %87 : vector<8x384xf32>
    %cst_27 = arith.constant 0.000000e+00 : f32
    %89 = vector.broadcast %cst_27 : f32 to vector<8x384xf32>
    %c4 = arith.constant 4 : index
    %90 = memref.load %arg2[%c4] : memref<48xf32, #tpu.memory_space<smem>>
    %91 = vector.broadcast %90 : f32 to vector<8x384xf32>
    %92 = arith.mulf %91, %15 : vector<8x384xf32>
    %93 = arith.addf %89, %92 : vector<8x384xf32>
    %c20 = arith.constant 20 : index
    %94 = memref.load %arg2[%c20] : memref<48xf32, #tpu.memory_space<smem>>
    %95 = vector.broadcast %94 : f32 to vector<8x384xf32>
    %96 = arith.mulf %95, %6 : vector<8x384xf32>
    %97 = arith.addf %93, %96 : vector<8x384xf32>
    %c36 = arith.constant 36 : index
    %98 = memref.load %arg2[%c36] : memref<48xf32, #tpu.memory_space<smem>>
    %99 = vector.broadcast %98 : f32 to vector<8x384xf32>
    %100 = arith.mulf %99, %18 : vector<8x384xf32>
    %101 = arith.addf %97, %100 : vector<8x384xf32>
    %c5 = arith.constant 5 : index
    %102 = memref.load %arg2[%c5] : memref<48xf32, #tpu.memory_space<smem>>
    %103 = vector.broadcast %102 : f32 to vector<8x384xf32>
    %104 = arith.mulf %103, %21 : vector<8x384xf32>
    %105 = arith.addf %101, %104 : vector<8x384xf32>
    %c21 = arith.constant 21 : index
    %106 = memref.load %arg2[%c21] : memref<48xf32, #tpu.memory_space<smem>>
    %107 = vector.broadcast %106 : f32 to vector<8x384xf32>
    %108 = arith.mulf %107, %8 : vector<8x384xf32>
    %109 = arith.addf %105, %108 : vector<8x384xf32>
    %c37 = arith.constant 37 : index
    %110 = memref.load %arg2[%c37] : memref<48xf32, #tpu.memory_space<smem>>
    %111 = vector.broadcast %110 : f32 to vector<8x384xf32>
    %112 = arith.mulf %111, %24 : vector<8x384xf32>
    %113 = arith.addf %109, %112 : vector<8x384xf32>
    %c6 = arith.constant 6 : index
    %114 = memref.load %arg2[%c6] : memref<48xf32, #tpu.memory_space<smem>>
    %115 = vector.broadcast %114 : f32 to vector<8x384xf32>
    %116 = arith.mulf %115, %27 : vector<8x384xf32>
    %117 = arith.addf %113, %116 : vector<8x384xf32>
    %c22 = arith.constant 22 : index
    %118 = memref.load %arg2[%c22] : memref<48xf32, #tpu.memory_space<smem>>
    %119 = vector.broadcast %118 : f32 to vector<8x384xf32>
    %120 = arith.mulf %119, %10 : vector<8x384xf32>
    %121 = arith.addf %117, %120 : vector<8x384xf32>
    %c38 = arith.constant 38 : index
    %122 = memref.load %arg2[%c38] : memref<48xf32, #tpu.memory_space<smem>>
    %123 = vector.broadcast %122 : f32 to vector<8x384xf32>
    %124 = arith.mulf %123, %30 : vector<8x384xf32>
    %125 = arith.addf %121, %124 : vector<8x384xf32>
    %c7 = arith.constant 7 : index
    %126 = memref.load %arg2[%c7] : memref<48xf32, #tpu.memory_space<smem>>
    %127 = vector.broadcast %126 : f32 to vector<8x384xf32>
    %128 = arith.mulf %127, %33 : vector<8x384xf32>
    %129 = arith.addf %125, %128 : vector<8x384xf32>
    %c23 = arith.constant 23 : index
    %130 = memref.load %arg2[%c23] : memref<48xf32, #tpu.memory_space<smem>>
    %131 = vector.broadcast %130 : f32 to vector<8x384xf32>
    %132 = arith.mulf %131, %12 : vector<8x384xf32>
    %133 = arith.addf %129, %132 : vector<8x384xf32>
    %c39 = arith.constant 39 : index
    %134 = memref.load %arg2[%c39] : memref<48xf32, #tpu.memory_space<smem>>
    %135 = vector.broadcast %134 : f32 to vector<8x384xf32>
    %136 = arith.mulf %135, %36 : vector<8x384xf32>
    %137 = arith.addf %133, %136 : vector<8x384xf32>
    %c1_28 = arith.constant 1 : index
    %138 = memref.load %arg3[%c1_28] : memref<4xf32, #tpu.memory_space<smem>>
    %139 = vector.broadcast %138 : f32 to vector<8x384xf32>
    %140 = arith.addf %137, %139 : vector<8x384xf32>
    %cst_29 = arith.constant 0.000000e+00 : f32
    %141 = vector.broadcast %cst_29 : f32 to vector<8x384xf32>
    %c8 = arith.constant 8 : index
    %142 = memref.load %arg2[%c8] : memref<48xf32, #tpu.memory_space<smem>>
    %143 = vector.broadcast %142 : f32 to vector<8x384xf32>
    %144 = arith.mulf %143, %15 : vector<8x384xf32>
    %145 = arith.addf %141, %144 : vector<8x384xf32>
    %c24 = arith.constant 24 : index
    %146 = memref.load %arg2[%c24] : memref<48xf32, #tpu.memory_space<smem>>
    %147 = vector.broadcast %146 : f32 to vector<8x384xf32>
    %148 = arith.mulf %147, %6 : vector<8x384xf32>
    %149 = arith.addf %145, %148 : vector<8x384xf32>
    %c40 = arith.constant 40 : index
    %150 = memref.load %arg2[%c40] : memref<48xf32, #tpu.memory_space<smem>>
    %151 = vector.broadcast %150 : f32 to vector<8x384xf32>
    %152 = arith.mulf %151, %18 : vector<8x384xf32>
    %153 = arith.addf %149, %152 : vector<8x384xf32>
    %c9 = arith.constant 9 : index
    %154 = memref.load %arg2[%c9] : memref<48xf32, #tpu.memory_space<smem>>
    %155 = vector.broadcast %154 : f32 to vector<8x384xf32>
    %156 = arith.mulf %155, %21 : vector<8x384xf32>
    %157 = arith.addf %153, %156 : vector<8x384xf32>
    %c25 = arith.constant 25 : index
    %158 = memref.load %arg2[%c25] : memref<48xf32, #tpu.memory_space<smem>>
    %159 = vector.broadcast %158 : f32 to vector<8x384xf32>
    %160 = arith.mulf %159, %8 : vector<8x384xf32>
    %161 = arith.addf %157, %160 : vector<8x384xf32>
    %c41 = arith.constant 41 : index
    %162 = memref.load %arg2[%c41] : memref<48xf32, #tpu.memory_space<smem>>
    %163 = vector.broadcast %162 : f32 to vector<8x384xf32>
    %164 = arith.mulf %163, %24 : vector<8x384xf32>
    %165 = arith.addf %161, %164 : vector<8x384xf32>
    %c10 = arith.constant 10 : index
    %166 = memref.load %arg2[%c10] : memref<48xf32, #tpu.memory_space<smem>>
    %167 = vector.broadcast %166 : f32 to vector<8x384xf32>
    %168 = arith.mulf %167, %27 : vector<8x384xf32>
    %169 = arith.addf %165, %168 : vector<8x384xf32>
    %c26 = arith.constant 26 : index
    %170 = memref.load %arg2[%c26] : memref<48xf32, #tpu.memory_space<smem>>
    %171 = vector.broadcast %170 : f32 to vector<8x384xf32>
    %172 = arith.mulf %171, %10 : vector<8x384xf32>
    %173 = arith.addf %169, %172 : vector<8x384xf32>
    %c42 = arith.constant 42 : index
    %174 = memref.load %arg2[%c42] : memref<48xf32, #tpu.memory_space<smem>>
    %175 = vector.broadcast %174 : f32 to vector<8x384xf32>
    %176 = arith.mulf %175, %30 : vector<8x384xf32>
    %177 = arith.addf %173, %176 : vector<8x384xf32>
    %c11 = arith.constant 11 : index
    %178 = memref.load %arg2[%c11] : memref<48xf32, #tpu.memory_space<smem>>
    %179 = vector.broadcast %178 : f32 to vector<8x384xf32>
    %180 = arith.mulf %179, %33 : vector<8x384xf32>
    %181 = arith.addf %177, %180 : vector<8x384xf32>
    %c27 = arith.constant 27 : index
    %182 = memref.load %arg2[%c27] : memref<48xf32, #tpu.memory_space<smem>>
    %183 = vector.broadcast %182 : f32 to vector<8x384xf32>
    %184 = arith.mulf %183, %12 : vector<8x384xf32>
    %185 = arith.addf %181, %184 : vector<8x384xf32>
    %c43 = arith.constant 43 : index
    %186 = memref.load %arg2[%c43] : memref<48xf32, #tpu.memory_space<smem>>
    %187 = vector.broadcast %186 : f32 to vector<8x384xf32>
    %188 = arith.mulf %187, %36 : vector<8x384xf32>
    %189 = arith.addf %185, %188 : vector<8x384xf32>
    %c2_30 = arith.constant 2 : index
    %190 = memref.load %arg3[%c2_30] : memref<4xf32, #tpu.memory_space<smem>>
    %191 = vector.broadcast %190 : f32 to vector<8x384xf32>
    %192 = arith.addf %189, %191 : vector<8x384xf32>
    %cst_31 = arith.constant 0.000000e+00 : f32
    %193 = vector.broadcast %cst_31 : f32 to vector<8x384xf32>
    %c12 = arith.constant 12 : index
    %194 = memref.load %arg2[%c12] : memref<48xf32, #tpu.memory_space<smem>>
    %195 = vector.broadcast %194 : f32 to vector<8x384xf32>
    %196 = arith.mulf %195, %15 : vector<8x384xf32>
    %197 = arith.addf %193, %196 : vector<8x384xf32>
    %c28 = arith.constant 28 : index
    %198 = memref.load %arg2[%c28] : memref<48xf32, #tpu.memory_space<smem>>
    %199 = vector.broadcast %198 : f32 to vector<8x384xf32>
    %200 = arith.mulf %199, %6 : vector<8x384xf32>
    %201 = arith.addf %197, %200 : vector<8x384xf32>
    %c44 = arith.constant 44 : index
    %202 = memref.load %arg2[%c44] : memref<48xf32, #tpu.memory_space<smem>>
    %203 = vector.broadcast %202 : f32 to vector<8x384xf32>
    %204 = arith.mulf %203, %18 : vector<8x384xf32>
    %205 = arith.addf %201, %204 : vector<8x384xf32>
    %c13 = arith.constant 13 : index
    %206 = memref.load %arg2[%c13] : memref<48xf32, #tpu.memory_space<smem>>
    %207 = vector.broadcast %206 : f32 to vector<8x384xf32>
    %208 = arith.mulf %207, %21 : vector<8x384xf32>
    %209 = arith.addf %205, %208 : vector<8x384xf32>
    %c29 = arith.constant 29 : index
    %210 = memref.load %arg2[%c29] : memref<48xf32, #tpu.memory_space<smem>>
    %211 = vector.broadcast %210 : f32 to vector<8x384xf32>
    %212 = arith.mulf %211, %8 : vector<8x384xf32>
    %213 = arith.addf %209, %212 : vector<8x384xf32>
    %c45 = arith.constant 45 : index
    %214 = memref.load %arg2[%c45] : memref<48xf32, #tpu.memory_space<smem>>
    %215 = vector.broadcast %214 : f32 to vector<8x384xf32>
    %216 = arith.mulf %215, %24 : vector<8x384xf32>
    %217 = arith.addf %213, %216 : vector<8x384xf32>
    %c14 = arith.constant 14 : index
    %218 = memref.load %arg2[%c14] : memref<48xf32, #tpu.memory_space<smem>>
    %219 = vector.broadcast %218 : f32 to vector<8x384xf32>
    %220 = arith.mulf %219, %27 : vector<8x384xf32>
    %221 = arith.addf %217, %220 : vector<8x384xf32>
    %c30 = arith.constant 30 : index
    %222 = memref.load %arg2[%c30] : memref<48xf32, #tpu.memory_space<smem>>
    %223 = vector.broadcast %222 : f32 to vector<8x384xf32>
    %224 = arith.mulf %223, %10 : vector<8x384xf32>
    %225 = arith.addf %221, %224 : vector<8x384xf32>
    %c46 = arith.constant 46 : index
    %226 = memref.load %arg2[%c46] : memref<48xf32, #tpu.memory_space<smem>>
    %227 = vector.broadcast %226 : f32 to vector<8x384xf32>
    %228 = arith.mulf %227, %30 : vector<8x384xf32>
    %229 = arith.addf %225, %228 : vector<8x384xf32>
    %c15 = arith.constant 15 : index
    %230 = memref.load %arg2[%c15] : memref<48xf32, #tpu.memory_space<smem>>
    %231 = vector.broadcast %230 : f32 to vector<8x384xf32>
    %232 = arith.mulf %231, %33 : vector<8x384xf32>
    %233 = arith.addf %229, %232 : vector<8x384xf32>
    %c31 = arith.constant 31 : index
    %234 = memref.load %arg2[%c31] : memref<48xf32, #tpu.memory_space<smem>>
    %235 = vector.broadcast %234 : f32 to vector<8x384xf32>
    %236 = arith.mulf %235, %12 : vector<8x384xf32>
    %237 = arith.addf %233, %236 : vector<8x384xf32>
    %c47 = arith.constant 47 : index
    %238 = memref.load %arg2[%c47] : memref<48xf32, #tpu.memory_space<smem>>
    %239 = vector.broadcast %238 : f32 to vector<8x384xf32>
    %240 = arith.mulf %239, %36 : vector<8x384xf32>
    %241 = arith.addf %237, %240 : vector<8x384xf32>
    %c3_32 = arith.constant 3 : index
    %242 = memref.load %arg3[%c3_32] : memref<4xf32, #tpu.memory_space<smem>>
    %243 = vector.broadcast %242 : f32 to vector<8x384xf32>
    %244 = arith.addf %241, %243 : vector<8x384xf32>
    %245 = arith.negf %88 : vector<8x384xf32>
    %246 = math.exp %245 : vector<8x384xf32>
    %cst_33 = arith.constant 1.000000e+00 : f32
    %247 = vector.broadcast %cst_33 : f32 to vector<8x384xf32>
    %248 = arith.addf %247, %246 : vector<8x384xf32>
    %249 = arith.divf %247, %248 : vector<8x384xf32>
    %250 = arith.negf %140 : vector<8x384xf32>
    %251 = math.exp %250 : vector<8x384xf32>
    %cst_34 = arith.constant 1.000000e+00 : f32
    %252 = vector.broadcast %cst_34 : f32 to vector<8x384xf32>
    %253 = arith.addf %252, %251 : vector<8x384xf32>
    %254 = arith.divf %252, %253 : vector<8x384xf32>
    %255 = arith.negf %192 : vector<8x384xf32>
    %256 = math.exp %255 : vector<8x384xf32>
    %cst_35 = arith.constant 1.000000e+00 : f32
    %257 = vector.broadcast %cst_35 : f32 to vector<8x384xf32>
    %258 = arith.addf %257, %256 : vector<8x384xf32>
    %259 = arith.divf %257, %258 : vector<8x384xf32>
    %260 = arith.negf %244 : vector<8x384xf32>
    %261 = math.exp %260 : vector<8x384xf32>
    %cst_36 = arith.constant 1.000000e+00 : f32
    %262 = vector.broadcast %cst_36 : f32 to vector<8x384xf32>
    %263 = arith.addf %262, %261 : vector<8x384xf32>
    %264 = arith.divf %262, %263 : vector<8x384xf32>
    %cst_37 = arith.constant 0.000000e+00 : f32
    %265 = vector.broadcast %cst_37 : f32 to vector<8x384xf32>
    %c0_38 = arith.constant 0 : index
    %266 = memref.load %arg4[%c0_38] : memref<48xf32, #tpu.memory_space<smem>>
    %267 = vector.broadcast %266 : f32 to vector<8x384xf32>
    %268 = arith.mulf %267, %15 : vector<8x384xf32>
    %269 = arith.addf %265, %268 : vector<8x384xf32>
    %c16_39 = arith.constant 16 : index
    %270 = memref.load %arg4[%c16_39] : memref<48xf32, #tpu.memory_space<smem>>
    %271 = vector.broadcast %270 : f32 to vector<8x384xf32>
    %272 = arith.mulf %271, %6 : vector<8x384xf32>
    %273 = arith.addf %269, %272 : vector<8x384xf32>
    %c32_40 = arith.constant 32 : index
    %274 = memref.load %arg4[%c32_40] : memref<48xf32, #tpu.memory_space<smem>>
    %275 = vector.broadcast %274 : f32 to vector<8x384xf32>
    %276 = arith.mulf %275, %18 : vector<8x384xf32>
    %277 = arith.addf %273, %276 : vector<8x384xf32>
    %c1_41 = arith.constant 1 : index
    %278 = memref.load %arg4[%c1_41] : memref<48xf32, #tpu.memory_space<smem>>
    %279 = vector.broadcast %278 : f32 to vector<8x384xf32>
    %280 = arith.mulf %279, %21 : vector<8x384xf32>
    %281 = arith.addf %277, %280 : vector<8x384xf32>
    %c17_42 = arith.constant 17 : index
    %282 = memref.load %arg4[%c17_42] : memref<48xf32, #tpu.memory_space<smem>>
    %283 = vector.broadcast %282 : f32 to vector<8x384xf32>
    %284 = arith.mulf %283, %8 : vector<8x384xf32>
    %285 = arith.addf %281, %284 : vector<8x384xf32>
    %c33_43 = arith.constant 33 : index
    %286 = memref.load %arg4[%c33_43] : memref<48xf32, #tpu.memory_space<smem>>
    %287 = vector.broadcast %286 : f32 to vector<8x384xf32>
    %288 = arith.mulf %287, %24 : vector<8x384xf32>
    %289 = arith.addf %285, %288 : vector<8x384xf32>
    %c2_44 = arith.constant 2 : index
    %290 = memref.load %arg4[%c2_44] : memref<48xf32, #tpu.memory_space<smem>>
    %291 = vector.broadcast %290 : f32 to vector<8x384xf32>
    %292 = arith.mulf %291, %27 : vector<8x384xf32>
    %293 = arith.addf %289, %292 : vector<8x384xf32>
    %c18_45 = arith.constant 18 : index
    %294 = memref.load %arg4[%c18_45] : memref<48xf32, #tpu.memory_space<smem>>
    %295 = vector.broadcast %294 : f32 to vector<8x384xf32>
    %296 = arith.mulf %295, %10 : vector<8x384xf32>
    %297 = arith.addf %293, %296 : vector<8x384xf32>
    %c34_46 = arith.constant 34 : index
    %298 = memref.load %arg4[%c34_46] : memref<48xf32, #tpu.memory_space<smem>>
    %299 = vector.broadcast %298 : f32 to vector<8x384xf32>
    %300 = arith.mulf %299, %30 : vector<8x384xf32>
    %301 = arith.addf %297, %300 : vector<8x384xf32>
    %c3_47 = arith.constant 3 : index
    %302 = memref.load %arg4[%c3_47] : memref<48xf32, #tpu.memory_space<smem>>
    %303 = vector.broadcast %302 : f32 to vector<8x384xf32>
    %304 = arith.mulf %303, %33 : vector<8x384xf32>
    %305 = arith.addf %301, %304 : vector<8x384xf32>
    %c19_48 = arith.constant 19 : index
    %306 = memref.load %arg4[%c19_48] : memref<48xf32, #tpu.memory_space<smem>>
    %307 = vector.broadcast %306 : f32 to vector<8x384xf32>
    %308 = arith.mulf %307, %12 : vector<8x384xf32>
    %309 = arith.addf %305, %308 : vector<8x384xf32>
    %c35_49 = arith.constant 35 : index
    %310 = memref.load %arg4[%c35_49] : memref<48xf32, #tpu.memory_space<smem>>
    %311 = vector.broadcast %310 : f32 to vector<8x384xf32>
    %312 = arith.mulf %311, %36 : vector<8x384xf32>
    %313 = arith.addf %309, %312 : vector<8x384xf32>
    %c0_50 = arith.constant 0 : index
    %314 = memref.load %arg5[%c0_50] : memref<4xf32, #tpu.memory_space<smem>>
    %315 = vector.broadcast %314 : f32 to vector<8x384xf32>
    %316 = arith.addf %313, %315 : vector<8x384xf32>
    %cst_51 = arith.constant 0.000000e+00 : f32
    %317 = vector.broadcast %cst_51 : f32 to vector<8x384xf32>
    %c4_52 = arith.constant 4 : index
    %318 = memref.load %arg4[%c4_52] : memref<48xf32, #tpu.memory_space<smem>>
    %319 = vector.broadcast %318 : f32 to vector<8x384xf32>
    %320 = arith.mulf %319, %15 : vector<8x384xf32>
    %321 = arith.addf %317, %320 : vector<8x384xf32>
    %c20_53 = arith.constant 20 : index
    %322 = memref.load %arg4[%c20_53] : memref<48xf32, #tpu.memory_space<smem>>
    %323 = vector.broadcast %322 : f32 to vector<8x384xf32>
    %324 = arith.mulf %323, %6 : vector<8x384xf32>
    %325 = arith.addf %321, %324 : vector<8x384xf32>
    %c36_54 = arith.constant 36 : index
    %326 = memref.load %arg4[%c36_54] : memref<48xf32, #tpu.memory_space<smem>>
    %327 = vector.broadcast %326 : f32 to vector<8x384xf32>
    %328 = arith.mulf %327, %18 : vector<8x384xf32>
    %329 = arith.addf %325, %328 : vector<8x384xf32>
    %c5_55 = arith.constant 5 : index
    %330 = memref.load %arg4[%c5_55] : memref<48xf32, #tpu.memory_space<smem>>
    %331 = vector.broadcast %330 : f32 to vector<8x384xf32>
    %332 = arith.mulf %331, %21 : vector<8x384xf32>
    %333 = arith.addf %329, %332 : vector<8x384xf32>
    %c21_56 = arith.constant 21 : index
    %334 = memref.load %arg4[%c21_56] : memref<48xf32, #tpu.memory_space<smem>>
    %335 = vector.broadcast %334 : f32 to vector<8x384xf32>
    %336 = arith.mulf %335, %8 : vector<8x384xf32>
    %337 = arith.addf %333, %336 : vector<8x384xf32>
    %c37_57 = arith.constant 37 : index
    %338 = memref.load %arg4[%c37_57] : memref<48xf32, #tpu.memory_space<smem>>
    %339 = vector.broadcast %338 : f32 to vector<8x384xf32>
    %340 = arith.mulf %339, %24 : vector<8x384xf32>
    %341 = arith.addf %337, %340 : vector<8x384xf32>
    %c6_58 = arith.constant 6 : index
    %342 = memref.load %arg4[%c6_58] : memref<48xf32, #tpu.memory_space<smem>>
    %343 = vector.broadcast %342 : f32 to vector<8x384xf32>
    %344 = arith.mulf %343, %27 : vector<8x384xf32>
    %345 = arith.addf %341, %344 : vector<8x384xf32>
    %c22_59 = arith.constant 22 : index
    %346 = memref.load %arg4[%c22_59] : memref<48xf32, #tpu.memory_space<smem>>
    %347 = vector.broadcast %346 : f32 to vector<8x384xf32>
    %348 = arith.mulf %347, %10 : vector<8x384xf32>
    %349 = arith.addf %345, %348 : vector<8x384xf32>
    %c38_60 = arith.constant 38 : index
    %350 = memref.load %arg4[%c38_60] : memref<48xf32, #tpu.memory_space<smem>>
    %351 = vector.broadcast %350 : f32 to vector<8x384xf32>
    %352 = arith.mulf %351, %30 : vector<8x384xf32>
    %353 = arith.addf %349, %352 : vector<8x384xf32>
    %c7_61 = arith.constant 7 : index
    %354 = memref.load %arg4[%c7_61] : memref<48xf32, #tpu.memory_space<smem>>
    %355 = vector.broadcast %354 : f32 to vector<8x384xf32>
    %356 = arith.mulf %355, %33 : vector<8x384xf32>
    %357 = arith.addf %353, %356 : vector<8x384xf32>
    %c23_62 = arith.constant 23 : index
    %358 = memref.load %arg4[%c23_62] : memref<48xf32, #tpu.memory_space<smem>>
    %359 = vector.broadcast %358 : f32 to vector<8x384xf32>
    %360 = arith.mulf %359, %12 : vector<8x384xf32>
    %361 = arith.addf %357, %360 : vector<8x384xf32>
    %c39_63 = arith.constant 39 : index
    %362 = memref.load %arg4[%c39_63] : memref<48xf32, #tpu.memory_space<smem>>
    %363 = vector.broadcast %362 : f32 to vector<8x384xf32>
    %364 = arith.mulf %363, %36 : vector<8x384xf32>
    %365 = arith.addf %361, %364 : vector<8x384xf32>
    %c1_64 = arith.constant 1 : index
    %366 = memref.load %arg5[%c1_64] : memref<4xf32, #tpu.memory_space<smem>>
    %367 = vector.broadcast %366 : f32 to vector<8x384xf32>
    %368 = arith.addf %365, %367 : vector<8x384xf32>
    %cst_65 = arith.constant 0.000000e+00 : f32
    %369 = vector.broadcast %cst_65 : f32 to vector<8x384xf32>
    %c8_66 = arith.constant 8 : index
    %370 = memref.load %arg4[%c8_66] : memref<48xf32, #tpu.memory_space<smem>>
    %371 = vector.broadcast %370 : f32 to vector<8x384xf32>
    %372 = arith.mulf %371, %15 : vector<8x384xf32>
    %373 = arith.addf %369, %372 : vector<8x384xf32>
    %c24_67 = arith.constant 24 : index
    %374 = memref.load %arg4[%c24_67] : memref<48xf32, #tpu.memory_space<smem>>
    %375 = vector.broadcast %374 : f32 to vector<8x384xf32>
    %376 = arith.mulf %375, %6 : vector<8x384xf32>
    %377 = arith.addf %373, %376 : vector<8x384xf32>
    %c40_68 = arith.constant 40 : index
    %378 = memref.load %arg4[%c40_68] : memref<48xf32, #tpu.memory_space<smem>>
    %379 = vector.broadcast %378 : f32 to vector<8x384xf32>
    %380 = arith.mulf %379, %18 : vector<8x384xf32>
    %381 = arith.addf %377, %380 : vector<8x384xf32>
    %c9_69 = arith.constant 9 : index
    %382 = memref.load %arg4[%c9_69] : memref<48xf32, #tpu.memory_space<smem>>
    %383 = vector.broadcast %382 : f32 to vector<8x384xf32>
    %384 = arith.mulf %383, %21 : vector<8x384xf32>
    %385 = arith.addf %381, %384 : vector<8x384xf32>
    %c25_70 = arith.constant 25 : index
    %386 = memref.load %arg4[%c25_70] : memref<48xf32, #tpu.memory_space<smem>>
    %387 = vector.broadcast %386 : f32 to vector<8x384xf32>
    %388 = arith.mulf %387, %8 : vector<8x384xf32>
    %389 = arith.addf %385, %388 : vector<8x384xf32>
    %c41_71 = arith.constant 41 : index
    %390 = memref.load %arg4[%c41_71] : memref<48xf32, #tpu.memory_space<smem>>
    %391 = vector.broadcast %390 : f32 to vector<8x384xf32>
    %392 = arith.mulf %391, %24 : vector<8x384xf32>
    %393 = arith.addf %389, %392 : vector<8x384xf32>
    %c10_72 = arith.constant 10 : index
    %394 = memref.load %arg4[%c10_72] : memref<48xf32, #tpu.memory_space<smem>>
    %395 = vector.broadcast %394 : f32 to vector<8x384xf32>
    %396 = arith.mulf %395, %27 : vector<8x384xf32>
    %397 = arith.addf %393, %396 : vector<8x384xf32>
    %c26_73 = arith.constant 26 : index
    %398 = memref.load %arg4[%c26_73] : memref<48xf32, #tpu.memory_space<smem>>
    %399 = vector.broadcast %398 : f32 to vector<8x384xf32>
    %400 = arith.mulf %399, %10 : vector<8x384xf32>
    %401 = arith.addf %397, %400 : vector<8x384xf32>
    %c42_74 = arith.constant 42 : index
    %402 = memref.load %arg4[%c42_74] : memref<48xf32, #tpu.memory_space<smem>>
    %403 = vector.broadcast %402 : f32 to vector<8x384xf32>
    %404 = arith.mulf %403, %30 : vector<8x384xf32>
    %405 = arith.addf %401, %404 : vector<8x384xf32>
    %c11_75 = arith.constant 11 : index
    %406 = memref.load %arg4[%c11_75] : memref<48xf32, #tpu.memory_space<smem>>
    %407 = vector.broadcast %406 : f32 to vector<8x384xf32>
    %408 = arith.mulf %407, %33 : vector<8x384xf32>
    %409 = arith.addf %405, %408 : vector<8x384xf32>
    %c27_76 = arith.constant 27 : index
    %410 = memref.load %arg4[%c27_76] : memref<48xf32, #tpu.memory_space<smem>>
    %411 = vector.broadcast %410 : f32 to vector<8x384xf32>
    %412 = arith.mulf %411, %12 : vector<8x384xf32>
    %413 = arith.addf %409, %412 : vector<8x384xf32>
    %c43_77 = arith.constant 43 : index
    %414 = memref.load %arg4[%c43_77] : memref<48xf32, #tpu.memory_space<smem>>
    %415 = vector.broadcast %414 : f32 to vector<8x384xf32>
    %416 = arith.mulf %415, %36 : vector<8x384xf32>
    %417 = arith.addf %413, %416 : vector<8x384xf32>
    %c2_78 = arith.constant 2 : index
    %418 = memref.load %arg5[%c2_78] : memref<4xf32, #tpu.memory_space<smem>>
    %419 = vector.broadcast %418 : f32 to vector<8x384xf32>
    %420 = arith.addf %417, %419 : vector<8x384xf32>
    %cst_79 = arith.constant 0.000000e+00 : f32
    %421 = vector.broadcast %cst_79 : f32 to vector<8x384xf32>
    %c12_80 = arith.constant 12 : index
    %422 = memref.load %arg4[%c12_80] : memref<48xf32, #tpu.memory_space<smem>>
    %423 = vector.broadcast %422 : f32 to vector<8x384xf32>
    %424 = arith.mulf %423, %15 : vector<8x384xf32>
    %425 = arith.addf %421, %424 : vector<8x384xf32>
    %c28_81 = arith.constant 28 : index
    %426 = memref.load %arg4[%c28_81] : memref<48xf32, #tpu.memory_space<smem>>
    %427 = vector.broadcast %426 : f32 to vector<8x384xf32>
    %428 = arith.mulf %427, %6 : vector<8x384xf32>
    %429 = arith.addf %425, %428 : vector<8x384xf32>
    %c44_82 = arith.constant 44 : index
    %430 = memref.load %arg4[%c44_82] : memref<48xf32, #tpu.memory_space<smem>>
    %431 = vector.broadcast %430 : f32 to vector<8x384xf32>
    %432 = arith.mulf %431, %18 : vector<8x384xf32>
    %433 = arith.addf %429, %432 : vector<8x384xf32>
    %c13_83 = arith.constant 13 : index
    %434 = memref.load %arg4[%c13_83] : memref<48xf32, #tpu.memory_space<smem>>
    %435 = vector.broadcast %434 : f32 to vector<8x384xf32>
    %436 = arith.mulf %435, %21 : vector<8x384xf32>
    %437 = arith.addf %433, %436 : vector<8x384xf32>
    %c29_84 = arith.constant 29 : index
    %438 = memref.load %arg4[%c29_84] : memref<48xf32, #tpu.memory_space<smem>>
    %439 = vector.broadcast %438 : f32 to vector<8x384xf32>
    %440 = arith.mulf %439, %8 : vector<8x384xf32>
    %441 = arith.addf %437, %440 : vector<8x384xf32>
    %c45_85 = arith.constant 45 : index
    %442 = memref.load %arg4[%c45_85] : memref<48xf32, #tpu.memory_space<smem>>
    %443 = vector.broadcast %442 : f32 to vector<8x384xf32>
    %444 = arith.mulf %443, %24 : vector<8x384xf32>
    %445 = arith.addf %441, %444 : vector<8x384xf32>
    %c14_86 = arith.constant 14 : index
    %446 = memref.load %arg4[%c14_86] : memref<48xf32, #tpu.memory_space<smem>>
    %447 = vector.broadcast %446 : f32 to vector<8x384xf32>
    %448 = arith.mulf %447, %27 : vector<8x384xf32>
    %449 = arith.addf %445, %448 : vector<8x384xf32>
    %c30_87 = arith.constant 30 : index
    %450 = memref.load %arg4[%c30_87] : memref<48xf32, #tpu.memory_space<smem>>
    %451 = vector.broadcast %450 : f32 to vector<8x384xf32>
    %452 = arith.mulf %451, %10 : vector<8x384xf32>
    %453 = arith.addf %449, %452 : vector<8x384xf32>
    %c46_88 = arith.constant 46 : index
    %454 = memref.load %arg4[%c46_88] : memref<48xf32, #tpu.memory_space<smem>>
    %455 = vector.broadcast %454 : f32 to vector<8x384xf32>
    %456 = arith.mulf %455, %30 : vector<8x384xf32>
    %457 = arith.addf %453, %456 : vector<8x384xf32>
    %c15_89 = arith.constant 15 : index
    %458 = memref.load %arg4[%c15_89] : memref<48xf32, #tpu.memory_space<smem>>
    %459 = vector.broadcast %458 : f32 to vector<8x384xf32>
    %460 = arith.mulf %459, %33 : vector<8x384xf32>
    %461 = arith.addf %457, %460 : vector<8x384xf32>
    %c31_90 = arith.constant 31 : index
    %462 = memref.load %arg4[%c31_90] : memref<48xf32, #tpu.memory_space<smem>>
    %463 = vector.broadcast %462 : f32 to vector<8x384xf32>
    %464 = arith.mulf %463, %12 : vector<8x384xf32>
    %465 = arith.addf %461, %464 : vector<8x384xf32>
    %c47_91 = arith.constant 47 : index
    %466 = memref.load %arg4[%c47_91] : memref<48xf32, #tpu.memory_space<smem>>
    %467 = vector.broadcast %466 : f32 to vector<8x384xf32>
    %468 = arith.mulf %467, %36 : vector<8x384xf32>
    %469 = arith.addf %465, %468 : vector<8x384xf32>
    %c3_92 = arith.constant 3 : index
    %470 = memref.load %arg5[%c3_92] : memref<4xf32, #tpu.memory_space<smem>>
    %471 = vector.broadcast %470 : f32 to vector<8x384xf32>
    %472 = arith.addf %469, %471 : vector<8x384xf32>
    %473 = arith.negf %316 : vector<8x384xf32>
    %474 = math.exp %473 : vector<8x384xf32>
    %cst_93 = arith.constant 1.000000e+00 : f32
    %475 = vector.broadcast %cst_93 : f32 to vector<8x384xf32>
    %476 = arith.addf %475, %474 : vector<8x384xf32>
    %477 = arith.divf %475, %476 : vector<8x384xf32>
    %478 = arith.negf %368 : vector<8x384xf32>
    %479 = math.exp %478 : vector<8x384xf32>
    %cst_94 = arith.constant 1.000000e+00 : f32
    %480 = vector.broadcast %cst_94 : f32 to vector<8x384xf32>
    %481 = arith.addf %480, %479 : vector<8x384xf32>
    %482 = arith.divf %480, %481 : vector<8x384xf32>
    %483 = arith.negf %420 : vector<8x384xf32>
    %484 = math.exp %483 : vector<8x384xf32>
    %cst_95 = arith.constant 1.000000e+00 : f32
    %485 = vector.broadcast %cst_95 : f32 to vector<8x384xf32>
    %486 = arith.addf %485, %484 : vector<8x384xf32>
    %487 = arith.divf %485, %486 : vector<8x384xf32>
    %488 = arith.negf %472 : vector<8x384xf32>
    %489 = math.exp %488 : vector<8x384xf32>
    %cst_96 = arith.constant 1.000000e+00 : f32
    %490 = vector.broadcast %cst_96 : f32 to vector<8x384xf32>
    %491 = arith.addf %490, %489 : vector<8x384xf32>
    %492 = arith.divf %490, %491 : vector<8x384xf32>
    %493 = arith.mulf %6, %249 : vector<8x384xf32>
    %c1_i32_97 = arith.constant 1 : i32
    %494 = tpu.dynamic_rotate %493 by %c1_i32_97 dim 1 : vector<8x384xf32>, i32 -> vector<8x384xf32>
    %cst_98 = arith.constant 0.000000e+00 : f32
    %495 = vector.broadcast %cst_98 : f32 to vector<8x384xf32>
    %496 = arith.select %2, %494, %495 : vector<8x384xi1>, vector<8x384xf32>
    %c383_i32_99 = arith.constant 383 : i32
    %497 = tpu.dynamic_rotate %493 by %c383_i32_99 dim 1 : vector<8x384xf32>, i32 -> vector<8x384xf32>
    %cst_100 = arith.constant 0.000000e+00 : f32
    %498 = vector.broadcast %cst_100 : f32 to vector<8x384xf32>
    %499 = arith.select %4, %497, %498 : vector<8x384xi1>, vector<8x384xf32>
    %500 = arith.mulf %8, %254 : vector<8x384xf32>
    %c1_i32_101 = arith.constant 1 : i32
    %501 = tpu.dynamic_rotate %500 by %c1_i32_101 dim 1 : vector<8x384xf32>, i32 -> vector<8x384xf32>
    %cst_102 = arith.constant 0.000000e+00 : f32
    %502 = vector.broadcast %cst_102 : f32 to vector<8x384xf32>
    %503 = arith.select %2, %501, %502 : vector<8x384xi1>, vector<8x384xf32>
    %c383_i32_103 = arith.constant 383 : i32
    %504 = tpu.dynamic_rotate %500 by %c383_i32_103 dim 1 : vector<8x384xf32>, i32 -> vector<8x384xf32>
    %cst_104 = arith.constant 0.000000e+00 : f32
    %505 = vector.broadcast %cst_104 : f32 to vector<8x384xf32>
    %506 = arith.select %4, %504, %505 : vector<8x384xi1>, vector<8x384xf32>
    %507 = arith.mulf %10, %259 : vector<8x384xf32>
    %c1_i32_105 = arith.constant 1 : i32
    %508 = tpu.dynamic_rotate %507 by %c1_i32_105 dim 1 : vector<8x384xf32>, i32 -> vector<8x384xf32>
    %cst_106 = arith.constant 0.000000e+00 : f32
    %509 = vector.broadcast %cst_106 : f32 to vector<8x384xf32>
    %510 = arith.select %2, %508, %509 : vector<8x384xi1>, vector<8x384xf32>
    %c383_i32_107 = arith.constant 383 : i32
    %511 = tpu.dynamic_rotate %507 by %c383_i32_107 dim 1 : vector<8x384xf32>, i32 -> vector<8x384xf32>
    %cst_108 = arith.constant 0.000000e+00 : f32
    %512 = vector.broadcast %cst_108 : f32 to vector<8x384xf32>
    %513 = arith.select %4, %511, %512 : vector<8x384xi1>, vector<8x384xf32>
    %514 = arith.mulf %12, %264 : vector<8x384xf32>
    %c1_i32_109 = arith.constant 1 : i32
    %515 = tpu.dynamic_rotate %514 by %c1_i32_109 dim 1 : vector<8x384xf32>, i32 -> vector<8x384xf32>
    %cst_110 = arith.constant 0.000000e+00 : f32
    %516 = vector.broadcast %cst_110 : f32 to vector<8x384xf32>
    %517 = arith.select %2, %515, %516 : vector<8x384xi1>, vector<8x384xf32>
    %c383_i32_111 = arith.constant 383 : i32
    %518 = tpu.dynamic_rotate %514 by %c383_i32_111 dim 1 : vector<8x384xf32>, i32 -> vector<8x384xf32>
    %cst_112 = arith.constant 0.000000e+00 : f32
    %519 = vector.broadcast %cst_112 : f32 to vector<8x384xf32>
    %520 = arith.select %4, %518, %519 : vector<8x384xi1>, vector<8x384xf32>
    %cst_113 = arith.constant 0.000000e+00 : f32
    %521 = vector.broadcast %cst_113 : f32 to vector<8x384xf32>
    %c0_114 = arith.constant 0 : index
    %522 = memref.load %arg6[%c0_114] : memref<48xf32, #tpu.memory_space<smem>>
    %523 = vector.broadcast %522 : f32 to vector<8x384xf32>
    %524 = arith.mulf %523, %496 : vector<8x384xf32>
    %525 = arith.addf %521, %524 : vector<8x384xf32>
    %c16_115 = arith.constant 16 : index
    %526 = memref.load %arg6[%c16_115] : memref<48xf32, #tpu.memory_space<smem>>
    %527 = vector.broadcast %526 : f32 to vector<8x384xf32>
    %528 = arith.mulf %527, %493 : vector<8x384xf32>
    %529 = arith.addf %525, %528 : vector<8x384xf32>
    %c32_116 = arith.constant 32 : index
    %530 = memref.load %arg6[%c32_116] : memref<48xf32, #tpu.memory_space<smem>>
    %531 = vector.broadcast %530 : f32 to vector<8x384xf32>
    %532 = arith.mulf %531, %499 : vector<8x384xf32>
    %533 = arith.addf %529, %532 : vector<8x384xf32>
    %c1_117 = arith.constant 1 : index
    %534 = memref.load %arg6[%c1_117] : memref<48xf32, #tpu.memory_space<smem>>
    %535 = vector.broadcast %534 : f32 to vector<8x384xf32>
    %536 = arith.mulf %535, %503 : vector<8x384xf32>
    %537 = arith.addf %533, %536 : vector<8x384xf32>
    %c17_118 = arith.constant 17 : index
    %538 = memref.load %arg6[%c17_118] : memref<48xf32, #tpu.memory_space<smem>>
    %539 = vector.broadcast %538 : f32 to vector<8x384xf32>
    %540 = arith.mulf %539, %500 : vector<8x384xf32>
    %541 = arith.addf %537, %540 : vector<8x384xf32>
    %c33_119 = arith.constant 33 : index
    %542 = memref.load %arg6[%c33_119] : memref<48xf32, #tpu.memory_space<smem>>
    %543 = vector.broadcast %542 : f32 to vector<8x384xf32>
    %544 = arith.mulf %543, %506 : vector<8x384xf32>
    %545 = arith.addf %541, %544 : vector<8x384xf32>
    %c2_120 = arith.constant 2 : index
    %546 = memref.load %arg6[%c2_120] : memref<48xf32, #tpu.memory_space<smem>>
    %547 = vector.broadcast %546 : f32 to vector<8x384xf32>
    %548 = arith.mulf %547, %510 : vector<8x384xf32>
    %549 = arith.addf %545, %548 : vector<8x384xf32>
    %c18_121 = arith.constant 18 : index
    %550 = memref.load %arg6[%c18_121] : memref<48xf32, #tpu.memory_space<smem>>
    %551 = vector.broadcast %550 : f32 to vector<8x384xf32>
    %552 = arith.mulf %551, %507 : vector<8x384xf32>
    %553 = arith.addf %549, %552 : vector<8x384xf32>
    %c34_122 = arith.constant 34 : index
    %554 = memref.load %arg6[%c34_122] : memref<48xf32, #tpu.memory_space<smem>>
    %555 = vector.broadcast %554 : f32 to vector<8x384xf32>
    %556 = arith.mulf %555, %513 : vector<8x384xf32>
    %557 = arith.addf %553, %556 : vector<8x384xf32>
    %c3_123 = arith.constant 3 : index
    %558 = memref.load %arg6[%c3_123] : memref<48xf32, #tpu.memory_space<smem>>
    %559 = vector.broadcast %558 : f32 to vector<8x384xf32>
    %560 = arith.mulf %559, %517 : vector<8x384xf32>
    %561 = arith.addf %557, %560 : vector<8x384xf32>
    %c19_124 = arith.constant 19 : index
    %562 = memref.load %arg6[%c19_124] : memref<48xf32, #tpu.memory_space<smem>>
    %563 = vector.broadcast %562 : f32 to vector<8x384xf32>
    %564 = arith.mulf %563, %514 : vector<8x384xf32>
    %565 = arith.addf %561, %564 : vector<8x384xf32>
    %c35_125 = arith.constant 35 : index
    %566 = memref.load %arg6[%c35_125] : memref<48xf32, #tpu.memory_space<smem>>
    %567 = vector.broadcast %566 : f32 to vector<8x384xf32>
    %568 = arith.mulf %567, %520 : vector<8x384xf32>
    %569 = arith.addf %565, %568 : vector<8x384xf32>
    %c0_126 = arith.constant 0 : index
    %570 = memref.load %arg7[%c0_126] : memref<4xf32, #tpu.memory_space<smem>>
    %571 = vector.broadcast %570 : f32 to vector<8x384xf32>
    %572 = arith.addf %569, %571 : vector<8x384xf32>
    %cst_127 = arith.constant 0.000000e+00 : f32
    %573 = vector.broadcast %cst_127 : f32 to vector<8x384xf32>
    %c4_128 = arith.constant 4 : index
    %574 = memref.load %arg6[%c4_128] : memref<48xf32, #tpu.memory_space<smem>>
    %575 = vector.broadcast %574 : f32 to vector<8x384xf32>
    %576 = arith.mulf %575, %496 : vector<8x384xf32>
    %577 = arith.addf %573, %576 : vector<8x384xf32>
    %c20_129 = arith.constant 20 : index
    %578 = memref.load %arg6[%c20_129] : memref<48xf32, #tpu.memory_space<smem>>
    %579 = vector.broadcast %578 : f32 to vector<8x384xf32>
    %580 = arith.mulf %579, %493 : vector<8x384xf32>
    %581 = arith.addf %577, %580 : vector<8x384xf32>
    %c36_130 = arith.constant 36 : index
    %582 = memref.load %arg6[%c36_130] : memref<48xf32, #tpu.memory_space<smem>>
    %583 = vector.broadcast %582 : f32 to vector<8x384xf32>
    %584 = arith.mulf %583, %499 : vector<8x384xf32>
    %585 = arith.addf %581, %584 : vector<8x384xf32>
    %c5_131 = arith.constant 5 : index
    %586 = memref.load %arg6[%c5_131] : memref<48xf32, #tpu.memory_space<smem>>
    %587 = vector.broadcast %586 : f32 to vector<8x384xf32>
    %588 = arith.mulf %587, %503 : vector<8x384xf32>
    %589 = arith.addf %585, %588 : vector<8x384xf32>
    %c21_132 = arith.constant 21 : index
    %590 = memref.load %arg6[%c21_132] : memref<48xf32, #tpu.memory_space<smem>>
    %591 = vector.broadcast %590 : f32 to vector<8x384xf32>
    %592 = arith.mulf %591, %500 : vector<8x384xf32>
    %593 = arith.addf %589, %592 : vector<8x384xf32>
    %c37_133 = arith.constant 37 : index
    %594 = memref.load %arg6[%c37_133] : memref<48xf32, #tpu.memory_space<smem>>
    %595 = vector.broadcast %594 : f32 to vector<8x384xf32>
    %596 = arith.mulf %595, %506 : vector<8x384xf32>
    %597 = arith.addf %593, %596 : vector<8x384xf32>
    %c6_134 = arith.constant 6 : index
    %598 = memref.load %arg6[%c6_134] : memref<48xf32, #tpu.memory_space<smem>>
    %599 = vector.broadcast %598 : f32 to vector<8x384xf32>
    %600 = arith.mulf %599, %510 : vector<8x384xf32>
    %601 = arith.addf %597, %600 : vector<8x384xf32>
    %c22_135 = arith.constant 22 : index
    %602 = memref.load %arg6[%c22_135] : memref<48xf32, #tpu.memory_space<smem>>
    %603 = vector.broadcast %602 : f32 to vector<8x384xf32>
    %604 = arith.mulf %603, %507 : vector<8x384xf32>
    %605 = arith.addf %601, %604 : vector<8x384xf32>
    %c38_136 = arith.constant 38 : index
    %606 = memref.load %arg6[%c38_136] : memref<48xf32, #tpu.memory_space<smem>>
    %607 = vector.broadcast %606 : f32 to vector<8x384xf32>
    %608 = arith.mulf %607, %513 : vector<8x384xf32>
    %609 = arith.addf %605, %608 : vector<8x384xf32>
    %c7_137 = arith.constant 7 : index
    %610 = memref.load %arg6[%c7_137] : memref<48xf32, #tpu.memory_space<smem>>
    %611 = vector.broadcast %610 : f32 to vector<8x384xf32>
    %612 = arith.mulf %611, %517 : vector<8x384xf32>
    %613 = arith.addf %609, %612 : vector<8x384xf32>
    %c23_138 = arith.constant 23 : index
    %614 = memref.load %arg6[%c23_138] : memref<48xf32, #tpu.memory_space<smem>>
    %615 = vector.broadcast %614 : f32 to vector<8x384xf32>
    %616 = arith.mulf %615, %514 : vector<8x384xf32>
    %617 = arith.addf %613, %616 : vector<8x384xf32>
    %c39_139 = arith.constant 39 : index
    %618 = memref.load %arg6[%c39_139] : memref<48xf32, #tpu.memory_space<smem>>
    %619 = vector.broadcast %618 : f32 to vector<8x384xf32>
    %620 = arith.mulf %619, %520 : vector<8x384xf32>
    %621 = arith.addf %617, %620 : vector<8x384xf32>
    %c1_140 = arith.constant 1 : index
    %622 = memref.load %arg7[%c1_140] : memref<4xf32, #tpu.memory_space<smem>>
    %623 = vector.broadcast %622 : f32 to vector<8x384xf32>
    %624 = arith.addf %621, %623 : vector<8x384xf32>
    %cst_141 = arith.constant 0.000000e+00 : f32
    %625 = vector.broadcast %cst_141 : f32 to vector<8x384xf32>
    %c8_142 = arith.constant 8 : index
    %626 = memref.load %arg6[%c8_142] : memref<48xf32, #tpu.memory_space<smem>>
    %627 = vector.broadcast %626 : f32 to vector<8x384xf32>
    %628 = arith.mulf %627, %496 : vector<8x384xf32>
    %629 = arith.addf %625, %628 : vector<8x384xf32>
    %c24_143 = arith.constant 24 : index
    %630 = memref.load %arg6[%c24_143] : memref<48xf32, #tpu.memory_space<smem>>
    %631 = vector.broadcast %630 : f32 to vector<8x384xf32>
    %632 = arith.mulf %631, %493 : vector<8x384xf32>
    %633 = arith.addf %629, %632 : vector<8x384xf32>
    %c40_144 = arith.constant 40 : index
    %634 = memref.load %arg6[%c40_144] : memref<48xf32, #tpu.memory_space<smem>>
    %635 = vector.broadcast %634 : f32 to vector<8x384xf32>
    %636 = arith.mulf %635, %499 : vector<8x384xf32>
    %637 = arith.addf %633, %636 : vector<8x384xf32>
    %c9_145 = arith.constant 9 : index
    %638 = memref.load %arg6[%c9_145] : memref<48xf32, #tpu.memory_space<smem>>
    %639 = vector.broadcast %638 : f32 to vector<8x384xf32>
    %640 = arith.mulf %639, %503 : vector<8x384xf32>
    %641 = arith.addf %637, %640 : vector<8x384xf32>
    %c25_146 = arith.constant 25 : index
    %642 = memref.load %arg6[%c25_146] : memref<48xf32, #tpu.memory_space<smem>>
    %643 = vector.broadcast %642 : f32 to vector<8x384xf32>
    %644 = arith.mulf %643, %500 : vector<8x384xf32>
    %645 = arith.addf %641, %644 : vector<8x384xf32>
    %c41_147 = arith.constant 41 : index
    %646 = memref.load %arg6[%c41_147] : memref<48xf32, #tpu.memory_space<smem>>
    %647 = vector.broadcast %646 : f32 to vector<8x384xf32>
    %648 = arith.mulf %647, %506 : vector<8x384xf32>
    %649 = arith.addf %645, %648 : vector<8x384xf32>
    %c10_148 = arith.constant 10 : index
    %650 = memref.load %arg6[%c10_148] : memref<48xf32, #tpu.memory_space<smem>>
    %651 = vector.broadcast %650 : f32 to vector<8x384xf32>
    %652 = arith.mulf %651, %510 : vector<8x384xf32>
    %653 = arith.addf %649, %652 : vector<8x384xf32>
    %c26_149 = arith.constant 26 : index
    %654 = memref.load %arg6[%c26_149] : memref<48xf32, #tpu.memory_space<smem>>
    %655 = vector.broadcast %654 : f32 to vector<8x384xf32>
    %656 = arith.mulf %655, %507 : vector<8x384xf32>
    %657 = arith.addf %653, %656 : vector<8x384xf32>
    %c42_150 = arith.constant 42 : index
    %658 = memref.load %arg6[%c42_150] : memref<48xf32, #tpu.memory_space<smem>>
    %659 = vector.broadcast %658 : f32 to vector<8x384xf32>
    %660 = arith.mulf %659, %513 : vector<8x384xf32>
    %661 = arith.addf %657, %660 : vector<8x384xf32>
    %c11_151 = arith.constant 11 : index
    %662 = memref.load %arg6[%c11_151] : memref<48xf32, #tpu.memory_space<smem>>
    %663 = vector.broadcast %662 : f32 to vector<8x384xf32>
    %664 = arith.mulf %663, %517 : vector<8x384xf32>
    %665 = arith.addf %661, %664 : vector<8x384xf32>
    %c27_152 = arith.constant 27 : index
    %666 = memref.load %arg6[%c27_152] : memref<48xf32, #tpu.memory_space<smem>>
    %667 = vector.broadcast %666 : f32 to vector<8x384xf32>
    %668 = arith.mulf %667, %514 : vector<8x384xf32>
    %669 = arith.addf %665, %668 : vector<8x384xf32>
    %c43_153 = arith.constant 43 : index
    %670 = memref.load %arg6[%c43_153] : memref<48xf32, #tpu.memory_space<smem>>
    %671 = vector.broadcast %670 : f32 to vector<8x384xf32>
    %672 = arith.mulf %671, %520 : vector<8x384xf32>
    %673 = arith.addf %669, %672 : vector<8x384xf32>
    %c2_154 = arith.constant 2 : index
    %674 = memref.load %arg7[%c2_154] : memref<4xf32, #tpu.memory_space<smem>>
    %675 = vector.broadcast %674 : f32 to vector<8x384xf32>
    %676 = arith.addf %673, %675 : vector<8x384xf32>
    %cst_155 = arith.constant 0.000000e+00 : f32
    %677 = vector.broadcast %cst_155 : f32 to vector<8x384xf32>
    %c12_156 = arith.constant 12 : index
    %678 = memref.load %arg6[%c12_156] : memref<48xf32, #tpu.memory_space<smem>>
    %679 = vector.broadcast %678 : f32 to vector<8x384xf32>
    %680 = arith.mulf %679, %496 : vector<8x384xf32>
    %681 = arith.addf %677, %680 : vector<8x384xf32>
    %c28_157 = arith.constant 28 : index
    %682 = memref.load %arg6[%c28_157] : memref<48xf32, #tpu.memory_space<smem>>
    %683 = vector.broadcast %682 : f32 to vector<8x384xf32>
    %684 = arith.mulf %683, %493 : vector<8x384xf32>
    %685 = arith.addf %681, %684 : vector<8x384xf32>
    %c44_158 = arith.constant 44 : index
    %686 = memref.load %arg6[%c44_158] : memref<48xf32, #tpu.memory_space<smem>>
    %687 = vector.broadcast %686 : f32 to vector<8x384xf32>
    %688 = arith.mulf %687, %499 : vector<8x384xf32>
    %689 = arith.addf %685, %688 : vector<8x384xf32>
    %c13_159 = arith.constant 13 : index
    %690 = memref.load %arg6[%c13_159] : memref<48xf32, #tpu.memory_space<smem>>
    %691 = vector.broadcast %690 : f32 to vector<8x384xf32>
    %692 = arith.mulf %691, %503 : vector<8x384xf32>
    %693 = arith.addf %689, %692 : vector<8x384xf32>
    %c29_160 = arith.constant 29 : index
    %694 = memref.load %arg6[%c29_160] : memref<48xf32, #tpu.memory_space<smem>>
    %695 = vector.broadcast %694 : f32 to vector<8x384xf32>
    %696 = arith.mulf %695, %500 : vector<8x384xf32>
    %697 = arith.addf %693, %696 : vector<8x384xf32>
    %c45_161 = arith.constant 45 : index
    %698 = memref.load %arg6[%c45_161] : memref<48xf32, #tpu.memory_space<smem>>
    %699 = vector.broadcast %698 : f32 to vector<8x384xf32>
    %700 = arith.mulf %699, %506 : vector<8x384xf32>
    %701 = arith.addf %697, %700 : vector<8x384xf32>
    %c14_162 = arith.constant 14 : index
    %702 = memref.load %arg6[%c14_162] : memref<48xf32, #tpu.memory_space<smem>>
    %703 = vector.broadcast %702 : f32 to vector<8x384xf32>
    %704 = arith.mulf %703, %510 : vector<8x384xf32>
    %705 = arith.addf %701, %704 : vector<8x384xf32>
    %c30_163 = arith.constant 30 : index
    %706 = memref.load %arg6[%c30_163] : memref<48xf32, #tpu.memory_space<smem>>
    %707 = vector.broadcast %706 : f32 to vector<8x384xf32>
    %708 = arith.mulf %707, %507 : vector<8x384xf32>
    %709 = arith.addf %705, %708 : vector<8x384xf32>
    %c46_164 = arith.constant 46 : index
    %710 = memref.load %arg6[%c46_164] : memref<48xf32, #tpu.memory_space<smem>>
    %711 = vector.broadcast %710 : f32 to vector<8x384xf32>
    %712 = arith.mulf %711, %513 : vector<8x384xf32>
    %713 = arith.addf %709, %712 : vector<8x384xf32>
    %c15_165 = arith.constant 15 : index
    %714 = memref.load %arg6[%c15_165] : memref<48xf32, #tpu.memory_space<smem>>
    %715 = vector.broadcast %714 : f32 to vector<8x384xf32>
    %716 = arith.mulf %715, %517 : vector<8x384xf32>
    %717 = arith.addf %713, %716 : vector<8x384xf32>
    %c31_166 = arith.constant 31 : index
    %718 = memref.load %arg6[%c31_166] : memref<48xf32, #tpu.memory_space<smem>>
    %719 = vector.broadcast %718 : f32 to vector<8x384xf32>
    %720 = arith.mulf %719, %514 : vector<8x384xf32>
    %721 = arith.addf %717, %720 : vector<8x384xf32>
    %c47_167 = arith.constant 47 : index
    %722 = memref.load %arg6[%c47_167] : memref<48xf32, #tpu.memory_space<smem>>
    %723 = vector.broadcast %722 : f32 to vector<8x384xf32>
    %724 = arith.mulf %723, %520 : vector<8x384xf32>
    %725 = arith.addf %721, %724 : vector<8x384xf32>
    %c3_168 = arith.constant 3 : index
    %726 = memref.load %arg7[%c3_168] : memref<4xf32, #tpu.memory_space<smem>>
    %727 = vector.broadcast %726 : f32 to vector<8x384xf32>
    %728 = arith.addf %725, %727 : vector<8x384xf32>
    %cst_169 = arith.constant 0.000000e+00 : f32
    %729 = vector.broadcast %cst_169 : f32 to vector<8x384xf32>
    %730 = arith.maximumf %572, %729 : vector<8x384xf32>
    %cst_170 = arith.constant 0.000000e+00 : f32
    %731 = vector.broadcast %cst_170 : f32 to vector<8x384xf32>
    %732 = arith.maximumf %624, %731 : vector<8x384xf32>
    %cst_171 = arith.constant 0.000000e+00 : f32
    %733 = vector.broadcast %cst_171 : f32 to vector<8x384xf32>
    %734 = arith.maximumf %676, %733 : vector<8x384xf32>
    %cst_172 = arith.constant 0.000000e+00 : f32
    %735 = vector.broadcast %cst_172 : f32 to vector<8x384xf32>
    %736 = arith.maximumf %728, %735 : vector<8x384xf32>
    %737 = arith.mulf %730, %477 : vector<8x384xf32>
    %c1_i32_173 = arith.constant 1 : i32
    %738 = tpu.dynamic_rotate %737 by %c1_i32_173 dim 1 : vector<8x384xf32>, i32 -> vector<8x384xf32>
    %cst_174 = arith.constant 0.000000e+00 : f32
    %739 = vector.broadcast %cst_174 : f32 to vector<8x384xf32>
    %740 = arith.select %2, %738, %739 : vector<8x384xi1>, vector<8x384xf32>
    %c383_i32_175 = arith.constant 383 : i32
    %741 = tpu.dynamic_rotate %737 by %c383_i32_175 dim 1 : vector<8x384xf32>, i32 -> vector<8x384xf32>
    %cst_176 = arith.constant 0.000000e+00 : f32
    %742 = vector.broadcast %cst_176 : f32 to vector<8x384xf32>
    %743 = arith.select %4, %741, %742 : vector<8x384xi1>, vector<8x384xf32>
    %744 = arith.mulf %732, %482 : vector<8x384xf32>
    %c1_i32_177 = arith.constant 1 : i32
    %745 = tpu.dynamic_rotate %744 by %c1_i32_177 dim 1 : vector<8x384xf32>, i32 -> vector<8x384xf32>
    %cst_178 = arith.constant 0.000000e+00 : f32
    %746 = vector.broadcast %cst_178 : f32 to vector<8x384xf32>
    %747 = arith.select %2, %745, %746 : vector<8x384xi1>, vector<8x384xf32>
    %c383_i32_179 = arith.constant 383 : i32
    %748 = tpu.dynamic_rotate %744 by %c383_i32_179 dim 1 : vector<8x384xf32>, i32 -> vector<8x384xf32>
    %cst_180 = arith.constant 0.000000e+00 : f32
    %749 = vector.broadcast %cst_180 : f32 to vector<8x384xf32>
    %750 = arith.select %4, %748, %749 : vector<8x384xi1>, vector<8x384xf32>
    %751 = arith.mulf %734, %487 : vector<8x384xf32>
    %c1_i32_181 = arith.constant 1 : i32
    %752 = tpu.dynamic_rotate %751 by %c1_i32_181 dim 1 : vector<8x384xf32>, i32 -> vector<8x384xf32>
    %cst_182 = arith.constant 0.000000e+00 : f32
    %753 = vector.broadcast %cst_182 : f32 to vector<8x384xf32>
    %754 = arith.select %2, %752, %753 : vector<8x384xi1>, vector<8x384xf32>
    %c383_i32_183 = arith.constant 383 : i32
    %755 = tpu.dynamic_rotate %751 by %c383_i32_183 dim 1 : vector<8x384xf32>, i32 -> vector<8x384xf32>
    %cst_184 = arith.constant 0.000000e+00 : f32
    %756 = vector.broadcast %cst_184 : f32 to vector<8x384xf32>
    %757 = arith.select %4, %755, %756 : vector<8x384xi1>, vector<8x384xf32>
    %758 = arith.mulf %736, %492 : vector<8x384xf32>
    %c1_i32_185 = arith.constant 1 : i32
    %759 = tpu.dynamic_rotate %758 by %c1_i32_185 dim 1 : vector<8x384xf32>, i32 -> vector<8x384xf32>
    %cst_186 = arith.constant 0.000000e+00 : f32
    %760 = vector.broadcast %cst_186 : f32 to vector<8x384xf32>
    %761 = arith.select %2, %759, %760 : vector<8x384xi1>, vector<8x384xf32>
    %c383_i32_187 = arith.constant 383 : i32
    %762 = tpu.dynamic_rotate %758 by %c383_i32_187 dim 1 : vector<8x384xf32>, i32 -> vector<8x384xf32>
    %cst_188 = arith.constant 0.000000e+00 : f32
    %763 = vector.broadcast %cst_188 : f32 to vector<8x384xf32>
    %764 = arith.select %4, %762, %763 : vector<8x384xi1>, vector<8x384xf32>
    %cst_189 = arith.constant 0.000000e+00 : f32
    %765 = vector.broadcast %cst_189 : f32 to vector<8x384xf32>
    %c0_190 = arith.constant 0 : index
    %766 = memref.load %arg8[%c0_190] : memref<12xf32, #tpu.memory_space<smem>>
    %767 = vector.broadcast %766 : f32 to vector<8x384xf32>
    %768 = arith.mulf %767, %740 : vector<8x384xf32>
    %769 = arith.addf %765, %768 : vector<8x384xf32>
    %c4_191 = arith.constant 4 : index
    %770 = memref.load %arg8[%c4_191] : memref<12xf32, #tpu.memory_space<smem>>
    %771 = vector.broadcast %770 : f32 to vector<8x384xf32>
    %772 = arith.mulf %771, %737 : vector<8x384xf32>
    %773 = arith.addf %769, %772 : vector<8x384xf32>
    %c8_192 = arith.constant 8 : index
    %774 = memref.load %arg8[%c8_192] : memref<12xf32, #tpu.memory_space<smem>>
    %775 = vector.broadcast %774 : f32 to vector<8x384xf32>
    %776 = arith.mulf %775, %743 : vector<8x384xf32>
    %777 = arith.addf %773, %776 : vector<8x384xf32>
    %c1_193 = arith.constant 1 : index
    %778 = memref.load %arg8[%c1_193] : memref<12xf32, #tpu.memory_space<smem>>
    %779 = vector.broadcast %778 : f32 to vector<8x384xf32>
    %780 = arith.mulf %779, %747 : vector<8x384xf32>
    %781 = arith.addf %777, %780 : vector<8x384xf32>
    %c5_194 = arith.constant 5 : index
    %782 = memref.load %arg8[%c5_194] : memref<12xf32, #tpu.memory_space<smem>>
    %783 = vector.broadcast %782 : f32 to vector<8x384xf32>
    %784 = arith.mulf %783, %744 : vector<8x384xf32>
    %785 = arith.addf %781, %784 : vector<8x384xf32>
    %c9_195 = arith.constant 9 : index
    %786 = memref.load %arg8[%c9_195] : memref<12xf32, #tpu.memory_space<smem>>
    %787 = vector.broadcast %786 : f32 to vector<8x384xf32>
    %788 = arith.mulf %787, %750 : vector<8x384xf32>
    %789 = arith.addf %785, %788 : vector<8x384xf32>
    %c2_196 = arith.constant 2 : index
    %790 = memref.load %arg8[%c2_196] : memref<12xf32, #tpu.memory_space<smem>>
    %791 = vector.broadcast %790 : f32 to vector<8x384xf32>
    %792 = arith.mulf %791, %754 : vector<8x384xf32>
    %793 = arith.addf %789, %792 : vector<8x384xf32>
    %c6_197 = arith.constant 6 : index
    %794 = memref.load %arg8[%c6_197] : memref<12xf32, #tpu.memory_space<smem>>
    %795 = vector.broadcast %794 : f32 to vector<8x384xf32>
    %796 = arith.mulf %795, %751 : vector<8x384xf32>
    %797 = arith.addf %793, %796 : vector<8x384xf32>
    %c10_198 = arith.constant 10 : index
    %798 = memref.load %arg8[%c10_198] : memref<12xf32, #tpu.memory_space<smem>>
    %799 = vector.broadcast %798 : f32 to vector<8x384xf32>
    %800 = arith.mulf %799, %757 : vector<8x384xf32>
    %801 = arith.addf %797, %800 : vector<8x384xf32>
    %c3_199 = arith.constant 3 : index
    %802 = memref.load %arg8[%c3_199] : memref<12xf32, #tpu.memory_space<smem>>
    %803 = vector.broadcast %802 : f32 to vector<8x384xf32>
    %804 = arith.mulf %803, %761 : vector<8x384xf32>
    %805 = arith.addf %801, %804 : vector<8x384xf32>
    %c7_200 = arith.constant 7 : index
    %806 = memref.load %arg8[%c7_200] : memref<12xf32, #tpu.memory_space<smem>>
    %807 = vector.broadcast %806 : f32 to vector<8x384xf32>
    %808 = arith.mulf %807, %758 : vector<8x384xf32>
    %809 = arith.addf %805, %808 : vector<8x384xf32>
    %c11_201 = arith.constant 11 : index
    %810 = memref.load %arg8[%c11_201] : memref<12xf32, #tpu.memory_space<smem>>
    %811 = vector.broadcast %810 : f32 to vector<8x384xf32>
    %812 = arith.mulf %811, %764 : vector<8x384xf32>
    %813 = arith.addf %809, %812 : vector<8x384xf32>
    %c0_202 = arith.constant 0 : index
    %814 = memref.load %arg9[%c0_202] : memref<1xf32, #tpu.memory_space<smem>>
    %815 = vector.broadcast %814 : f32 to vector<8x384xf32>
    %816 = arith.addf %813, %815 : vector<8x384xf32>
    %c0_203 = arith.constant 0 : index
    %c0_204 = arith.constant 0 : index
    %817 = vector.load %arg13[%c0_203, %c0_204] : memref<8x384xf32, #tpu.memory_space<vmem>>, vector<8x384xf32>
    tpu.vector_store %arg13[%c0_203, %c0_204], %816 {strides = array<i32>} : memref<8x384xf32, #tpu.memory_space<vmem>>, vector<8x384xf32>,
    %c0_205 = arith.constant 0 : index
    %c0_206 = arith.constant 0 : index
    %818 = vector.load %arg10[%c0_205, %c0_206] : memref<384x384xf32, #tpu.memory_space<vmem>>, vector<384x384xf32>
    %cst_207 = arith.constant dense<0.000000e+00> : vector<8x384xf32>
    %819 = tpu.matmul %816, %818, %cst_207 {dimension_numbers = #tpu.dot_dimension_numbers<[1], [0], [0], [1], [0, 0, 1, 1], [], []>} : vector<8x384xf32>, vector<384x384xf32>, vector<8x384xf32> -> vector<8x384xf32>
    %c0_208 = arith.constant 0 : index
    %c0_209 = arith.constant 0 : index
    %820 = vector.load %arg11[%c0_208, %c0_209] : memref<1x384xf32, #tpu.memory_space<vmem>>, vector<1x384xf32>
    %821 = vector.broadcast %820 : vector<1x384xf32> to vector<8x384xf32>
    %822 = arith.addf %819, %821 : vector<8x384xf32>
    %c0_210 = arith.constant 0 : index
    %c0_211 = arith.constant 0 : index
    %823 = vector.load %arg12[%c0_210, %c0_211] : memref<8x384xf32, #tpu.memory_space<vmem>>, vector<8x384xf32>
    tpu.vector_store %arg12[%c0_210, %c0_211], %822 {strides = array<i32>} : memref<8x384xf32, #tpu.memory_space<vmem>>, vector<8x384xf32>,
    return
  }
  func.func @transform_0(%arg0: i32) -> (i32, i32, i32) {
    %c0_i32 = arith.constant 0 : i32
    %c0_i32_0 = arith.constant 0 : i32
    %c0_i32_1 = arith.constant 0 : i32
    return %c0_i32, %arg0, %c0_i32_0 : i32, i32, i32
  }
  func.func @transform_1(%arg0: i32) -> i32 {
    %c0_i32 = arith.constant 0 : i32
    %c0_i32_0 = arith.constant 0 : i32
    return %c0_i32 : i32
  }
  func.func @transform_2(%arg0: i32) -> i32 {
    %c0_i32 = arith.constant 0 : i32
    %c0_i32_0 = arith.constant 0 : i32
    return %c0_i32 : i32
  }
  func.func @transform_3(%arg0: i32) -> i32 {
    %c0_i32 = arith.constant 0 : i32
    %c0_i32_0 = arith.constant 0 : i32
    return %c0_i32 : i32
  }
  func.func @transform_4(%arg0: i32) -> i32 {
    %c0_i32 = arith.constant 0 : i32
    %c0_i32_0 = arith.constant 0 : i32
    return %c0_i32 : i32
  }
  func.func @transform_5(%arg0: i32) -> i32 {
    %c0_i32 = arith.constant 0 : i32
    %c0_i32_0 = arith.constant 0 : i32
    return %c0_i32 : i32
  }
  func.func @transform_6(%arg0: i32) -> i32 {
    %c0_i32 = arith.constant 0 : i32
    %c0_i32_0 = arith.constant 0 : i32
    return %c0_i32 : i32
  }
  func.func @transform_7(%arg0: i32) -> i32 {
    %c0_i32 = arith.constant 0 : i32
    %c0_i32_0 = arith.constant 0 : i32
    return %c0_i32 : i32
  }
  func.func @transform_8(%arg0: i32) -> i32 {
    %c0_i32 = arith.constant 0 : i32
    %c0_i32_0 = arith.constant 0 : i32
    return %c0_i32 : i32
  }
  func.func @transform_9(%arg0: i32) -> (i32, i32) {
    %c0_i32 = arith.constant 0 : i32
    %c0_i32_0 = arith.constant 0 : i32
    %c0_i32_1 = arith.constant 0 : i32
    return %c0_i32, %c0_i32_0 : i32, i32
  }
  func.func @transform_10(%arg0: i32) -> (i32, i32) {
    %c0_i32 = arith.constant 0 : i32
    %c0_i32_0 = arith.constant 0 : i32
    %c0_i32_1 = arith.constant 0 : i32
    return %c0_i32, %c0_i32_0 : i32, i32
  }
  func.func @transform_11(%arg0: i32) -> (i32, i32) {
    %c0_i32 = arith.constant 0 : i32
    %c0_i32_0 = arith.constant 0 : i32
    return %arg0, %c0_i32 : i32, i32
  }
  func.func @transform_12(%arg0: i32) -> (i32, i32) {
    %c0_i32 = arith.constant 0 : i32
    %c0_i32_0 = arith.constant 0 : i32
    return %arg0, %c0_i32 : i32, i32
  }
}

</mosaic_0001>

<llo_original>
// kernel: tpu_custom_call.1
$region0: #{tpu_custom_call.1}
  #allocation0 [shape = 'u32[]', space=smem, size = 0x4, offset = 0x4, fixed_abs, tag = 'smem constant byte address 0x4 - core index']
  #allocation1 [shape = 'u32[144,128]{1,0:T(1,128)}', space=vmem, size = 0x12000, scoped, tag = 'internal scratch']
  #allocation2 [shape = 'f32[1]{0:T(128)S(6)}', space=smem, size = 0x200, scoped, tag = 'scoped memory for tpu_custom_call.1']
  %s0 = inlined_call_operand.hbm [shape: f32[4,8,384], index: 0, kind: input, shape index: {}]
  %s1 = inlined_call_operand.vmem [shape: f32[48], index: 1, kind: input, shape index: {}]
  %s2 = inlined_call_operand.vmem [shape: f32[4], index: 2, kind: input, shape index: {}]
  %s3 = inlined_call_operand.vmem [shape: f32[48], index: 3, kind: input, shape index: {}]
  %s4 = inlined_call_operand.vmem [shape: f32[4], index: 4, kind: input, shape index: {}]
  %s5 = inlined_call_operand.vmem [shape: f32[48], index: 5, kind: input, shape index: {}]
  %s6 = inlined_call_operand.vmem [shape: f32[4], index: 6, kind: input, shape index: {}]
  %s7 = inlined_call_operand.vmem [shape: f32[12], index: 7, kind: input, shape index: {}]
  %s8 = inlined_call_operand.<no memory space> [shape: f32[1], index: 8, kind: input, shape index: {}]
  %s9 = inlined_call_operand.hbm [shape: f32[384,384], index: 9, kind: input, shape index: {}]
  %s10 = inlined_call_operand.vmem [shape: f32[1,384], index: 10, kind: input, shape index: {}]
  %s11 = inlined_call_operand.hbm [shape: f32[8,384], index: 11, kind: output, shape index: {0}]
  %s12 = inlined_call_operand.hbm [shape: f32[8,384], index: 12, kind: output, shape index: {1}]
  %13 = xla_tuple %s11, %s12
  %s14 = sld [smem:[#allocation0]]
  $region98: #{tpu_custom_call.1} parent=0
    _
  %s16 = ssub.s32 1, %s14
  %s17 = scalar_select 0, %s16, %s14
  %18 = sst [smem:[#allocation2]] %s8
  $region1: #{tpu_custom_call.1} parent=0
    #allocation3 [shape = 'u8[49152]{0}', space=vmem, size = 0xc000, scoped, tag = 'input window, operand 0, single buffered']
    #allocation4 [shape = 's32[1]{0}', space=sflag, size = 0x4, scoped, tag = 'scoped memory for tpu_custom_call.1']
    #allocation5 [shape = 's32[1]{0}', space=sflag, size = 0x4, scoped, tag = 'scoped memory for tpu_custom_call.1']
    #allocation6 [shape = 's32[1]{0}', space=sflag, size = 0x4, scoped, tag = 'scoped memory for tpu_custom_call.1']
    #allocation7 [shape = 'u8[512]{0}', space=smem, size = 0x200, scoped, tag = 'input window, operand 1, single buffered']
    #allocation8 [shape = 'u8[512]{0}', space=smem, size = 0x200, scoped, tag = 'input window, operand 2, single buffered']
    #allocation9 [shape = 's32[1]{0}', space=sflag, size = 0x4, scoped, tag = 'scoped memory for tpu_custom_call.1']
    #allocation10 [shape = 'u8[512]{0}', space=smem, size = 0x200, scoped, tag = 'input window, operand 3, single buffered']
    #allocation11 [shape = 'u8[512]{0}', space=smem, size = 0x200, scoped, tag = 'input window, operand 4, single buffered']
    #allocation12 [shape = 's32[1]{0}', space=sflag, size = 0x4, scoped, tag = 'scoped memory for tpu_custom_call.1']
    #allocation13 [shape = 'u8[512]{0}', space=smem, size = 0x200, scoped, tag = 'input window, operand 5, single buffered']
    #allocation14 [shape = 'u8[512]{0}', space=smem, size = 0x200, scoped, tag = 'input window, operand 6, single buffered']
    #allocation15 [shape = 's32[1]{0}', space=sflag, size = 0x4, scoped, tag = 'scoped memory for tpu_custom_call.1']
    #allocation16 [shape = 'u8[512]{0}', space=smem, size = 0x200, scoped, tag = 'input window, operand 7, single buffered']
    #allocation17 [shape = 'u8[589824]{0}', space=vmem, size = 0x90000, scoped, tag = 'input window, operand 9, single buffered']
    #allocation18 [shape = 's32[1]{0}', space=sflag, size = 0x4, scoped, tag = 'scoped memory for tpu_custom_call.1']
    #allocation19 [shape = 'u8[12288]{0}', space=vmem, size = 0x3000, scoped, tag = 'output window, operand 0, single buffered']
    #allocation20 [shape = 'u8[12288]{0}', space=vmem, size = 0x3000, scoped, tag = 'output window, operand 1, single buffered']
    #allocation21 [shape = 's32[1]{0}', space=sflag, size = 0x4, scoped, tag = 'scoped memory for tpu_custom_call.1']
    %19 = vsyncpa [#allocation4], 0
    %20 = vsyncpa [#allocation6], 0
    %21 = vsyncpa [#allocation9], 0
    %22 = vsyncpa [#allocation12], 0
    %23 = vsyncpa [#allocation15], 0
    %24 = vsyncpa [#allocation18], 0
    %25 = vsyncpa [#allocation5], 0
    %26 = vsyncpa [#allocation21], 0
    // Predicated region
    $region2: #{tpu_custom_call.1} parent=1 // pred_check
      _
    $region3: #{tpu_custom_call.1} parent=1 // pred_check_branch
      %28 = sbr.rel (0) target = $region5
    $region4: #{tpu_custom_call.1} parent=1 // pred_region
      %s30 = ssub.s32 1536, 1536
      %31 = vsyncadd [#allocation4], %s30
      %s32 = sshll.u32 [#allocation3], 4
      %s33 = int_to_ptr.vmem [resolvable:$true] %s32
      %38 = dma.hbm_to_vmem [thread:$0]  %s0, 1536, %s33, [#allocation4], 384, 384, 24
    $region5: #{tpu_custom_call.1} parent=1 // pred_fallthru
      _
    // Predicated region
    $region6: #{tpu_custom_call.1} parent=1 // pred_check
      _
    $region7: #{tpu_custom_call.1} parent=1 // pred_check_branch
      %40 = sbr.rel (0) target = $region9
    $region8: #{tpu_custom_call.1} parent=1 // pred_region
      %s42 = ssub.s32 16, 16
      %43 = vsyncadd [#allocation6], %s42
      %s45 = sshll.u32 %s1, 4
      %s46 = int_to_ptr.vmem [resolvable:$true] %s45
      %48 = dma.vmem_to_smem %s46, 16, [#allocation7], [#allocation6]
    $region9: #{tpu_custom_call.1} parent=1 // pred_fallthru
      _
    // Predicated region
    $region10: #{tpu_custom_call.1} parent=1 // pred_check
      _
    $region11: #{tpu_custom_call.1} parent=1 // pred_check_branch
      %50 = sbr.rel (0) target = $region13
    $region12: #{tpu_custom_call.1} parent=1 // pred_region
      %s52 = ssub.s32 16, 16
      %53 = vsyncadd [#allocation9], %s52
      %s55 = sshll.u32 %s2, 4
      %s56 = int_to_ptr.vmem [resolvable:$true] %s55
      %58 = dma.vmem_to_smem %s56, 16, [#allocation8], [#allocation9]
    $region13: #{tpu_custom_call.1} parent=1 // pred_fallthru
      _
    // Predicated region
    $region14: #{tpu_custom_call.1} parent=1 // pred_check
      _
    $region15: #{tpu_custom_call.1} parent=1 // pred_check_branch
      %60 = sbr.rel (0) target = $region17
    $region16: #{tpu_custom_call.1} parent=1 // pred_region
      %s62 = ssub.s32 16, 16
      %63 = vsyncadd [#allocation9], %s62
      %s65 = sshll.u32 %s3, 4
      %s66 = int_to_ptr.vmem [resolvable:$true] %s65
      %68 = dma.vmem_to_smem %s66, 16, [#allocation10], [#allocation9]
    $region17: #{tpu_custom_call.1} parent=1 // pred_fallthru
      _
    // Predicated region
    $region18: #{tpu_custom_call.1} parent=1 // pred_check
      _
    $region19: #{tpu_custom_call.1} parent=1 // pred_check_branch
      %70 = sbr.rel (0) target = $region21
    $region20: #{tpu_custom_call.1} parent=1 // pred_region
      %s72 = ssub.s32 16, 16
      %73 = vsyncadd [#allocation12], %s72
      %s75 = sshll.u32 %s4, 4
      %s76 = int_to_ptr.vmem [resolvable:$true] %s75
      %78 = dma.vmem_to_smem %s76, 16, [#allocation11], [#allocation12]
    $region21: #{tpu_custom_call.1} parent=1 // pred_fallthru
      _
    // Predicated region
    $region22: #{tpu_custom_call.1} parent=1 // pred_check
      _
    $region23: #{tpu_custom_call.1} parent=1 // pred_check_branch
      %80 = sbr.rel (0) target = $region25
    $region24: #{tpu_custom_call.1} parent=1 // pred_region
      %s82 = ssub.s32 16, 16
      %83 = vsyncadd [#allocation12], %s82
      %s85 = sshll.u32 %s5, 4
      %s86 = int_to_ptr.vmem [resolvable:$true] %s85
      %88 = dma.vmem_to_smem %s86, 16, [#allocation13], [#allocation12]
    $region25: #{tpu_custom_call.1} parent=1 // pred_fallthru
      _
    // Predicated region
    $region26: #{tpu_custom_call.1} parent=1 // pred_check
      _
    $region27: #{tpu_custom_call.1} parent=1 // pred_check_branch
      %90 = sbr.rel (0) target = $region29
    $region28: #{tpu_custom_call.1} parent=1 // pred_region
      %s92 = ssub.s32 16, 16
      %93 = vsyncadd [#allocation15], %s92
      %s95 = sshll.u32 %s6, 4
      %s96 = int_to_ptr.vmem [resolvable:$true] %s95
      %98 = dma.vmem_to_smem %s96, 16, [#allocation14], [#allocation15]
    $region29: #{tpu_custom_call.1} parent=1 // pred_fallthru
      _
    // Predicated region
    $region30: #{tpu_custom_call.1} parent=1 // pred_check
      _
    $region31: #{tpu_custom_call.1} parent=1 // pred_check_branch
      %100 = sbr.rel (0) target = $region33
    $region32: #{tpu_custom_call.1} parent=1 // pred_region
      %s102 = ssub.s32 16, 16
      %103 = vsyncadd [#allocation15], %s102
      %s105 = sshll.u32 %s7, 4
      %s106 = int_to_ptr.vmem [resolvable:$true] %s105
      %108 = dma.vmem_to_smem %s106, 16, [#allocation16], [#allocation15]
    $region33: #{tpu_custom_call.1} parent=1 // pred_fallthru
      _
    // Predicated region
    $region34: #{tpu_custom_call.1} parent=1 // pred_check
      _
    $region35: #{tpu_custom_call.1} parent=1 // pred_check_branch
      %110 = sbr.rel (0) target = $region37
    $region36: #{tpu_custom_call.1} parent=1 // pred_region
      _
    $region37: #{tpu_custom_call.1} parent=1 // pred_fallthru
      _
    // Predicated region
    $region38: #{tpu_custom_call.1} parent=1 // pred_check
      _
    $region39: #{tpu_custom_call.1} parent=1 // pred_check_branch
      %112 = sbr.rel (0) target = $region41
    $region40: #{tpu_custom_call.1} parent=1 // pred_region
      %s114 = ssub.s32 18432, 18432
      %115 = vsyncadd [#allocation18], %s114
      %s116 = sshll.u32 [#allocation17], 4
      %s117 = int_to_ptr.vmem [resolvable:$true] %s116
      %122 = dma.hbm_to_vmem [thread:$0]  %s9, 18432, %s117, [#allocation18], 384, 384, 24
    $region41: #{tpu_custom_call.1} parent=1 // pred_fallthru
      _
    // Predicated region
    $region42: #{tpu_custom_call.1} parent=1 // pred_check
      _
    $region43: #{tpu_custom_call.1} parent=1 // pred_check_branch
      %124 = sbr.rel (0) target = $region45
    $region44: #{tpu_custom_call.1} parent=1 // pred_region
      _
    $region45: #{tpu_custom_call.1} parent=1 // pred_fallthru
      _
    // Predicated region
    $region46: #{tpu_custom_call.1} parent=1 // pred_check
      _
    $region47: #{tpu_custom_call.1} parent=1 // pred_check_branch
      %126 = sbr.rel (0) target = $region49
    $region48: #{tpu_custom_call.1} parent=1 // pred_region
      %127 = dma.done [#allocation4], 1536
    $region49: #{tpu_custom_call.1} parent=1 // pred_fallthru
      _
    // Predicated region
    $region50: #{tpu_custom_call.1} parent=1 // pred_check
      _
    $region51: #{tpu_custom_call.1} parent=1 // pred_check_branch
      %129 = sbr.rel (0) target = $region53
    $region52: #{tpu_custom_call.1} parent=1 // pred_region
      %130 = dma.done [#allocation6], 16
    $region53: #{tpu_custom_call.1} parent=1 // pred_fallthru
      _
    // Predicated region
    $region54: #{tpu_custom_call.1} parent=1 // pred_check
      _
    $region55: #{tpu_custom_call.1} parent=1 // pred_check_branch
      %132 = sbr.rel (0) target = $region57
    $region56: #{tpu_custom_call.1} parent=1 // pred_region
      %133 = dma.done [#allocation9], 16
    $region57: #{tpu_custom_call.1} parent=1 // pred_fallthru
      _
    // Predicated region
    $region58: #{tpu_custom_call.1} parent=1 // pred_check
      _
    $region59: #{tpu_custom_call.1} parent=1 // pred_check_branch
      %135 = sbr.rel (0) target = $region61
    $region60: #{tpu_custom_call.1} parent=1 // pred_region
      %136 = dma.done [#allocation9], 16
    $region61: #{tpu_custom_call.1} parent=1 // pred_fallthru
      _
    // Predicated region
    $region62: #{tpu_custom_call.1} parent=1 // pred_check
      _
    $region63: #{tpu_custom_call.1} parent=1 // pred_check_branch
      %138 = sbr.rel (0) target = $region65
    $region64: #{tpu_custom_call.1} parent=1 // pred_region
      %139 = dma.done [#allocation12], 16
    $region65: #{tpu_custom_call.1} parent=1 // pred_fallthru
      _
    // Predicated region
    $region66: #{tpu_custom_call.1} parent=1 // pred_check
      _
    $region67: #{tpu_custom_call.1} parent=1 // pred_check_branch
      %141 = sbr.rel (0) target = $region69
    $region68: #{tpu_custom_call.1} parent=1 // pred_region
      %142 = dma.done [#allocation12], 16
    $region69: #{tpu_custom_call.1} parent=1 // pred_fallthru
      _
    // Predicated region
    $region70: #{tpu_custom_call.1} parent=1 // pred_check
      _
    $region71: #{tpu_custom_call.1} parent=1 // pred_check_branch
      %144 = sbr.rel (0) target = $region73
    $region72: #{tpu_custom_call.1} parent=1 // pred_region
      %145 = dma.done [#allocation15], 16
    $region73: #{tpu_custom_call.1} parent=1 // pred_fallthru
      _
    // Predicated region
    $region74: #{tpu_custom_call.1} parent=1 // pred_check
      _
    $region75: #{tpu_custom_call.1} parent=1 // pred_check_branch
      %147 = sbr.rel (0) target = $region77
    $region76: #{tpu_custom_call.1} parent=1 // pred_region
      %148 = dma.done [#allocation15], 16
    $region77: #{tpu_custom_call.1} parent=1 // pred_fallthru
      _
    // Predicated region
    $region78: #{tpu_custom_call.1} parent=1 // pred_check
      _
    $region79: #{tpu_custom_call.1} parent=1 // pred_check_branch
      %150 = sbr.rel (0) target = $region81
    $region80: #{tpu_custom_call.1} parent=1 // pred_region
      %151 = dma.done [#allocation18], 18432
    $region81: #{tpu_custom_call.1} parent=1 // pred_fallthru
      _
    %152 = sfence
    %v153 = vlaneseq
    %v154 = vand.u32 %v153, 127
    %v155 = vadd.s32 %v154, 128
    %v156 = vadd.s32 %v154, 256
    %vm157 = vcmp.gt.s32.totalorder %v154, 0
    %vm158 = vcmp.gt.s32.totalorder %v155, 0
    %vm159 = vcmp.gt.s32.totalorder %v156, 0
    %vm160 = vcmp.lt.s32.totalorder %v154, 359
    %vm161 = vcmp.lt.s32.totalorder %v155, 359
    %vm162 = vcmp.lt.s32.totalorder %v156, 359
    %v163 = vld [vmem:[#allocation3] sm:$0xff]
    %v164 = vld [vmem:[#allocation3 + $0x8] sm:$0xff]
    %v165 = vld [vmem:[#allocation3 + $0x10] sm:$0xff]
    %s166 = scalar_lea.vmem [#allocation3], 24
    %v167 = vld [vmem:[%s166] sm:$0xff]
    %v168 = vld [vmem:[%s166 + $0x8] sm:$0xff]
    %v169 = vld [vmem:[%s166 + $0x10] sm:$0xff]
    %s170 = scalar_lea.vmem [#allocation3], 48
    %v171 = vld [vmem:[%s170] sm:$0xff]
    %v172 = vld [vmem:[%s170 + $0x8] sm:$0xff]
    %v173 = vld [vmem:[%s170 + $0x10] sm:$0xff]
    %s174 = scalar_lea.vmem [#allocation3], 72
    %v175 = vld [vmem:[%s174] sm:$0xff]
    %v176 = vld [vmem:[%s174 + $0x8] sm:$0xff]
    %v177 = vld [vmem:[%s174 + $0x10] sm:$0xff]
    %178 = vrot.lane.b32.xlu0 %v163, 1
    %v179 = vpop.permute.xlu0 %178
    %180 = vrot.lane.b32.xlu0 %v164, 1
    %v181 = vpop.permute.xlu0 %180
    %182 = vrot.lane.b32.xlu0 %v165, 1
    %v183 = vpop.permute.xlu0 %182
    %vm184 = vcmp.lt.s32.totalorder %v154, 1
    %v185 = vsel %vm184, %v181, %v183
    %v186 = vsel %vm184, %v179, %v181
    %v187 = vsel %vm184, %v183, %v179
    %v188 = vsel %vm157, %v187, 0.0
    %v189 = vsel %vm158, %v186, 0.0
    %v190 = vsel %vm159, %v185, 0.0
    %191 = vrot.lane.b32.xlu0 %v163, 127
    %v192 = vpop.permute.xlu0 %191
    %193 = vrot.lane.b32.xlu0 %v164, 127
    %v194 = vpop.permute.xlu0 %193
    %195 = vrot.lane.b32.xlu0 %v165, 127
    %v196 = vpop.permute.xlu0 %195
    %vm197 = vcmp.lt.s32.totalorder %v154, 127
    %v198 = vsel %vm197, %v194, %v196
    %v199 = vsel %vm197, %v192, %v194
    %v200 = vsel %vm197, %v196, %v192
    %v201 = vsel %vm160, %v199, 0.0
    %v202 = vsel %vm161, %v198, 0.0
    %v203 = vsel %vm162, %v200, 0.0
    %204 = vrot.lane.b32.xlu0 %v167, 1
    %v205 = vpop.permute.xlu0 %204
    %206 = vrot.lane.b32.xlu0 %v168, 1
    %v207 = vpop.permute.xlu0 %206
    %208 = vrot.lane.b32.xlu0 %v169, 1
    %v209 = vpop.permute.xlu0 %208
    %v210 = vsel %vm184, %v207, %v209
    %v211 = vsel %vm184, %v205, %v207
    %v212 = vsel %vm184, %v209, %v205
    %v213 = vsel %vm157, %v212, 0.0
    %v214 = vsel %vm158, %v211, 0.0
    %v215 = vsel %vm159, %v210, 0.0
    %216 = vrot.lane.b32.xlu0 %v167, 127
    %v217 = vpop.permute.xlu0 %216
    %218 = vrot.lane.b32.xlu0 %v168, 127
    %v219 = vpop.permute.xlu0 %218
    %220 = vrot.lane.b32.xlu0 %v169, 127
    %v221 = vpop.permute.xlu0 %220
    %v222 = vsel %vm197, %v219, %v221
    %v223 = vsel %vm197, %v217, %v219
    %v224 = vsel %vm197, %v221, %v217
    %v225 = vsel %vm160, %v223, 0.0
    %v226 = vsel %vm161, %v222, 0.0
    %v227 = vsel %vm162, %v224, 0.0
    %228 = vrot.lane.b32.xlu0 %v171, 1
    %v229 = vpop.permute.xlu0 %228
    %230 = vrot.lane.b32.xlu0 %v172, 1
    %v231 = vpop.permute.xlu0 %230
    %232 = vrot.lane.b32.xlu0 %v173, 1
    %v233 = vpop.permute.xlu0 %232
    %v234 = vsel %vm184, %v231, %v233
    %v235 = vsel %vm184, %v229, %v231
    %v236 = vsel %vm184, %v233, %v229
    %v237 = vsel %vm157, %v236, 0.0
    %v238 = vsel %vm158, %v235, 0.0
    %v239 = vsel %vm159, %v234, 0.0
    %240 = vrot.lane.b32.xlu0 %v171, 127
    %v241 = vpop.permute.xlu0 %240
    %242 = vrot.lane.b32.xlu0 %v172, 127
    %v243 = vpop.permute.xlu0 %242
    %244 = vrot.lane.b32.xlu0 %v173, 127
    %v245 = vpop.permute.xlu0 %244
    %v246 = vsel %vm197, %v243, %v245
    %v247 = vsel %vm197, %v241, %v243
    %v248 = vsel %vm197, %v245, %v241
    %v249 = vsel %vm160, %v247, 0.0
    %v250 = vsel %vm161, %v246, 0.0
    %v251 = vsel %vm162, %v248, 0.0
    %252 = vrot.lane.b32.xlu0 %v175, 1
    %v253 = vpop.permute.xlu0 %252
    %254 = vrot.lane.b32.xlu0 %v176, 1
    %v255 = vpop.permute.xlu0 %254
    %256 = vrot.lane.b32.xlu0 %v177, 1
    %v257 = vpop.permute.xlu0 %256
    %v258 = vsel %vm184, %v255, %v257
    %v259 = vsel %vm184, %v253, %v255
    %v260 = vsel %vm184, %v257, %v253
    %v261 = vsel %vm157, %v260, 0.0
    %v262 = vsel %vm158, %v259, 0.0
    %v263 = vsel %vm159, %v258, 0.0
    %264 = vrot.lane.b32.xlu0 %v175, 127
    %v265 = vpop.permute.xlu0 %264
    %266 = vrot.lane.b32.xlu0 %v176, 127
    %v267 = vpop.permute.xlu0 %266
    %268 = vrot.lane.b32.xlu0 %v177, 127
    %v269 = vpop.permute.xlu0 %268
    %v270 = vsel %vm197, %v267, %v269
    %v271 = vsel %vm197, %v265, %v267
    %v272 = vsel %vm197, %v269, %v265
    %v273 = vsel %vm160, %v271, 0.0
    %v274 = vsel %vm161, %v270, 0.0
    %v275 = vsel %vm162, %v272, 0.0
    %s276 = sld [smem:[#allocation7]]
    %v277 = vstv %s276
    %v278 = vmul.f32 %v277, %v188
    %v279 = vmul.f32 %v277, %v189
    %v280 = vmul.f32 %v277, %v190
    %v281 = vadd.f32 %v278, 0.0
    %v282 = vadd.f32 %v279, 0.0
    %v283 = vadd.f32 %v280, 0.0
    %s284 = sld [smem:[#allocation7 + $0x10]]
    %v285 = vstv %s284
    %v286 = vmul.f32 %v285, %v163
    %v287 = vmul.f32 %v285, %v164
    %v288 = vmul.f32 %v285, %v165
    %v289 = vadd.f32 %v281, %v286
    %v290 = vadd.f32 %v282, %v287
    %v291 = vadd.f32 %v283, %v288
    %s292 = sld [smem:[#allocation7 + $0x20]]
    %v293 = vstv %s292
    %v294 = vmul.f32 %v293, %v201
    %v295 = vmul.f32 %v293, %v202
    %v296 = vmul.f32 %v293, %v203
    %v297 = vadd.f32 %v289, %v294
    %v298 = vadd.f32 %v290, %v295
    %v299 = vadd.f32 %v291, %v296
    %s300 = sld [smem:[#allocation7 + $0x1]]
    %v301 = vstv %s300
    %v302 = vmul.f32 %v301, %v213
    %v303 = vmul.f32 %v301, %v214
    %v304 = vmul.f32 %v301, %v215
    %v305 = vadd.f32 %v297, %v302
    %v306 = vadd.f32 %v298, %v303
    %v307 = vadd.f32 %v299, %v304
    %s308 = sld [smem:[#allocation7 + $0x11]]
    %v309 = vstv %s308
    %v310 = vmul.f32 %v309, %v167
    %v311 = vmul.f32 %v309, %v168
    %v312 = vmul.f32 %v309, %v169
    %v313 = vadd.f32 %v305, %v310
    %v314 = vadd.f32 %v306, %v311
    %v315 = vadd.f32 %v307, %v312
    %s316 = sld [smem:[#allocation7 + $0x21]]
    %v317 = vstv %s316
    %v318 = vmul.f32 %v317, %v225
    %v319 = vmul.f32 %v317, %v226
    %v320 = vmul.f32 %v317, %v227
    %v321 = vadd.f32 %v313, %v318
    %v322 = vadd.f32 %v314, %v319
    %v323 = vadd.f32 %v315, %v320
    %s324 = sld [smem:[#allocation7 + $0x2]]
    %v325 = vstv %s324
    %v326 = vmul.f32 %v325, %v237
    %v327 = vmul.f32 %v325, %v238
    %v328 = vmul.f32 %v325, %v239
    %v329 = vadd.f32 %v321, %v326
    %v330 = vadd.f32 %v322, %v327
    %v331 = vadd.f32 %v323, %v328
    %s332 = sld [smem:[#allocation7 + $0x12]]
    %v333 = vstv %s332
    %v334 = vmul.f32 %v333, %v171
    %v335 = vmul.f32 %v333, %v172
    %v336 = vmul.f32 %v333, %v173
    %v337 = vadd.f32 %v329, %v334
    %v338 = vadd.f32 %v330, %v335
    %v339 = vadd.f32 %v331, %v336
    %s340 = sld [smem:[#allocation7 + $0x22]]
    %v341 = vstv %s340
    %v342 = vmul.f32 %v341, %v249
    %v343 = vmul.f32 %v341, %v250
    %v344 = vmul.f32 %v341, %v251
    %v345 = vadd.f32 %v337, %v342
    %v346 = vadd.f32 %v338, %v343
    %v347 = vadd.f32 %v339, %v344
    %s348 = sld [smem:[#allocation7 + $0x3]]
    %v349 = vstv %s348
    %v350 = vmul.f32 %v349, %v261
    %v351 = vmul.f32 %v349, %v262
    %v352 = vmul.f32 %v349, %v263
    %v353 = vadd.f32 %v345, %v350
    %v354 = vadd.f32 %v346, %v351
    %v355 = vadd.f32 %v347, %v352
    %s356 = sld [smem:[#allocation7 + $0x13]]
    %v357 = vstv %s356
    %v358 = vmul.f32 %v357, %v175
    %v359 = vmul.f32 %v357, %v176
    %v360 = vmul.f32 %v357, %v177
    %v361 = vadd.f32 %v353, %v358
    %v362 = vadd.f32 %v354, %v359
    %v363 = vadd.f32 %v355, %v360
    %s364 = sld [smem:[#allocation7 + $0x23]]
    %v365 = vstv %s364
    %v366 = vmul.f32 %v365, %v273
    %v367 = vmul.f32 %v365, %v274
    %v368 = vmul.f32 %v365, %v275
    %v369 = vadd.f32 %v361, %v366
    %v370 = vadd.f32 %v362, %v367
    %v371 = vadd.f32 %v363, %v368
    %s372 = sld [smem:[#allocation8]]
    %v373 = vstv %s372
    %v374 = vadd.f32 %v369, %v373
    %v375 = vadd.f32 %v370, %v373
    %v376 = vadd.f32 %v371, %v373
    %s377 = sld [smem:[#allocation7 + $0x4]]
    %v378 = vstv %s377
    %v379 = vmul.f32 %v378, %v188
    %v380 = vmul.f32 %v378, %v189
    %v381 = vmul.f32 %v378, %v190
    %v382 = vadd.f32 %v379, 0.0
    %v383 = vadd.f32 %v380, 0.0
    %v384 = vadd.f32 %v381, 0.0
    %s385 = sld [smem:[#allocation7 + $0x14]]
    %v386 = vstv %s385
    %v387 = vmul.f32 %v386, %v163
    %v388 = vmul.f32 %v386, %v164
    %v389 = vmul.f32 %v386, %v165
    %v390 = vadd.f32 %v382, %v387
    %v391 = vadd.f32 %v383, %v388
    %v392 = vadd.f32 %v384, %v389
    %s393 = sld [smem:[#allocation7 + $0x24]]
    %v394 = vstv %s393
    %v395 = vmul.f32 %v394, %v201
    %v396 = vmul.f32 %v394, %v202
    %v397 = vmul.f32 %v394, %v203
    %v398 = vadd.f32 %v390, %v395
    %v399 = vadd.f32 %v391, %v396
    %v400 = vadd.f32 %v392, %v397
    %s401 = sld [smem:[#allocation7 + $0x5]]
    %v402 = vstv %s401
    %v403 = vmul.f32 %v402, %v213
    %v404 = vmul.f32 %v402, %v214
    %v405 = vmul.f32 %v402, %v215
    %v406 = vadd.f32 %v398, %v403
    %v407 = vadd.f32 %v399, %v404
    %v408 = vadd.f32 %v400, %v405
    %s409 = sld [smem:[#allocation7 + $0x15]]
    %v410 = vstv %s409
    %v411 = vmul.f32 %v410, %v167
    %v412 = vmul.f32 %v410, %v168
    %v413 = vmul.f32 %v410, %v169
    %v414 = vadd.f32 %v406, %v411
    %v415 = vadd.f32 %v407, %v412
    %v416 = vadd.f32 %v408, %v413
    %s417 = sld [smem:[#allocation7 + $0x25]]
    %v418 = vstv %s417
    %v419 = vmul.f32 %v418, %v225
    %v420 = vmul.f32 %v418, %v226
    %v421 = vmul.f32 %v418, %v227
    %v422 = vadd.f32 %v414, %v419
    %v423 = vadd.f32 %v415, %v420
    %v424 = vadd.f32 %v416, %v421
    %s425 = sld [smem:[#allocation7 + $0x6]]
    %v426 = vstv %s425
    %v427 = vmul.f32 %v426, %v237
    %v428 = vmul.f32 %v426, %v238
    %v429 = vmul.f32 %v426, %v239
    %v430 = vadd.f32 %v422, %v427
    %v431 = vadd.f32 %v423, %v428
    %v432 = vadd.f32 %v424, %v429
    %s433 = sld [smem:[#allocation7 + $0x16]]
    %v434 = vstv %s433
    %v435 = vmul.f32 %v434, %v171
    %v436 = vmul.f32 %v434, %v172
    %v437 = vmul.f32 %v434, %v173
    %v438 = vadd.f32 %v430, %v435
    %v439 = vadd.f32 %v431, %v436
    %v440 = vadd.f32 %v432, %v437
    %s441 = sld [smem:[#allocation7 + $0x26]]
    %v442 = vstv %s441
    %v443 = vmul.f32 %v442, %v249
    %v444 = vmul.f32 %v442, %v250
    %v445 = vmul.f32 %v442, %v251
    %v446 = vadd.f32 %v438, %v443
    %v447 = vadd.f32 %v439, %v444
    %v448 = vadd.f32 %v440, %v445
    %s449 = sld [smem:[#allocation7 + $0x7]]
    %v450 = vstv %s449
    %v451 = vmul.f32 %v450, %v261
    %v452 = vmul.f32 %v450, %v262
    %v453 = vmul.f32 %v450, %v263
    %v454 = vadd.f32 %v446, %v451
    %v455 = vadd.f32 %v447, %v452
    %v456 = vadd.f32 %v448, %v453
    %s457 = sld [smem:[#allocation7 + $0x17]]
    %v458 = vstv %s457
    %v459 = vmul.f32 %v458, %v175
    %v460 = vmul.f32 %v458, %v176
    %v461 = vmul.f32 %v458, %v177
    %v462 = vadd.f32 %v454, %v459
    %v463 = vadd.f32 %v455, %v460
    %v464 = vadd.f32 %v456, %v461
    %s465 = sld [smem:[#allocation7 + $0x27]]
    %v466 = vstv %s465
    %v467 = vmul.f32 %v466, %v273
    %v468 = vmul.f32 %v466, %v274
    %v469 = vmul.f32 %v466, %v275
    %v470 = vadd.f32 %v462, %v467
    %v471 = vadd.f32 %v463, %v468
    %v472 = vadd.f32 %v464, %v469
    %s473 = sld [smem:[#allocation8 + $0x1]]
    %v474 = vstv %s473
    %v475 = vadd.f32 %v470, %v474
    %v476 = vadd.f32 %v471, %v474
    %v477 = vadd.f32 %v472, %v474
    %s478 = sld [smem:[#allocation7 + $0x8]]
    %v479 = vstv %s478
    %v480 = vmul.f32 %v479, %v188
    %v481 = vmul.f32 %v479, %v189
    %v482 = vmul.f32 %v479, %v190
    %v483 = vadd.f32 %v480, 0.0
    %v484 = vadd.f32 %v481, 0.0
    %v485 = vadd.f32 %v482, 0.0
    %s486 = sld [smem:[#allocation7 + $0x18]]
    %v487 = vstv %s486
    %v488 = vmul.f32 %v487, %v163
    %v489 = vmul.f32 %v487, %v164
    %v490 = vmul.f32 %v487, %v165
    %v491 = vadd.f32 %v483, %v488
    %v492 = vadd.f32 %v484, %v489
    %v493 = vadd.f32 %v485, %v490
    %s494 = sld [smem:[#allocation7 + $0x28]]
    %v495 = vstv %s494
    %v496 = vmul.f32 %v495, %v201
    %v497 = vmul.f32 %v495, %v202
    %v498 = vmul.f32 %v495, %v203
    %v499 = vadd.f32 %v491, %v496
    %v500 = vadd.f32 %v492, %v497
    %v501 = vadd.f32 %v493, %v498
    %s502 = sld [smem:[#allocation7 + $0x9]]
    %v503 = vstv %s502
    %v504 = vmul.f32 %v503, %v213
    %v505 = vmul.f32 %v503, %v214
    %v506 = vmul.f32 %v503, %v215
    %v507 = vadd.f32 %v499, %v504
    %v508 = vadd.f32 %v500, %v505
    %v509 = vadd.f32 %v501, %v506
    %s510 = sld [smem:[#allocation7 + $0x19]]
    %v511 = vstv %s510
    %v512 = vmul.f32 %v511, %v167
    %v513 = vmul.f32 %v511, %v168
    %v514 = vmul.f32 %v511, %v169
    %v515 = vadd.f32 %v507, %v512
    %v516 = vadd.f32 %v508, %v513
    %v517 = vadd.f32 %v509, %v514
    %s518 = sld [smem:[#allocation7 + $0x29]]
    %v519 = vstv %s518
    %v520 = vmul.f32 %v519, %v225
    %v521 = vmul.f32 %v519, %v226
    %v522 = vmul.f32 %v519, %v227
    %v523 = vadd.f32 %v515, %v520
    %v524 = vadd.f32 %v516, %v521
    %v525 = vadd.f32 %v517, %v522
    %s526 = sld [smem:[#allocation7 + $0xa]]
    %v527 = vstv %s526
    %v528 = vmul.f32 %v527, %v237
    %v529 = vmul.f32 %v527, %v238
    %v530 = vmul.f32 %v527, %v239
    %v531 = vadd.f32 %v523, %v528
    %v532 = vadd.f32 %v524, %v529
    %v533 = vadd.f32 %v525, %v530
    %s534 = sld [smem:[#allocation7 + $0x1a]]
    %v535 = vstv %s534
    %v536 = vmul.f32 %v535, %v171
    %v537 = vmul.f32 %v535, %v172
    %v538 = vmul.f32 %v535, %v173
    %v539 = vadd.f32 %v531, %v536
    %v540 = vadd.f32 %v532, %v537
    %v541 = vadd.f32 %v533, %v538
    %s542 = sld [smem:[#allocation7 + $0x2a]]
    %v543 = vstv %s542
    %v544 = vmul.f32 %v543, %v249
    %v545 = vmul.f32 %v543, %v250
    %v546 = vmul.f32 %v543, %v251
    %v547 = vadd.f32 %v539, %v544
    %v548 = vadd.f32 %v540, %v545
    %v549 = vadd.f32 %v541, %v546
    %s550 = sld [smem:[#allocation7 + $0xb]]
    %v551 = vstv %s550
    %v552 = vmul.f32 %v551, %v261
    %v553 = vmul.f32 %v551, %v262
    %v554 = vmul.f32 %v551, %v263
    %v555 = vadd.f32 %v547, %v552
    %v556 = vadd.f32 %v548, %v553
    %v557 = vadd.f32 %v549, %v554
    %s558 = sld [smem:[#allocation7 + $0x1b]]
    %v559 = vstv %s558
    %v560 = vmul.f32 %v559, %v175
    %v561 = vmul.f32 %v559, %v176
    %v562 = vmul.f32 %v559, %v177
    %v563 = vadd.f32 %v555, %v560
    %v564 = vadd.f32 %v556, %v561
    %v565 = vadd.f32 %v557, %v562
    %s566 = sld [smem:[#allocation7 + $0x2b]]
    %v567 = vstv %s566
    %v568 = vmul.f32 %v567, %v273
    %v569 = vmul.f32 %v567, %v274
    %v570 = vmul.f32 %v567, %v275
    %v571 = vadd.f32 %v563, %v568
    %v572 = vadd.f32 %v564, %v569
    %v573 = vadd.f32 %v565, %v570
    %s574 = sld [smem:[#allocation8 + $0x2]]
    %v575 = vstv %s574
    %v576 = vadd.f32 %v571, %v575
    %v577 = vadd.f32 %v572, %v575
    %v578 = vadd.f32 %v573, %v575
    %s579 = sld [smem:[#allocation7 + $0xc]]
    %v580 = vstv %s579
    %v581 = vmul.f32 %v580, %v188
    %v582 = vmul.f32 %v580, %v189
    %v583 = vmul.f32 %v580, %v190
    %v584 = vadd.f32 %v581, 0.0
    %v585 = vadd.f32 %v582, 0.0
    %v586 = vadd.f32 %v583, 0.0
    %s587 = sld [smem:[#allocation7 + $0x1c]]
    %v588 = vstv %s587
    %v589 = vmul.f32 %v588, %v163
    %v590 = vmul.f32 %v588, %v164
    %v591 = vmul.f32 %v588, %v165
    %v592 = vadd.f32 %v584, %v589
    %v593 = vadd.f32 %v585, %v590
    %v594 = vadd.f32 %v586, %v591
    %s595 = sld [smem:[#allocation7 + $0x2c]]
    %v596 = vstv %s595
    %v597 = vmul.f32 %v596, %v201
    %v598 = vmul.f32 %v596, %v202
    %v599 = vmul.f32 %v596, %v203
    %v600 = vadd.f32 %v592, %v597
    %v601 = vadd.f32 %v593, %v598
    %v602 = vadd.f32 %v594, %v599
    %s603 = sld [smem:[#allocation7 + $0xd]]
    %v604 = vstv %s603
    %v605 = vmul.f32 %v604, %v213
    %v606 = vmul.f32 %v604, %v214
    %v607 = vmul.f32 %v604, %v215
    %v608 = vadd.f32 %v600, %v605
    %v609 = vadd.f32 %v601, %v606
    %v610 = vadd.f32 %v602, %v607
    %s611 = sld [smem:[#allocation7 + $0x1d]]
    %v612 = vstv %s611
    %v613 = vmul.f32 %v612, %v167
    %v614 = vmul.f32 %v612, %v168
    %v615 = vmul.f32 %v612, %v169
    %v616 = vadd.f32 %v608, %v613
    %v617 = vadd.f32 %v609, %v614
    %v618 = vadd.f32 %v610, %v615
    %s619 = sld [smem:[#allocation7 + $0x2d]]
    %v620 = vstv %s619
    %v621 = vmul.f32 %v620, %v225
    %v622 = vmul.f32 %v620, %v226
    %v623 = vmul.f32 %v620, %v227
    %v624 = vadd.f32 %v616, %v621
    %v625 = vadd.f32 %v617, %v622
    %v626 = vadd.f32 %v618, %v623
    %s627 = sld [smem:[#allocation7 + $0xe]]
    %v628 = vstv %s627
    %v629 = vmul.f32 %v628, %v237
    %v630 = vmul.f32 %v628, %v238
    %v631 = vmul.f32 %v628, %v239
    %v632 = vadd.f32 %v624, %v629
    %v633 = vadd.f32 %v625, %v630
    %v634 = vadd.f32 %v626, %v631
    %s635 = sld [smem:[#allocation7 + $0x1e]]
    %v636 = vstv %s635
    %v637 = vmul.f32 %v636, %v171
    %v638 = vmul.f32 %v636, %v172
    %v639 = vmul.f32 %v636, %v173
    %v640 = vadd.f32 %v632, %v637
    %v641 = vadd.f32 %v633, %v638
    %v642 = vadd.f32 %v634, %v639
    %s643 = sld [smem:[#allocation7 + $0x2e]]
    %v644 = vstv %s643
    %v645 = vmul.f32 %v644, %v249
    %v646 = vmul.f32 %v644, %v250
    %v647 = vmul.f32 %v644, %v251
    %v648 = vadd.f32 %v640, %v645
    %v649 = vadd.f32 %v641, %v646
    %v650 = vadd.f32 %v642, %v647
    %s651 = sld [smem:[#allocation7 + $0xf]]
    %v652 = vstv %s651
    %v653 = vmul.f32 %v652, %v261
    %v654 = vmul.f32 %v652, %v262
    %v655 = vmul.f32 %v652, %v263
    %v656 = vadd.f32 %v648, %v653
    %v657 = vadd.f32 %v649, %v654
    %v658 = vadd.f32 %v650, %v655
    %s659 = sld [smem:[#allocation7 + $0x1f]]
    %v660 = vstv %s659
    %v661 = vmul.f32 %v660, %v175
    %v662 = vmul.f32 %v660, %v176
    %v663 = vmul.f32 %v660, %v177
    %v664 = vadd.f32 %v656, %v661
    %v665 = vadd.f32 %v657, %v662
    %v666 = vadd.f32 %v658, %v663
    %s667 = sld [smem:[#allocation7 + $0x2f]]
    %v668 = vstv %s667
    %v669 = vmul.f32 %v668, %v273
    %v670 = vmul.f32 %v668, %v274
    %v671 = vmul.f32 %v668, %v275
    %v672 = vadd.f32 %v664, %v669
    %v673 = vadd.f32 %v665, %v670
    %v674 = vadd.f32 %v666, %v671
    %s675 = sld [smem:[#allocation8 + $0x3]]
    %v676 = vstv %s675
    %v677 = vadd.f32 %v672, %v676
    %v678 = vadd.f32 %v673, %v676
    %v679 = vadd.f32 %v674, %v676
    %v680 = vxor.u32 %v374, 2147483648
    %v681 = vxor.u32 %v375, 2147483648
    %v682 = vxor.u32 %v376, 2147483648
    %v683 = vmul.f32 %v680, 1.442695
    %v684 = vpow.pop %v683
    %v685 = vmul.f32 %v681, 1.442695
    %v686 = vpow.pop %v685
    %v687 = vmul.f32 %v682, 1.442695
    %v688 = vpow.pop %v687
    %v689 = vadd.f32 %v684, 1.0
    %v690 = vadd.f32 %v686, 1.0
    %v691 = vadd.f32 %v688, 1.0
    %v692 = vrcp.pop %v689
    %v693 = vmul.f32 1.0, %v692
    %v694 = vrcp.pop %v690
    %v695 = vmul.f32 1.0, %v694
    %v696 = vrcp.pop %v691
    %v697 = vmul.f32 1.0, %v696
    %v698 = vxor.u32 %v475, 2147483648
    %v699 = vxor.u32 %v476, 2147483648
    %v700 = vxor.u32 %v477, 2147483648
    %v701 = vmul.f32 %v698, 1.442695
    %v702 = vpow.pop %v701
    %v703 = vmul.f32 %v699, 1.442695
    %v704 = vpow.pop %v703
    %v705 = vmul.f32 %v700, 1.442695
    %v706 = vpow.pop %v705
    %v707 = vadd.f32 %v702, 1.0
    %v708 = vadd.f32 %v704, 1.0
    %v709 = vadd.f32 %v706, 1.0
    %v710 = vrcp.pop %v707
    %v711 = vmul.f32 1.0, %v710
    %v712 = vrcp.pop %v708
    %v713 = vmul.f32 1.0, %v712
    %v714 = vrcp.pop %v709
    %v715 = vmul.f32 1.0, %v714
    %v716 = vxor.u32 %v576, 2147483648
    %v717 = vxor.u32 %v577, 2147483648
    %v718 = vxor.u32 %v578, 2147483648
    %v719 = vmul.f32 %v716, 1.442695
    %v720 = vpow.pop %v719
    %v721 = vmul.f32 %v717, 1.442695
    %v722 = vpow.pop %v721
    %v723 = vmul.f32 %v718, 1.442695
    %v724 = vpow.pop %v723
    %v725 = vadd.f32 %v720, 1.0
    %v726 = vadd.f32 %v722, 1.0
    %v727 = vadd.f32 %v724, 1.0
    %v728 = vrcp.pop %v725
    %v729 = vmul.f32 1.0, %v728
    %v730 = vrcp.pop %v726
    %v731 = vmul.f32 1.0, %v730
    %v732 = vrcp.pop %v727
    %v733 = vmul.f32 1.0, %v732
    %v734 = vxor.u32 %v677, 2147483648
    %v735 = vxor.u32 %v678, 2147483648
    %v736 = vxor.u32 %v679, 2147483648
    %v737 = vmul.f32 %v734, 1.442695
    %v738 = vpow.pop %v737
    %v739 = vmul.f32 %v735, 1.442695
    %v740 = vpow.pop %v739
    %v741 = vmul.f32 %v736, 1.442695
    %v742 = vpow.pop %v741
    %v743 = vadd.f32 %v738, 1.0
    %v744 = vadd.f32 %v740, 1.0
    %v745 = vadd.f32 %v742, 1.0
    %v746 = vrcp.pop %v743
    %v747 = vmul.f32 1.0, %v746
    %v748 = vrcp.pop %v744
    %v749 = vmul.f32 1.0, %v748
    %v750 = vrcp.pop %v745
    %v751 = vmul.f32 1.0, %v750
    %s752 = sld [smem:[#allocation10]]
    %v753 = vstv %s752
    %v754 = vmul.f32 %v753, %v188
    %v755 = vmul.f32 %v753, %v189
    %v756 = vmul.f32 %v753, %v190
    %v757 = vadd.f32 %v754, 0.0
    %v758 = vadd.f32 %v755, 0.0
    %v759 = vadd.f32 %v756, 0.0
    %s760 = sld [smem:[#allocation10 + $0x10]]
    %v761 = vstv %s760
    %v762 = vmul.f32 %v761, %v163
    %v763 = vmul.f32 %v761, %v164
    %v764 = vmul.f32 %v761, %v165
    %v765 = vadd.f32 %v757, %v762
    %v766 = vadd.f32 %v758, %v763
    %v767 = vadd.f32 %v759, %v764
    %s768 = sld [smem:[#allocation10 + $0x20]]
    %v769 = vstv %s768
    %v770 = vmul.f32 %v769, %v201
    %v771 = vmul.f32 %v769, %v202
    %v772 = vmul.f32 %v769, %v203
    %v773 = vadd.f32 %v765, %v770
    %v774 = vadd.f32 %v766, %v771
    %v775 = vadd.f32 %v767, %v772
    %s776 = sld [smem:[#allocation10 + $0x1]]
    %v777 = vstv %s776
    %v778 = vmul.f32 %v777, %v213
    %v779 = vmul.f32 %v777, %v214
    %v780 = vmul.f32 %v777, %v215
    %v781 = vadd.f32 %v773, %v778
    %v782 = vadd.f32 %v774, %v779
    %v783 = vadd.f32 %v775, %v780
    %s784 = sld [smem:[#allocation10 + $0x11]]
    %v785 = vstv %s784
    %v786 = vmul.f32 %v785, %v167
    %v787 = vmul.f32 %v785, %v168
    %v788 = vmul.f32 %v785, %v169
    %v789 = vadd.f32 %v781, %v786
    %v790 = vadd.f32 %v782, %v787
    %v791 = vadd.f32 %v783, %v788
    %s792 = sld [smem:[#allocation10 + $0x21]]
    %v793 = vstv %s792
    %v794 = vmul.f32 %v793, %v225
    %v795 = vmul.f32 %v793, %v226
    %v796 = vmul.f32 %v793, %v227
    %v797 = vadd.f32 %v789, %v794
    %v798 = vadd.f32 %v790, %v795
    %v799 = vadd.f32 %v791, %v796
    %s800 = sld [smem:[#allocation10 + $0x2]]
    %v801 = vstv %s800
    %v802 = vmul.f32 %v801, %v237
    %v803 = vmul.f32 %v801, %v238
    %v804 = vmul.f32 %v801, %v239
    %v805 = vadd.f32 %v797, %v802
    %v806 = vadd.f32 %v798, %v803
    %v807 = vadd.f32 %v799, %v804
    %s808 = sld [smem:[#allocation10 + $0x12]]
    %v809 = vstv %s808
    %v810 = vmul.f32 %v809, %v171
    %v811 = vmul.f32 %v809, %v172
    %v812 = vmul.f32 %v809, %v173
    %v813 = vadd.f32 %v805, %v810
    %v814 = vadd.f32 %v806, %v811
    %v815 = vadd.f32 %v807, %v812
    %s816 = sld [smem:[#allocation10 + $0x22]]
    %v817 = vstv %s816
    %v818 = vmul.f32 %v817, %v249
    %v819 = vmul.f32 %v817, %v250
    %v820 = vmul.f32 %v817, %v251
    %v821 = vadd.f32 %v813, %v818
    %v822 = vadd.f32 %v814, %v819
    %v823 = vadd.f32 %v815, %v820
    %s824 = sld [smem:[#allocation10 + $0x3]]
    %v825 = vstv %s824
    %v826 = vmul.f32 %v825, %v261
    %v827 = vmul.f32 %v825, %v262
    %v828 = vmul.f32 %v825, %v263
    %v829 = vadd.f32 %v821, %v826
    %v830 = vadd.f32 %v822, %v827
    %v831 = vadd.f32 %v823, %v828
    %s832 = sld [smem:[#allocation10 + $0x13]]
    %v833 = vstv %s832
    %v834 = vmul.f32 %v833, %v175
    %v835 = vmul.f32 %v833, %v176
    %v836 = vmul.f32 %v833, %v177
    %v837 = vadd.f32 %v829, %v834
    %v838 = vadd.f32 %v830, %v835
    %v839 = vadd.f32 %v831, %v836
    %s840 = sld [smem:[#allocation10 + $0x23]]
    %v841 = vstv %s840
    %v842 = vmul.f32 %v841, %v273
    %v843 = vmul.f32 %v841, %v274
    %v844 = vmul.f32 %v841, %v275
    %v845 = vadd.f32 %v837, %v842
    %v846 = vadd.f32 %v838, %v843
    %v847 = vadd.f32 %v839, %v844
    %s848 = sld [smem:[#allocation11]]
    %v849 = vstv %s848
    %v850 = vadd.f32 %v845, %v849
    %v851 = vadd.f32 %v846, %v849
    %v852 = vadd.f32 %v847, %v849
    %s853 = sld [smem:[#allocation10 + $0x4]]
    %v854 = vstv %s853
    %v855 = vmul.f32 %v854, %v188
    %v856 = vmul.f32 %v854, %v189
    %v857 = vmul.f32 %v854, %v190
    %v858 = vadd.f32 %v855, 0.0
    %v859 = vadd.f32 %v856, 0.0
    %v860 = vadd.f32 %v857, 0.0
    %s861 = sld [smem:[#allocation10 + $0x14]]
    %v862 = vstv %s861
    %v863 = vmul.f32 %v862, %v163
    %v864 = vmul.f32 %v862, %v164
    %v865 = vmul.f32 %v862, %v165
    %v866 = vadd.f32 %v858, %v863
    %v867 = vadd.f32 %v859, %v864
    %v868 = vadd.f32 %v860, %v865
    %s869 = sld [smem:[#allocation10 + $0x24]]
    %v870 = vstv %s869
    %v871 = vmul.f32 %v870, %v201
    %v872 = vmul.f32 %v870, %v202
    %v873 = vmul.f32 %v870, %v203
    %v874 = vadd.f32 %v866, %v871
    %v875 = vadd.f32 %v867, %v872
    %v876 = vadd.f32 %v868, %v873
    %s877 = sld [smem:[#allocation10 + $0x5]]
    %v878 = vstv %s877
    %v879 = vmul.f32 %v878, %v213
    %v880 = vmul.f32 %v878, %v214
    %v881 = vmul.f32 %v878, %v215
    %v882 = vadd.f32 %v874, %v879
    %v883 = vadd.f32 %v875, %v880
    %v884 = vadd.f32 %v876, %v881
    %s885 = sld [smem:[#allocation10 + $0x15]]
    %v886 = vstv %s885
    %v887 = vmul.f32 %v886, %v167
    %v888 = vmul.f32 %v886, %v168
    %v889 = vmul.f32 %v886, %v169
    %v890 = vadd.f32 %v882, %v887
    %v891 = vadd.f32 %v883, %v888
    %v892 = vadd.f32 %v884, %v889
    %s893 = sld [smem:[#allocation10 + $0x25]]
    %v894 = vstv %s893
    %v895 = vmul.f32 %v894, %v225
    %v896 = vmul.f32 %v894, %v226
    %v897 = vmul.f32 %v894, %v227
    %v898 = vadd.f32 %v890, %v895
    %v899 = vadd.f32 %v891, %v896
    %v900 = vadd.f32 %v892, %v897
    %s901 = sld [smem:[#allocation10 + $0x6]]
    %v902 = vstv %s901
    %v903 = vmul.f32 %v902, %v237
    %v904 = vmul.f32 %v902, %v238
    %v905 = vmul.f32 %v902, %v239
    %v906 = vadd.f32 %v898, %v903
    %v907 = vadd.f32 %v899, %v904
    %v908 = vadd.f32 %v900, %v905
    %s909 = sld [smem:[#allocation10 + $0x16]]
    %v910 = vstv %s909
    %v911 = vmul.f32 %v910, %v171
    %v912 = vmul.f32 %v910, %v172
    %v913 = vmul.f32 %v910, %v173
    %v914 = vadd.f32 %v906, %v911
    %v915 = vadd.f32 %v907, %v912
    %v916 = vadd.f32 %v908, %v913
    %s917 = sld [smem:[#allocation10 + $0x26]]
    %v918 = vstv %s917
    %v919 = vmul.f32 %v918, %v249
    %v920 = vmul.f32 %v918, %v250
    %v921 = vmul.f32 %v918, %v251
    %v922 = vadd.f32 %v914, %v919
    %v923 = vadd.f32 %v915, %v920
    %v924 = vadd.f32 %v916, %v921
    %s925 = sld [smem:[#allocation10 + $0x7]]
    %v926 = vstv %s925
    %v927 = vmul.f32 %v926, %v261
    %v928 = vmul.f32 %v926, %v262
    %v929 = vmul.f32 %v926, %v263
    %v930 = vadd.f32 %v922, %v927
    %v931 = vadd.f32 %v923, %v928
    %v932 = vadd.f32 %v924, %v929
    %s933 = sld [smem:[#allocation10 + $0x17]]
    %v934 = vstv %s933
    %v935 = vmul.f32 %v934, %v175
    %v936 = vmul.f32 %v934, %v176
    %v937 = vmul.f32 %v934, %v177
    %v938 = vadd.f32 %v930, %v935
    %v939 = vadd.f32 %v931, %v936
    %v940 = vadd.f32 %v932, %v937
    %s941 = sld [smem:[#allocation10 + $0x27]]
    %v942 = vstv %s941
    %v943 = vmul.f32 %v942, %v273
    %v944 = vmul.f32 %v942, %v274
    %v945 = vmul.f32 %v942, %v275
    %v946 = vadd.f32 %v938, %v943
    %v947 = vadd.f32 %v939, %v944
    %v948 = vadd.f32 %v940, %v945
    %s949 = sld [smem:[#allocation11 + $0x1]]
    %v950 = vstv %s949
    %v951 = vadd.f32 %v946, %v950
    %v952 = vadd.f32 %v947, %v950
    %v953 = vadd.f32 %v948, %v950
    %s954 = sld [smem:[#allocation10 + $0x8]]
    %v955 = vstv %s954
    %v956 = vmul.f32 %v955, %v188
    %v957 = vmul.f32 %v955, %v189
    %v958 = vmul.f32 %v955, %v190
    %v959 = vadd.f32 %v956, 0.0
    %v960 = vadd.f32 %v957, 0.0
    %v961 = vadd.f32 %v958, 0.0
    %s962 = sld [smem:[#allocation10 + $0x18]]
    %v963 = vstv %s962
    %v964 = vmul.f32 %v963, %v163
    %v965 = vmul.f32 %v963, %v164
    %v966 = vmul.f32 %v963, %v165
    %v967 = vadd.f32 %v959, %v964
    %v968 = vadd.f32 %v960, %v965
    %v969 = vadd.f32 %v961, %v966
    %s970 = sld [smem:[#allocation10 + $0x28]]
    %v971 = vstv %s970
    %v972 = vmul.f32 %v971, %v201
    %v973 = vmul.f32 %v971, %v202
    %v974 = vmul.f32 %v971, %v203
    %v975 = vadd.f32 %v967, %v972
    %v976 = vadd.f32 %v968, %v973
    %v977 = vadd.f32 %v969, %v974
    %s978 = sld [smem:[#allocation10 + $0x9]]
    %v979 = vstv %s978
    %v980 = vmul.f32 %v979, %v213
    %v981 = vmul.f32 %v979, %v214
    %v982 = vmul.f32 %v979, %v215
    %v983 = vadd.f32 %v975, %v980
    %v984 = vadd.f32 %v976, %v981
    %v985 = vadd.f32 %v977, %v982
    %s986 = sld [smem:[#allocation10 + $0x19]]
    %v987 = vstv %s986
    %v988 = vmul.f32 %v987, %v167
    %v989 = vmul.f32 %v987, %v168
    %v990 = vmul.f32 %v987, %v169
    %v991 = vadd.f32 %v983, %v988
    %v992 = vadd.f32 %v984, %v989
    %v993 = vadd.f32 %v985, %v990
    %s994 = sld [smem:[#allocation10 + $0x29]]
    %v995 = vstv %s994
    %v996 = vmul.f32 %v995, %v225
    %v997 = vmul.f32 %v995, %v226
    %v998 = vmul.f32 %v995, %v227
    %v999 = vadd.f32 %v991, %v996
    %v1000 = vadd.f32 %v992, %v997
    %v1001 = vadd.f32 %v993, %v998
    %s1002 = sld [smem:[#allocation10 + $0xa]]
    %v1003 = vstv %s1002
    %v1004 = vmul.f32 %v1003, %v237
    %v1005 = vmul.f32 %v1003, %v238
    %v1006 = vmul.f32 %v1003, %v239
    %v1007 = vadd.f32 %v999, %v1004
    %v1008 = vadd.f32 %v1000, %v1005
    %v1009 = vadd.f32 %v1001, %v1006
    %s1010 = sld [smem:[#allocation10 + $0x1a]]
    %v1011 = vstv %s1010
    %v1012 = vmul.f32 %v1011, %v171
    %v1013 = vmul.f32 %v1011, %v172
    %v1014 = vmul.f32 %v1011, %v173
    %v1015 = vadd.f32 %v1007, %v1012
    %v1016 = vadd.f32 %v1008, %v1013
    %v1017 = vadd.f32 %v1009, %v1014
    %s1018 = sld [smem:[#allocation10 + $0x2a]]
    %v1019 = vstv %s1018
    %v1020 = vmul.f32 %v1019, %v249
    %v1021 = vmul.f32 %v1019, %v250
    %v1022 = vmul.f32 %v1019, %v251
    %v1023 = vadd.f32 %v1015, %v1020
    %v1024 = vadd.f32 %v1016, %v1021
    %v1025 = vadd.f32 %v1017, %v1022
    %s1026 = sld [smem:[#allocation10 + $0xb]]
    %v1027 = vstv %s1026
    %v1028 = vmul.f32 %v1027, %v261
    %v1029 = vmul.f32 %v1027, %v262
    %v1030 = vmul.f32 %v1027, %v263
    %v1031 = vadd.f32 %v1023, %v1028
    %v1032 = vadd.f32 %v1024, %v1029
    %v1033 = vadd.f32 %v1025, %v1030
    %s1034 = sld [smem:[#allocation10 + $0x1b]]
    %v1035 = vstv %s1034
    %v1036 = vmul.f32 %v1035, %v175
    %v1037 = vmul.f32 %v1035, %v176
    %v1038 = vmul.f32 %v1035, %v177
    %v1039 = vadd.f32 %v1031, %v1036
    %v1040 = vadd.f32 %v1032, %v1037
    %v1041 = vadd.f32 %v1033, %v1038
    %s1042 = sld [smem:[#allocation10 + $0x2b]]
    %v1043 = vstv %s1042
    %v1044 = vmul.f32 %v1043, %v273
    %v1045 = vmul.f32 %v1043, %v274
    %v1046 = vmul.f32 %v1043, %v275
    %v1047 = vadd.f32 %v1039, %v1044
    %v1048 = vadd.f32 %v1040, %v1045
    %v1049 = vadd.f32 %v1041, %v1046
    %s1050 = sld [smem:[#allocation11 + $0x2]]
    %v1051 = vstv %s1050
    %v1052 = vadd.f32 %v1047, %v1051
    %v1053 = vadd.f32 %v1048, %v1051
    %v1054 = vadd.f32 %v1049, %v1051
    %s1055 = sld [smem:[#allocation10 + $0xc]]
    %v1056 = vstv %s1055
    %v1057 = vmul.f32 %v1056, %v188
    %v1058 = vmul.f32 %v1056, %v189
    %v1059 = vmul.f32 %v1056, %v190
    %v1060 = vadd.f32 %v1057, 0.0
    %v1061 = vadd.f32 %v1058, 0.0
    %v1062 = vadd.f32 %v1059, 0.0
    %s1063 = sld [smem:[#allocation10 + $0x1c]]
    %v1064 = vstv %s1063
    %v1065 = vmul.f32 %v1064, %v163
    %v1066 = vmul.f32 %v1064, %v164
    %v1067 = vmul.f32 %v1064, %v165
    %v1068 = vadd.f32 %v1060, %v1065
    %v1069 = vadd.f32 %v1061, %v1066
    %v1070 = vadd.f32 %v1062, %v1067
    %s1071 = sld [smem:[#allocation10 + $0x2c]]
    %v1072 = vstv %s1071
    %v1073 = vmul.f32 %v1072, %v201
    %v1074 = vmul.f32 %v1072, %v202
    %v1075 = vmul.f32 %v1072, %v203
    %v1076 = vadd.f32 %v1068, %v1073
    %v1077 = vadd.f32 %v1069, %v1074
    %v1078 = vadd.f32 %v1070, %v1075
    %s1079 = sld [smem:[#allocation10 + $0xd]]
    %v1080 = vstv %s1079
    %v1081 = vmul.f32 %v1080, %v213
    %v1082 = vmul.f32 %v1080, %v214
    %v1083 = vmul.f32 %v1080, %v215
    %v1084 = vadd.f32 %v1076, %v1081
    %v1085 = vadd.f32 %v1077, %v1082
    %v1086 = vadd.f32 %v1078, %v1083
    %s1087 = sld [smem:[#allocation10 + $0x1d]]
    %v1088 = vstv %s1087
    %v1089 = vmul.f32 %v1088, %v167
    %v1090 = vmul.f32 %v1088, %v168
    %v1091 = vmul.f32 %v1088, %v169
    %v1092 = vadd.f32 %v1084, %v1089
    %v1093 = vadd.f32 %v1085, %v1090
    %v1094 = vadd.f32 %v1086, %v1091
    %s1095 = sld [smem:[#allocation10 + $0x2d]]
    %v1096 = vstv %s1095
    %v1097 = vmul.f32 %v1096, %v225
    %v1098 = vmul.f32 %v1096, %v226
    %v1099 = vmul.f32 %v1096, %v227
    %v1100 = vadd.f32 %v1092, %v1097
    %v1101 = vadd.f32 %v1093, %v1098
    %v1102 = vadd.f32 %v1094, %v1099
    %s1103 = sld [smem:[#allocation10 + $0xe]]
    %v1104 = vstv %s1103
    %v1105 = vmul.f32 %v1104, %v237
    %v1106 = vmul.f32 %v1104, %v238
    %v1107 = vmul.f32 %v1104, %v239
    %v1108 = vadd.f32 %v1100, %v1105
    %v1109 = vadd.f32 %v1101, %v1106
    %v1110 = vadd.f32 %v1102, %v1107
    %s1111 = sld [smem:[#allocation10 + $0x1e]]
    %v1112 = vstv %s1111
    %v1113 = vmul.f32 %v1112, %v171
    %v1114 = vmul.f32 %v1112, %v172
    %v1115 = vmul.f32 %v1112, %v173
    %v1116 = vadd.f32 %v1108, %v1113
    %v1117 = vadd.f32 %v1109, %v1114
    %v1118 = vadd.f32 %v1110, %v1115
    %s1119 = sld [smem:[#allocation10 + $0x2e]]
    %v1120 = vstv %s1119
    %v1121 = vmul.f32 %v1120, %v249
    %v1122 = vmul.f32 %v1120, %v250
    %v1123 = vmul.f32 %v1120, %v251
    %v1124 = vadd.f32 %v1116, %v1121
    %v1125 = vadd.f32 %v1117, %v1122
    %v1126 = vadd.f32 %v1118, %v1123
    %s1127 = sld [smem:[#allocation10 + $0xf]]
    %v1128 = vstv %s1127
    %v1129 = vmul.f32 %v1128, %v261
    %v1130 = vmul.f32 %v1128, %v262
    %v1131 = vmul.f32 %v1128, %v263
    %v1132 = vadd.f32 %v1124, %v1129
    %v1133 = vadd.f32 %v1125, %v1130
    %v1134 = vadd.f32 %v1126, %v1131
    %s1135 = sld [smem:[#allocation10 + $0x1f]]
    %v1136 = vstv %s1135
    %v1137 = vmul.f32 %v1136, %v175
    %v1138 = vmul.f32 %v1136, %v176
    %v1139 = vmul.f32 %v1136, %v177
    %v1140 = vadd.f32 %v1132, %v1137
    %v1141 = vadd.f32 %v1133, %v1138
    %v1142 = vadd.f32 %v1134, %v1139
    %s1143 = sld [smem:[#allocation10 + $0x2f]]
    %v1144 = vstv %s1143
    %v1145 = vmul.f32 %v1144, %v273
    %v1146 = vmul.f32 %v1144, %v274
    %v1147 = vmul.f32 %v1144, %v275
    %v1148 = vadd.f32 %v1140, %v1145
    %v1149 = vadd.f32 %v1141, %v1146
    %v1150 = vadd.f32 %v1142, %v1147
    %s1151 = sld [smem:[#allocation11 + $0x3]]
    %v1152 = vstv %s1151
    %v1153 = vadd.f32 %v1148, %v1152
    %v1154 = vadd.f32 %v1149, %v1152
    %v1155 = vadd.f32 %v1150, %v1152
    %v1156 = vxor.u32 %v850, 2147483648
    %v1157 = vxor.u32 %v851, 2147483648
    %v1158 = vxor.u32 %v852, 2147483648
    %v1159 = vmul.f32 %v1156, 1.442695
    %v1160 = vpow.pop %v1159
    %v1161 = vmul.f32 %v1157, 1.442695
    %v1162 = vpow.pop %v1161
    %v1163 = vmul.f32 %v1158, 1.442695
    %v1164 = vpow.pop %v1163
    %v1165 = vadd.f32 %v1160, 1.0
    %v1166 = vadd.f32 %v1162, 1.0
    %v1167 = vadd.f32 %v1164, 1.0
    %v1168 = vrcp.pop %v1165
    %v1169 = vmul.f32 1.0, %v1168
    %v1170 = vrcp.pop %v1166
    %v1171 = vmul.f32 1.0, %v1170
    %v1172 = vrcp.pop %v1167
    %v1173 = vmul.f32 1.0, %v1172
    %v1174 = vxor.u32 %v951, 2147483648
    %v1175 = vxor.u32 %v952, 2147483648
    %v1176 = vxor.u32 %v953, 2147483648
    %v1177 = vmul.f32 %v1174, 1.442695
    %v1178 = vpow.pop %v1177
    %v1179 = vmul.f32 %v1175, 1.442695
    %v1180 = vpow.pop %v1179
    %v1181 = vmul.f32 %v1176, 1.442695
    %v1182 = vpow.pop %v1181
    %v1183 = vadd.f32 %v1178, 1.0
    %v1184 = vadd.f32 %v1180, 1.0
    %v1185 = vadd.f32 %v1182, 1.0
    %v1186 = vrcp.pop %v1183
    %v1187 = vmul.f32 1.0, %v1186
    %v1188 = vrcp.pop %v1184
    %v1189 = vmul.f32 1.0, %v1188
    %v1190 = vrcp.pop %v1185
    %v1191 = vmul.f32 1.0, %v1190
    %v1192 = vxor.u32 %v1052, 2147483648
    %v1193 = vxor.u32 %v1053, 2147483648
    %v1194 = vxor.u32 %v1054, 2147483648
    %v1195 = vmul.f32 %v1192, 1.442695
    %v1196 = vpow.pop %v1195
    %v1197 = vmul.f32 %v1193, 1.442695
    %v1198 = vpow.pop %v1197
    %v1199 = vmul.f32 %v1194, 1.442695
    %v1200 = vpow.pop %v1199
    %v1201 = vadd.f32 %v1196, 1.0
    %v1202 = vadd.f32 %v1198, 1.0
    %v1203 = vadd.f32 %v1200, 1.0
    %v1204 = vrcp.pop %v1201
    %v1205 = vmul.f32 1.0, %v1204
    %v1206 = vrcp.pop %v1202
    %v1207 = vmul.f32 1.0, %v1206
    %v1208 = vrcp.pop %v1203
    %v1209 = vmul.f32 1.0, %v1208
    %v1210 = vxor.u32 %v1153, 2147483648
    %v1211 = vxor.u32 %v1154, 2147483648
    %v1212 = vxor.u32 %v1155, 2147483648
    %v1213 = vmul.f32 %v1210, 1.442695
    %v1214 = vpow.pop %v1213
    %v1215 = vmul.f32 %v1211, 1.442695
    %v1216 = vpow.pop %v1215
    %v1217 = vmul.f32 %v1212, 1.442695
    %v1218 = vpow.pop %v1217
    %v1219 = vadd.f32 %v1214, 1.0
    %v1220 = vadd.f32 %v1216, 1.0
    %v1221 = vadd.f32 %v1218, 1.0
    %v1222 = vrcp.pop %v1219
    %v1223 = vmul.f32 1.0, %v1222
    %v1224 = vrcp.pop %v1220
    %v1225 = vmul.f32 1.0, %v1224
    %v1226 = vrcp.pop %v1221
    %v1227 = vmul.f32 1.0, %v1226
    %v1228 = vmul.f32 %v163, %v693
    %v1229 = vmul.f32 %v164, %v695
    %v1230 = vmul.f32 %v165, %v697
    %1231 = vrot.lane.b32.xlu0 %v1228, 1
    %v1232 = vpop.permute.xlu0 %1231
    %1233 = vrot.lane.b32.xlu0 %v1229, 1
    %v1234 = vpop.permute.xlu0 %1233
    %1235 = vrot.lane.b32.xlu0 %v1230, 1
    %v1236 = vpop.permute.xlu0 %1235
    %v1237 = vsel %vm184, %v1234, %v1236
    %v1238 = vsel %vm184, %v1232, %v1234
    %v1239 = vsel %vm184, %v1236, %v1232
    %v1240 = vsel %vm157, %v1239, 0.0
    %v1241 = vsel %vm158, %v1238, 0.0
    %v1242 = vsel %vm159, %v1237, 0.0
    %1243 = vrot.lane.b32.xlu0 %v1228, 127
    %v1244 = vpop.permute.xlu0 %1243
    %1245 = vrot.lane.b32.xlu0 %v1229, 127
    %v1246 = vpop.permute.xlu0 %1245
    %1247 = vrot.lane.b32.xlu0 %v1230, 127
    %v1248 = vpop.permute.xlu0 %1247
    %v1249 = vsel %vm197, %v1246, %v1248
    %v1250 = vsel %vm197, %v1244, %v1246
    %v1251 = vsel %vm197, %v1248, %v1244
    %v1252 = vsel %vm160, %v1250, 0.0
    %v1253 = vsel %vm161, %v1249, 0.0
    %v1254 = vsel %vm162, %v1251, 0.0
    %v1255 = vmul.f32 %v167, %v711
    %v1256 = vmul.f32 %v168, %v713
    %v1257 = vmul.f32 %v169, %v715
    %1258 = vrot.lane.b32.xlu0 %v1255, 1
    %v1259 = vpop.permute.xlu0 %1258
    %1260 = vrot.lane.b32.xlu0 %v1256, 1
    %v1261 = vpop.permute.xlu0 %1260
    %1262 = vrot.lane.b32.xlu0 %v1257, 1
    %v1263 = vpop.permute.xlu0 %1262
    %v1264 = vsel %vm184, %v1261, %v1263
    %v1265 = vsel %vm184, %v1259, %v1261
    %v1266 = vsel %vm184, %v1263, %v1259
    %v1267 = vsel %vm157, %v1266, 0.0
    %v1268 = vsel %vm158, %v1265, 0.0
    %v1269 = vsel %vm159, %v1264, 0.0
    %1270 = vrot.lane.b32.xlu0 %v1255, 127
    %v1271 = vpop.permute.xlu0 %1270
    %1272 = vrot.lane.b32.xlu0 %v1256, 127
    %v1273 = vpop.permute.xlu0 %1272
    %1274 = vrot.lane.b32.xlu0 %v1257, 127
    %v1275 = vpop.permute.xlu0 %1274
    %v1276 = vsel %vm197, %v1273, %v1275
    %v1277 = vsel %vm197, %v1271, %v1273
    %v1278 = vsel %vm197, %v1275, %v1271
    %v1279 = vsel %vm160, %v1277, 0.0
    %v1280 = vsel %vm161, %v1276, 0.0
    %v1281 = vsel %vm162, %v1278, 0.0
    %v1282 = vmul.f32 %v171, %v729
    %v1283 = vmul.f32 %v172, %v731
    %v1284 = vmul.f32 %v173, %v733
    %1285 = vrot.lane.b32.xlu0 %v1282, 1
    %v1286 = vpop.permute.xlu0 %1285
    %1287 = vrot.lane.b32.xlu0 %v1283, 1
    %v1288 = vpop.permute.xlu0 %1287
    %1289 = vrot.lane.b32.xlu0 %v1284, 1
    %v1290 = vpop.permute.xlu0 %1289
    %v1291 = vsel %vm184, %v1288, %v1290
    %v1292 = vsel %vm184, %v1286, %v1288
    %v1293 = vsel %vm184, %v1290, %v1286
    %v1294 = vsel %vm157, %v1293, 0.0
    %v1295 = vsel %vm158, %v1292, 0.0
    %v1296 = vsel %vm159, %v1291, 0.0
    %1297 = vrot.lane.b32.xlu0 %v1282, 127
    %v1298 = vpop.permute.xlu0 %1297
    %1299 = vrot.lane.b32.xlu0 %v1283, 127
    %v1300 = vpop.permute.xlu0 %1299
    %1301 = vrot.lane.b32.xlu0 %v1284, 127
    %v1302 = vpop.permute.xlu0 %1301
    %v1303 = vsel %vm197, %v1300, %v1302
    %v1304 = vsel %vm197, %v1298, %v1300
    %v1305 = vsel %vm197, %v1302, %v1298
    %v1306 = vsel %vm160, %v1304, 0.0
    %v1307 = vsel %vm161, %v1303, 0.0
    %v1308 = vsel %vm162, %v1305, 0.0
    %v1309 = vmul.f32 %v175, %v747
    %v1310 = vmul.f32 %v176, %v749
    %v1311 = vmul.f32 %v177, %v751
    %1312 = vrot.lane.b32.xlu0 %v1309, 1
    %v1313 = vpop.permute.xlu0 %1312
    %1314 = vrot.lane.b32.xlu0 %v1310, 1
    %v1315 = vpop.permute.xlu0 %1314
    %1316 = vrot.lane.b32.xlu0 %v1311, 1
    %v1317 = vpop.permute.xlu0 %1316
    %v1318 = vsel %vm184, %v1315, %v1317
    %v1319 = vsel %vm184, %v1313, %v1315
    %v1320 = vsel %vm184, %v1317, %v1313
    %v1321 = vsel %vm157, %v1320, 0.0
    %v1322 = vsel %vm158, %v1319, 0.0
    %v1323 = vsel %vm159, %v1318, 0.0
    %1324 = vrot.lane.b32.xlu0 %v1309, 127
    %v1325 = vpop.permute.xlu0 %1324
    %1326 = vrot.lane.b32.xlu0 %v1310, 127
    %v1327 = vpop.permute.xlu0 %1326
    %1328 = vrot.lane.b32.xlu0 %v1311, 127
    %v1329 = vpop.permute.xlu0 %1328
    %v1330 = vsel %vm197, %v1327, %v1329
    %v1331 = vsel %vm197, %v1325, %v1327
    %v1332 = vsel %vm197, %v1329, %v1325
    %v1333 = vsel %vm160, %v1331, 0.0
    %v1334 = vsel %vm161, %v1330, 0.0
    %v1335 = vsel %vm162, %v1332, 0.0
    %s1336 = sld [smem:[#allocation13]]
    %v1337 = vstv %s1336
    %v1338 = vmul.f32 %v1337, %v1240
    %v1339 = vmul.f32 %v1337, %v1241
    %v1340 = vmul.f32 %v1337, %v1242
    %v1341 = vadd.f32 %v1338, 0.0
    %v1342 = vadd.f32 %v1339, 0.0
    %v1343 = vadd.f32 %v1340, 0.0
    %s1344 = sld [smem:[#allocation13 + $0x10]]
    %v1345 = vstv %s1344
    %v1346 = vmul.f32 %v1345, %v1228
    %v1347 = vmul.f32 %v1345, %v1229
    %v1348 = vmul.f32 %v1345, %v1230
    %v1349 = vadd.f32 %v1341, %v1346
    %v1350 = vadd.f32 %v1342, %v1347
    %v1351 = vadd.f32 %v1343, %v1348
    %s1352 = sld [smem:[#allocation13 + $0x20]]
    %v1353 = vstv %s1352
    %v1354 = vmul.f32 %v1353, %v1252
    %v1355 = vmul.f32 %v1353, %v1253
    %v1356 = vmul.f32 %v1353, %v1254
    %v1357 = vadd.f32 %v1349, %v1354
    %v1358 = vadd.f32 %v1350, %v1355
    %v1359 = vadd.f32 %v1351, %v1356
    %s1360 = sld [smem:[#allocation13 + $0x1]]
    %v1361 = vstv %s1360
    %v1362 = vmul.f32 %v1361, %v1267
    %v1363 = vmul.f32 %v1361, %v1268
    %v1364 = vmul.f32 %v1361, %v1269
    %v1365 = vadd.f32 %v1357, %v1362
    %v1366 = vadd.f32 %v1358, %v1363
    %v1367 = vadd.f32 %v1359, %v1364
    %s1368 = sld [smem:[#allocation13 + $0x11]]
    %v1369 = vstv %s1368
    %v1370 = vmul.f32 %v1369, %v1255
    %v1371 = vmul.f32 %v1369, %v1256
    %v1372 = vmul.f32 %v1369, %v1257
    %v1373 = vadd.f32 %v1365, %v1370
    %v1374 = vadd.f32 %v1366, %v1371
    %v1375 = vadd.f32 %v1367, %v1372
    %s1376 = sld [smem:[#allocation13 + $0x21]]
    %v1377 = vstv %s1376
    %v1378 = vmul.f32 %v1377, %v1279
    %v1379 = vmul.f32 %v1377, %v1280
    %v1380 = vmul.f32 %v1377, %v1281
    %v1381 = vadd.f32 %v1373, %v1378
    %v1382 = vadd.f32 %v1374, %v1379
    %v1383 = vadd.f32 %v1375, %v1380
    %s1384 = sld [smem:[#allocation13 + $0x2]]
    %v1385 = vstv %s1384
    %v1386 = vmul.f32 %v1385, %v1294
    %v1387 = vmul.f32 %v1385, %v1295
    %v1388 = vmul.f32 %v1385, %v1296
    %v1389 = vadd.f32 %v1381, %v1386
    %v1390 = vadd.f32 %v1382, %v1387
    %v1391 = vadd.f32 %v1383, %v1388
    %s1392 = sld [smem:[#allocation13 + $0x12]]
    %v1393 = vstv %s1392
    %v1394 = vmul.f32 %v1393, %v1282
    %v1395 = vmul.f32 %v1393, %v1283
    %v1396 = vmul.f32 %v1393, %v1284
    %v1397 = vadd.f32 %v1389, %v1394
    %v1398 = vadd.f32 %v1390, %v1395
    %v1399 = vadd.f32 %v1391, %v1396
    %s1400 = sld [smem:[#allocation13 + $0x22]]
    %v1401 = vstv %s1400
    %v1402 = vmul.f32 %v1401, %v1306
    %v1403 = vmul.f32 %v1401, %v1307
    %v1404 = vmul.f32 %v1401, %v1308
    %v1405 = vadd.f32 %v1397, %v1402
    %v1406 = vadd.f32 %v1398, %v1403
    %v1407 = vadd.f32 %v1399, %v1404
    %s1408 = sld [smem:[#allocation13 + $0x3]]
    %v1409 = vstv %s1408
    %v1410 = vmul.f32 %v1409, %v1321
    %v1411 = vmul.f32 %v1409, %v1322
    %v1412 = vmul.f32 %v1409, %v1323
    %v1413 = vadd.f32 %v1405, %v1410
    %v1414 = vadd.f32 %v1406, %v1411
    %v1415 = vadd.f32 %v1407, %v1412
    %s1416 = sld [smem:[#allocation13 + $0x13]]
    %v1417 = vstv %s1416
    %v1418 = vmul.f32 %v1417, %v1309
    %v1419 = vmul.f32 %v1417, %v1310
    %v1420 = vmul.f32 %v1417, %v1311
    %v1421 = vadd.f32 %v1413, %v1418
    %v1422 = vadd.f32 %v1414, %v1419
    %v1423 = vadd.f32 %v1415, %v1420
    %s1424 = sld [smem:[#allocation13 + $0x23]]
    %v1425 = vstv %s1424
    %v1426 = vmul.f32 %v1425, %v1333
    %v1427 = vmul.f32 %v1425, %v1334
    %v1428 = vmul.f32 %v1425, %v1335
    %v1429 = vadd.f32 %v1421, %v1426
    %v1430 = vadd.f32 %v1422, %v1427
    %v1431 = vadd.f32 %v1423, %v1428
    %s1432 = sld [smem:[#allocation14]]
    %v1433 = vstv %s1432
    %v1434 = vadd.f32 %v1429, %v1433
    %v1435 = vadd.f32 %v1430, %v1433
    %v1436 = vadd.f32 %v1431, %v1433
    %s1437 = sld [smem:[#allocation13 + $0x4]]
    %v1438 = vstv %s1437
    %v1439 = vmul.f32 %v1438, %v1240
    %v1440 = vmul.f32 %v1438, %v1241
    %v1441 = vmul.f32 %v1438, %v1242
    %v1442 = vadd.f32 %v1439, 0.0
    %v1443 = vadd.f32 %v1440, 0.0
    %v1444 = vadd.f32 %v1441, 0.0
    %s1445 = sld [smem:[#allocation13 + $0x14]]
    %v1446 = vstv %s1445
    %v1447 = vmul.f32 %v1446, %v1228
    %v1448 = vmul.f32 %v1446, %v1229
    %v1449 = vmul.f32 %v1446, %v1230
    %v1450 = vadd.f32 %v1442, %v1447
    %v1451 = vadd.f32 %v1443, %v1448
    %v1452 = vadd.f32 %v1444, %v1449
    %s1453 = sld [smem:[#allocation13 + $0x24]]
    %v1454 = vstv %s1453
    %v1455 = vmul.f32 %v1454, %v1252
    %v1456 = vmul.f32 %v1454, %v1253
    %v1457 = vmul.f32 %v1454, %v1254
    %v1458 = vadd.f32 %v1450, %v1455
    %v1459 = vadd.f32 %v1451, %v1456
    %v1460 = vadd.f32 %v1452, %v1457
    %s1461 = sld [smem:[#allocation13 + $0x5]]
    %v1462 = vstv %s1461
    %v1463 = vmul.f32 %v1462, %v1267
    %v1464 = vmul.f32 %v1462, %v1268
    %v1465 = vmul.f32 %v1462, %v1269
    %v1466 = vadd.f32 %v1458, %v1463
    %v1467 = vadd.f32 %v1459, %v1464
    %v1468 = vadd.f32 %v1460, %v1465
    %s1469 = sld [smem:[#allocation13 + $0x15]]
    %v1470 = vstv %s1469
    %v1471 = vmul.f32 %v1470, %v1255
    %v1472 = vmul.f32 %v1470, %v1256
    %v1473 = vmul.f32 %v1470, %v1257
    %v1474 = vadd.f32 %v1466, %v1471
    %v1475 = vadd.f32 %v1467, %v1472
    %v1476 = vadd.f32 %v1468, %v1473
    %s1477 = sld [smem:[#allocation13 + $0x25]]
    %v1478 = vstv %s1477
    %v1479 = vmul.f32 %v1478, %v1279
    %v1480 = vmul.f32 %v1478, %v1280
    %v1481 = vmul.f32 %v1478, %v1281
    %v1482 = vadd.f32 %v1474, %v1479
    %v1483 = vadd.f32 %v1475, %v1480
    %v1484 = vadd.f32 %v1476, %v1481
    %s1485 = sld [smem:[#allocation13 + $0x6]]
    %v1486 = vstv %s1485
    %v1487 = vmul.f32 %v1486, %v1294
    %v1488 = vmul.f32 %v1486, %v1295
    %v1489 = vmul.f32 %v1486, %v1296
    %v1490 = vadd.f32 %v1482, %v1487
    %v1491 = vadd.f32 %v1483, %v1488
    %v1492 = vadd.f32 %v1484, %v1489
    %s1493 = sld [smem:[#allocation13 + $0x16]]
    %v1494 = vstv %s1493
    %v1495 = vmul.f32 %v1494, %v1282
    %v1496 = vmul.f32 %v1494, %v1283
    %v1497 = vmul.f32 %v1494, %v1284
    %v1498 = vadd.f32 %v1490, %v1495
    %v1499 = vadd.f32 %v1491, %v1496
    %v1500 = vadd.f32 %v1492, %v1497
    %s1501 = sld [smem:[#allocation13 + $0x26]]
    %v1502 = vstv %s1501
    %v1503 = vmul.f32 %v1502, %v1306
    %v1504 = vmul.f32 %v1502, %v1307
    %v1505 = vmul.f32 %v1502, %v1308
    %v1506 = vadd.f32 %v1498, %v1503
    %v1507 = vadd.f32 %v1499, %v1504
    %v1508 = vadd.f32 %v1500, %v1505
    %s1509 = sld [smem:[#allocation13 + $0x7]]
    %v1510 = vstv %s1509
    %v1511 = vmul.f32 %v1510, %v1321
    %v1512 = vmul.f32 %v1510, %v1322
    %v1513 = vmul.f32 %v1510, %v1323
    %v1514 = vadd.f32 %v1506, %v1511
    %v1515 = vadd.f32 %v1507, %v1512
    %v1516 = vadd.f32 %v1508, %v1513
    %s1517 = sld [smem:[#allocation13 + $0x17]]
    %v1518 = vstv %s1517
    %v1519 = vmul.f32 %v1518, %v1309
    %v1520 = vmul.f32 %v1518, %v1310
    %v1521 = vmul.f32 %v1518, %v1311
    %v1522 = vadd.f32 %v1514, %v1519
    %v1523 = vadd.f32 %v1515, %v1520
    %v1524 = vadd.f32 %v1516, %v1521
    %s1525 = sld [smem:[#allocation13 + $0x27]]
    %v1526 = vstv %s1525
    %v1527 = vmul.f32 %v1526, %v1333
    %v1528 = vmul.f32 %v1526, %v1334
    %v1529 = vmul.f32 %v1526, %v1335
    %v1530 = vadd.f32 %v1522, %v1527
    %v1531 = vadd.f32 %v1523, %v1528
    %v1532 = vadd.f32 %v1524, %v1529
    %s1533 = sld [smem:[#allocation14 + $0x1]]
    %v1534 = vstv %s1533
    %v1535 = vadd.f32 %v1530, %v1534
    %v1536 = vadd.f32 %v1531, %v1534
    %v1537 = vadd.f32 %v1532, %v1534
    %s1538 = sld [smem:[#allocation13 + $0x8]]
    %v1539 = vstv %s1538
    %v1540 = vmul.f32 %v1539, %v1240
    %v1541 = vmul.f32 %v1539, %v1241
    %v1542 = vmul.f32 %v1539, %v1242
    %v1543 = vadd.f32 %v1540, 0.0
    %v1544 = vadd.f32 %v1541, 0.0
    %v1545 = vadd.f32 %v1542, 0.0
    %s1546 = sld [smem:[#allocation13 + $0x18]]
    %v1547 = vstv %s1546
    %v1548 = vmul.f32 %v1547, %v1228
    %v1549 = vmul.f32 %v1547, %v1229
    %v1550 = vmul.f32 %v1547, %v1230
    %v1551 = vadd.f32 %v1543, %v1548
    %v1552 = vadd.f32 %v1544, %v1549
    %v1553 = vadd.f32 %v1545, %v1550
    %s1554 = sld [smem:[#allocation13 + $0x28]]
    %v1555 = vstv %s1554
    %v1556 = vmul.f32 %v1555, %v1252
    %v1557 = vmul.f32 %v1555, %v1253
    %v1558 = vmul.f32 %v1555, %v1254
    %v1559 = vadd.f32 %v1551, %v1556
    %v1560 = vadd.f32 %v1552, %v1557
    %v1561 = vadd.f32 %v1553, %v1558
    %s1562 = sld [smem:[#allocation13 + $0x9]]
    %v1563 = vstv %s1562
    %v1564 = vmul.f32 %v1563, %v1267
    %v1565 = vmul.f32 %v1563, %v1268
    %v1566 = vmul.f32 %v1563, %v1269
    %v1567 = vadd.f32 %v1559, %v1564
    %v1568 = vadd.f32 %v1560, %v1565
    %v1569 = vadd.f32 %v1561, %v1566
    %s1570 = sld [smem:[#allocation13 + $0x19]]
    %v1571 = vstv %s1570
    %v1572 = vmul.f32 %v1571, %v1255
    %v1573 = vmul.f32 %v1571, %v1256
    %v1574 = vmul.f32 %v1571, %v1257
    %v1575 = vadd.f32 %v1567, %v1572
    %v1576 = vadd.f32 %v1568, %v1573
    %v1577 = vadd.f32 %v1569, %v1574
    %s1578 = sld [smem:[#allocation13 + $0x29]]
    %v1579 = vstv %s1578
    %v1580 = vmul.f32 %v1579, %v1279
    %v1581 = vmul.f32 %v1579, %v1280
    %v1582 = vmul.f32 %v1579, %v1281
    %v1583 = vadd.f32 %v1575, %v1580
    %v1584 = vadd.f32 %v1576, %v1581
    %v1585 = vadd.f32 %v1577, %v1582
    %s1586 = sld [smem:[#allocation13 + $0xa]]
    %v1587 = vstv %s1586
    %v1588 = vmul.f32 %v1587, %v1294
    %v1589 = vmul.f32 %v1587, %v1295
    %v1590 = vmul.f32 %v1587, %v1296
    %v1591 = vadd.f32 %v1583, %v1588
    %v1592 = vadd.f32 %v1584, %v1589
    %v1593 = vadd.f32 %v1585, %v1590
    %s1594 = sld [smem:[#allocation13 + $0x1a]]
    %v1595 = vstv %s1594
    %v1596 = vmul.f32 %v1595, %v1282
    %v1597 = vmul.f32 %v1595, %v1283
    %v1598 = vmul.f32 %v1595, %v1284
    %v1599 = vadd.f32 %v1591, %v1596
    %v1600 = vadd.f32 %v1592, %v1597
    %v1601 = vadd.f32 %v1593, %v1598
    %s1602 = sld [smem:[#allocation13 + $0x2a]]
    %v1603 = vstv %s1602
    %v1604 = vmul.f32 %v1603, %v1306
    %v1605 = vmul.f32 %v1603, %v1307
    %v1606 = vmul.f32 %v1603, %v1308
    %v1607 = vadd.f32 %v1599, %v1604
    %v1608 = vadd.f32 %v1600, %v1605
    %v1609 = vadd.f32 %v1601, %v1606
    %s1610 = sld [smem:[#allocation13 + $0xb]]
    %v1611 = vstv %s1610
    %v1612 = vmul.f32 %v1611, %v1321
    %v1613 = vmul.f32 %v1611, %v1322
    %v1614 = vmul.f32 %v1611, %v1323
    %v1615 = vadd.f32 %v1607, %v1612
    %v1616 = vadd.f32 %v1608, %v1613
    %v1617 = vadd.f32 %v1609, %v1614
    %s1618 = sld [smem:[#allocation13 + $0x1b]]
    %v1619 = vstv %s1618
    %v1620 = vmul.f32 %v1619, %v1309
    %v1621 = vmul.f32 %v1619, %v1310
    %v1622 = vmul.f32 %v1619, %v1311
    %v1623 = vadd.f32 %v1615, %v1620
    %v1624 = vadd.f32 %v1616, %v1621
    %v1625 = vadd.f32 %v1617, %v1622
    %s1626 = sld [smem:[#allocation13 + $0x2b]]
    %v1627 = vstv %s1626
    %v1628 = vmul.f32 %v1627, %v1333
    %v1629 = vmul.f32 %v1627, %v1334
    %v1630 = vmul.f32 %v1627, %v1335
    %v1631 = vadd.f32 %v1623, %v1628
    %v1632 = vadd.f32 %v1624, %v1629
    %v1633 = vadd.f32 %v1625, %v1630
    %s1634 = sld [smem:[#allocation14 + $0x2]]
    %v1635 = vstv %s1634
    %v1636 = vadd.f32 %v1631, %v1635
    %v1637 = vadd.f32 %v1632, %v1635
    %v1638 = vadd.f32 %v1633, %v1635
    %s1639 = sld [smem:[#allocation13 + $0xc]]
    %v1640 = vstv %s1639
    %v1641 = vmul.f32 %v1640, %v1240
    %v1642 = vmul.f32 %v1640, %v1241
    %v1643 = vmul.f32 %v1640, %v1242
    %v1644 = vadd.f32 %v1641, 0.0
    %v1645 = vadd.f32 %v1642, 0.0
    %v1646 = vadd.f32 %v1643, 0.0
    %s1647 = sld [smem:[#allocation13 + $0x1c]]
    %v1648 = vstv %s1647
    %v1649 = vmul.f32 %v1648, %v1228
    %v1650 = vmul.f32 %v1648, %v1229
    %v1651 = vmul.f32 %v1648, %v1230
    %v1652 = vadd.f32 %v1644, %v1649
    %v1653 = vadd.f32 %v1645, %v1650
    %v1654 = vadd.f32 %v1646, %v1651
    %s1655 = sld [smem:[#allocation13 + $0x2c]]
    %v1656 = vstv %s1655
    %v1657 = vmul.f32 %v1656, %v1252
    %v1658 = vmul.f32 %v1656, %v1253
    %v1659 = vmul.f32 %v1656, %v1254
    %v1660 = vadd.f32 %v1652, %v1657
    %v1661 = vadd.f32 %v1653, %v1658
    %v1662 = vadd.f32 %v1654, %v1659
    %s1663 = sld [smem:[#allocation13 + $0xd]]
    %v1664 = vstv %s1663
    %v1665 = vmul.f32 %v1664, %v1267
    %v1666 = vmul.f32 %v1664, %v1268
    %v1667 = vmul.f32 %v1664, %v1269
    %v1668 = vadd.f32 %v1660, %v1665
    %v1669 = vadd.f32 %v1661, %v1666
    %v1670 = vadd.f32 %v1662, %v1667
    %s1671 = sld [smem:[#allocation13 + $0x1d]]
    %v1672 = vstv %s1671
    %v1673 = vmul.f32 %v1672, %v1255
    %v1674 = vmul.f32 %v1672, %v1256
    %v1675 = vmul.f32 %v1672, %v1257
    %v1676 = vadd.f32 %v1668, %v1673
    %v1677 = vadd.f32 %v1669, %v1674
    %v1678 = vadd.f32 %v1670, %v1675
    %s1679 = sld [smem:[#allocation13 + $0x2d]]
    %v1680 = vstv %s1679
    %v1681 = vmul.f32 %v1680, %v1279
    %v1682 = vmul.f32 %v1680, %v1280
    %v1683 = vmul.f32 %v1680, %v1281
    %v1684 = vadd.f32 %v1676, %v1681
    %v1685 = vadd.f32 %v1677, %v1682
    %v1686 = vadd.f32 %v1678, %v1683
    %s1687 = sld [smem:[#allocation13 + $0xe]]
    %v1688 = vstv %s1687
    %v1689 = vmul.f32 %v1688, %v1294
    %v1690 = vmul.f32 %v1688, %v1295
    %v1691 = vmul.f32 %v1688, %v1296
    %v1692 = vadd.f32 %v1684, %v1689
    %v1693 = vadd.f32 %v1685, %v1690
    %v1694 = vadd.f32 %v1686, %v1691
    %s1695 = sld [smem:[#allocation13 + $0x1e]]
    %v1696 = vstv %s1695
    %v1697 = vmul.f32 %v1696, %v1282
    %v1698 = vmul.f32 %v1696, %v1283
    %v1699 = vmul.f32 %v1696, %v1284
    %v1700 = vadd.f32 %v1692, %v1697
    %v1701 = vadd.f32 %v1693, %v1698
    %v1702 = vadd.f32 %v1694, %v1699
    %s1703 = sld [smem:[#allocation13 + $0x2e]]
    %v1704 = vstv %s1703
    %v1705 = vmul.f32 %v1704, %v1306
    %v1706 = vmul.f32 %v1704, %v1307
    %v1707 = vmul.f32 %v1704, %v1308
    %v1708 = vadd.f32 %v1700, %v1705
    %v1709 = vadd.f32 %v1701, %v1706
    %v1710 = vadd.f32 %v1702, %v1707
    %s1711 = sld [smem:[#allocation13 + $0xf]]
    %v1712 = vstv %s1711
    %v1713 = vmul.f32 %v1712, %v1321
    %v1714 = vmul.f32 %v1712, %v1322
    %v1715 = vmul.f32 %v1712, %v1323
    %v1716 = vadd.f32 %v1708, %v1713
    %v1717 = vadd.f32 %v1709, %v1714
    %v1718 = vadd.f32 %v1710, %v1715
    %s1719 = sld [smem:[#allocation13 + $0x1f]]
    %v1720 = vstv %s1719
    %v1721 = vmul.f32 %v1720, %v1309
    %v1722 = vmul.f32 %v1720, %v1310
    %v1723 = vmul.f32 %v1720, %v1311
    %v1724 = vadd.f32 %v1716, %v1721
    %v1725 = vadd.f32 %v1717, %v1722
    %v1726 = vadd.f32 %v1718, %v1723
    %s1727 = sld [smem:[#allocation13 + $0x2f]]
    %v1728 = vstv %s1727
    %v1729 = vmul.f32 %v1728, %v1333
    %v1730 = vmul.f32 %v1728, %v1334
    %v1731 = vmul.f32 %v1728, %v1335
    %v1732 = vadd.f32 %v1724, %v1729
    %v1733 = vadd.f32 %v1725, %v1730
    %v1734 = vadd.f32 %v1726, %v1731
    %s1735 = sld [smem:[#allocation14 + $0x3]]
    %v1736 = vstv %s1735
    %v1737 = vadd.f32 %v1732, %v1736
    %v1738 = vadd.f32 %v1733, %v1736
    %v1739 = vadd.f32 %v1734, %v1736
    %v1740 = vmax.f32 %v1434, 0.0
    %v1741 = vmax.f32 %v1435, 0.0
    %v1742 = vmax.f32 %v1436, 0.0
    %v1743 = vmax.f32 %v1535, 0.0
    %v1744 = vmax.f32 %v1536, 0.0
    %v1745 = vmax.f32 %v1537, 0.0
    %v1746 = vmax.f32 %v1636, 0.0
    %v1747 = vmax.f32 %v1637, 0.0
    %v1748 = vmax.f32 %v1638, 0.0
    %v1749 = vmax.f32 %v1737, 0.0
    %v1750 = vmax.f32 %v1738, 0.0
    %v1751 = vmax.f32 %v1739, 0.0
    %v1752 = vmul.f32 %v1740, %v1169
    %v1753 = vmul.f32 %v1741, %v1171
    %v1754 = vmul.f32 %v1742, %v1173
    %1755 = vrot.lane.b32.xlu0 %v1752, 1
    %v1756 = vpop.permute.xlu0 %1755
    %1757 = vrot.lane.b32.xlu0 %v1753, 1
    %v1758 = vpop.permute.xlu0 %1757
    %1759 = vrot.lane.b32.xlu0 %v1754, 1
    %v1760 = vpop.permute.xlu0 %1759
    %v1761 = vsel %vm184, %v1758, %v1760
    %v1762 = vsel %vm184, %v1756, %v1758
    %v1763 = vsel %vm184, %v1760, %v1756
    %v1764 = vsel %vm157, %v1763, 0.0
    %v1765 = vsel %vm158, %v1762, 0.0
    %v1766 = vsel %vm159, %v1761, 0.0
    %1767 = vrot.lane.b32.xlu0 %v1752, 127
    %v1768 = vpop.permute.xlu0 %1767
    %1769 = vrot.lane.b32.xlu0 %v1753, 127
    %v1770 = vpop.permute.xlu0 %1769
    %1771 = vrot.lane.b32.xlu0 %v1754, 127
    %v1772 = vpop.permute.xlu0 %1771
    %v1773 = vsel %vm197, %v1770, %v1772
    %v1774 = vsel %vm197, %v1768, %v1770
    %v1775 = vsel %vm197, %v1772, %v1768
    %v1776 = vsel %vm160, %v1774, 0.0
    %v1777 = vsel %vm161, %v1773, 0.0
    %v1778 = vsel %vm162, %v1775, 0.0
    %v1779 = vmul.f32 %v1743, %v1187
    %v1780 = vmul.f32 %v1744, %v1189
    %v1781 = vmul.f32 %v1745, %v1191
    %1782 = vrot.lane.b32.xlu0 %v1779, 1
    %v1783 = vpop.permute.xlu0 %1782
    %1784 = vrot.lane.b32.xlu0 %v1780, 1
    %v1785 = vpop.permute.xlu0 %1784
    %1786 = vrot.lane.b32.xlu0 %v1781, 1
    %v1787 = vpop.permute.xlu0 %1786
    %v1788 = vsel %vm184, %v1785, %v1787
    %v1789 = vsel %vm184, %v1783, %v1785
    %v1790 = vsel %vm184, %v1787, %v1783
    %v1791 = vsel %vm157, %v1790, 0.0
    %v1792 = vsel %vm158, %v1789, 0.0
    %v1793 = vsel %vm159, %v1788, 0.0
    %1794 = vrot.lane.b32.xlu0 %v1779, 127
    %v1795 = vpop.permute.xlu0 %1794
    %1796 = vrot.lane.b32.xlu0 %v1780, 127
    %v1797 = vpop.permute.xlu0 %1796
    %1798 = vrot.lane.b32.xlu0 %v1781, 127
    %v1799 = vpop.permute.xlu0 %1798
    %v1800 = vsel %vm197, %v1797, %v1799
    %v1801 = vsel %vm197, %v1795, %v1797
    %v1802 = vsel %vm197, %v1799, %v1795
    %v1803 = vsel %vm160, %v1801, 0.0
    %v1804 = vsel %vm161, %v1800, 0.0
    %v1805 = vsel %vm162, %v1802, 0.0
    %v1806 = vmul.f32 %v1746, %v1205
    %v1807 = vmul.f32 %v1747, %v1207
    %v1808 = vmul.f32 %v1748, %v1209
    %1809 = vrot.lane.b32.xlu0 %v1806, 1
    %v1810 = vpop.permute.xlu0 %1809
    %1811 = vrot.lane.b32.xlu0 %v1807, 1
    %v1812 = vpop.permute.xlu0 %1811
    %1813 = vrot.lane.b32.xlu0 %v1808, 1
    %v1814 = vpop.permute.xlu0 %1813
    %v1815 = vsel %vm184, %v1812, %v1814
    %v1816 = vsel %vm184, %v1810, %v1812
    %v1817 = vsel %vm184, %v1814, %v1810
    %v1818 = vsel %vm157, %v1817, 0.0
    %v1819 = vsel %vm158, %v1816, 0.0
    %v1820 = vsel %vm159, %v1815, 0.0
    %1821 = vrot.lane.b32.xlu0 %v1806, 127
    %v1822 = vpop.permute.xlu0 %1821
    %1823 = vrot.lane.b32.xlu0 %v1807, 127
    %v1824 = vpop.permute.xlu0 %1823
    %1825 = vrot.lane.b32.xlu0 %v1808, 127
    %v1826 = vpop.permute.xlu0 %1825
    %v1827 = vsel %vm197, %v1824, %v1826
    %v1828 = vsel %vm197, %v1822, %v1824
    %v1829 = vsel %vm197, %v1826, %v1822
    %v1830 = vsel %vm160, %v1828, 0.0
    %v1831 = vsel %vm161, %v1827, 0.0
    %v1832 = vsel %vm162, %v1829, 0.0
    %v1833 = vmul.f32 %v1749, %v1223
    %v1834 = vmul.f32 %v1750, %v1225
    %v1835 = vmul.f32 %v1751, %v1227
    %1836 = vrot.lane.b32.xlu0 %v1833, 1
    %v1837 = vpop.permute.xlu0 %1836
    %1838 = vrot.lane.b32.xlu0 %v1834, 1
    %v1839 = vpop.permute.xlu0 %1838
    %1840 = vrot.lane.b32.xlu0 %v1835, 1
    %v1841 = vpop.permute.xlu0 %1840
    %v1842 = vsel %vm184, %v1839, %v1841
    %v1843 = vsel %vm184, %v1837, %v1839
    %v1844 = vsel %vm184, %v1841, %v1837
    %v1845 = vsel %vm157, %v1844, 0.0
    %v1846 = vsel %vm158, %v1843, 0.0
    %v1847 = vsel %vm159, %v1842, 0.0
    %1848 = vrot.lane.b32.xlu0 %v1833, 127
    %v1849 = vpop.permute.xlu0 %1848
    %1850 = vrot.lane.b32.xlu0 %v1834, 127
    %v1851 = vpop.permute.xlu0 %1850
    %1852 = vrot.lane.b32.xlu0 %v1835, 127
    %v1853 = vpop.permute.xlu0 %1852
    %v1854 = vsel %vm197, %v1851, %v1853
    %v1855 = vsel %vm197, %v1849, %v1851
    %v1856 = vsel %vm197, %v1853, %v1849
    %v1857 = vsel %vm160, %v1855, 0.0
    %v1858 = vsel %vm161, %v1854, 0.0
    %v1859 = vsel %vm162, %v1856, 0.0
    %s1860 = sld [smem:[#allocation16]]
    %v1861 = vstv %s1860
    %v1862 = vmul.f32 %v1861, %v1764
    %v1863 = vmul.f32 %v1861, %v1765
    %v1864 = vmul.f32 %v1861, %v1766
    %v1865 = vadd.f32 %v1862, 0.0
    %v1866 = vadd.f32 %v1863, 0.0
    %v1867 = vadd.f32 %v1864, 0.0
    %s1868 = sld [smem:[#allocation16 + $0x4]]
    %v1869 = vstv %s1868
    %v1870 = vmul.f32 %v1869, %v1752
    %v1871 = vmul.f32 %v1869, %v1753
    %v1872 = vmul.f32 %v1869, %v1754
    %v1873 = vadd.f32 %v1865, %v1870
    %v1874 = vadd.f32 %v1866, %v1871
    %v1875 = vadd.f32 %v1867, %v1872
    %s1876 = sld [smem:[#allocation16 + $0x8]]
    %v1877 = vstv %s1876
    %v1878 = vmul.f32 %v1877, %v1776
    %v1879 = vmul.f32 %v1877, %v1777
    %v1880 = vmul.f32 %v1877, %v1778
    %v1881 = vadd.f32 %v1873, %v1878
    %v1882 = vadd.f32 %v1874, %v1879
    %v1883 = vadd.f32 %v1875, %v1880
    %s1884 = sld [smem:[#allocation16 + $0x1]]
    %v1885 = vstv %s1884
    %v1886 = vmul.f32 %v1885, %v1791
    %v1887 = vmul.f32 %v1885, %v1792
    %v1888 = vmul.f32 %v1885, %v1793
    %v1889 = vadd.f32 %v1881, %v1886
    %v1890 = vadd.f32 %v1882, %v1887
    %v1891 = vadd.f32 %v1883, %v1888
    %s1892 = sld [smem:[#allocation16 + $0x5]]
    %v1893 = vstv %s1892
    %v1894 = vmul.f32 %v1893, %v1779
    %v1895 = vmul.f32 %v1893, %v1780
    %v1896 = vmul.f32 %v1893, %v1781
    %v1897 = vadd.f32 %v1889, %v1894
    %v1898 = vadd.f32 %v1890, %v1895
    %v1899 = vadd.f32 %v1891, %v1896
    %s1900 = sld [smem:[#allocation16 + $0x9]]
    %v1901 = vstv %s1900
    %v1902 = vmul.f32 %v1901, %v1803
    %v1903 = vmul.f32 %v1901, %v1804
    %v1904 = vmul.f32 %v1901, %v1805
    %v1905 = vadd.f32 %v1897, %v1902
    %v1906 = vadd.f32 %v1898, %v1903
    %v1907 = vadd.f32 %v1899, %v1904
    %s1908 = sld [smem:[#allocation16 + $0x2]]
    %v1909 = vstv %s1908
    %v1910 = vmul.f32 %v1909, %v1818
    %v1911 = vmul.f32 %v1909, %v1819
    %v1912 = vmul.f32 %v1909, %v1820
    %v1913 = vadd.f32 %v1905, %v1910
    %v1914 = vadd.f32 %v1906, %v1911
    %v1915 = vadd.f32 %v1907, %v1912
    %s1916 = sld [smem:[#allocation16 + $0x6]]
    %v1917 = vstv %s1916
    %v1918 = vmul.f32 %v1917, %v1806
    %v1919 = vmul.f32 %v1917, %v1807
    %v1920 = vmul.f32 %v1917, %v1808
    %v1921 = vadd.f32 %v1913, %v1918
    %v1922 = vadd.f32 %v1914, %v1919
    %v1923 = vadd.f32 %v1915, %v1920
    %s1924 = sld [smem:[#allocation16 + $0xa]]
    %v1925 = vstv %s1924
    %v1926 = vmul.f32 %v1925, %v1830
    %v1927 = vmul.f32 %v1925, %v1831
    %v1928 = vmul.f32 %v1925, %v1832
    %v1929 = vadd.f32 %v1921, %v1926
    %v1930 = vadd.f32 %v1922, %v1927
    %v1931 = vadd.f32 %v1923, %v1928
    %s1932 = sld [smem:[#allocation16 + $0x3]]
    %v1933 = vstv %s1932
    %v1934 = vmul.f32 %v1933, %v1845
    %v1935 = vmul.f32 %v1933, %v1846
    %v1936 = vmul.f32 %v1933, %v1847
    %v1937 = vadd.f32 %v1929, %v1934
    %v1938 = vadd.f32 %v1930, %v1935
    %v1939 = vadd.f32 %v1931, %v1936
    %s1940 = sld [smem:[#allocation16 + $0x7]]
    %v1941 = vstv %s1940
    %v1942 = vmul.f32 %v1941, %v1833
    %v1943 = vmul.f32 %v1941, %v1834
    %v1944 = vmul.f32 %v1941, %v1835
    %v1945 = vadd.f32 %v1937, %v1942
    %v1946 = vadd.f32 %v1938, %v1943
    %v1947 = vadd.f32 %v1939, %v1944
    %s1948 = sld [smem:[#allocation16 + $0xb]]
    %v1949 = vstv %s1948
    %v1950 = vmul.f32 %v1949, %v1857
    %v1951 = vmul.f32 %v1949, %v1858
    %v1952 = vmul.f32 %v1949, %v1859
    %v1953 = vadd.f32 %v1945, %v1950
    %v1954 = vadd.f32 %v1946, %v1951
    %v1955 = vadd.f32 %v1947, %v1952
    %s1956 = sld [smem:[#allocation2]]
    %v1957 = vstv %s1956
    %v1958 = vadd.f32 %v1953, %v1957
    %v1959 = vadd.f32 %v1954, %v1957
    %v1960 = vadd.f32 %v1955, %v1957
    %1961 = vst [vmem:[#allocation20] sm:$0xff] %v1958
    %1962 = vst [vmem:[#allocation20 + $0x8] sm:$0xff] %v1959
    %1963 = vst [vmem:[#allocation20 + $0x10] sm:$0xff] %v1960
    %v1964 = vld [vmem:[#allocation17] sm:$0xff]
    %v1965 = vld [vmem:[#allocation17 + $0x8] sm:$0xff]
    %v1966 = vld [vmem:[#allocation17 + $0x10] sm:$0xff]
    %v1967 = vld [vmem:[#allocation17 + $0x18] sm:$0xff]
    %v1968 = vld [vmem:[#allocation17 + $0x20] sm:$0xff]
    %v1969 = vld [vmem:[#allocation17 + $0x28] sm:$0xff]
    %v1970 = vld [vmem:[#allocation17 + $0x30] sm:$0xff]
    %v1971 = vld [vmem:[#allocation17 + $0x38] sm:$0xff]
    %v1972 = vld [vmem:[#allocation17 + $0x40] sm:$0xff]
    %v1973 = vld [vmem:[#allocation17 + $0x48] sm:$0xff]
    %v1974 = vld [vmem:[#allocation17 + $0x50] sm:$0xff]
    %v1975 = vld [vmem:[#allocation17 + $0x58] sm:$0xff]
    %v1976 = vld [vmem:[#allocation17 + $0x60] sm:$0xff]
    %v1977 = vld [vmem:[#allocation17 + $0x68] sm:$0xff]
    %v1978 = vld [vmem:[#allocation17 + $0x70] sm:$0xff]
    %v1979 = vld [vmem:[#allocation17 + $0x78] sm:$0xff]
    %v1980 = vld [vmem:[#allocation17 + $0x80] sm:$0xff]
    %v1981 = vld [vmem:[#allocation17 + $0x88] sm:$0xff]
    %v1982 = vld [vmem:[#allocation17 + $0x90] sm:$0xff]
    %v1983 = vld [vmem:[#allocation17 + $0x98] sm:$0xff]
    %v1984 = vld [vmem:[#allocation17 + $0xa0] sm:$0xff]
    %v1985 = vld [vmem:[#allocation17 + $0xa8] sm:$0xff]
    %v1986 = vld [vmem:[#allocation17 + $0xb0] sm:$0xff]
    %v1987 = vld [vmem:[#allocation17 + $0xb8] sm:$0xff]
    %v1988 = vld [vmem:[#allocation17 + $0xc0] sm:$0xff]
    %v1989 = vld [vmem:[#allocation17 + $0xc8] sm:$0xff]
    %v1990 = vld [vmem:[#allocation17 + $0xd0] sm:$0xff]
    %v1991 = vld [vmem:[#allocation17 + $0xd8] sm:$0xff]
    %v1992 = vld [vmem:[#allocation17 + $0xe0] sm:$0xff]
    %v1993 = vld [vmem:[#allocation17 + $0xe8] sm:$0xff]
    %v1994 = vld [vmem:[#allocation17 + $0xf0] sm:$0xff]
    %v1995 = vld [vmem:[#allocation17 + $0xf8] sm:$0xff]
    %v1996 = vld [vmem:[#allocation17 + $0x100] sm:$0xff]
    %v1997 = vld [vmem:[#allocation17 + $0x108] sm:$0xff]
    %v1998 = vld [vmem:[#allocation17 + $0x110] sm:$0xff]
    %v1999 = vld [vmem:[#allocation17 + $0x118] sm:$0xff]
    %v2000 = vld [vmem:[#allocation17 + $0x120] sm:$0xff]
    %v2001 = vld [vmem:[#allocation17 + $0x128] sm:$0xff]
    %v2002 = vld [vmem:[#allocation17 + $0x130] sm:$0xff]
    %v2003 = vld [vmem:[#allocation17 + $0x138] sm:$0xff]
    %v2004 = vld [vmem:[#allocation17 + $0x140] sm:$0xff]
    %v2005 = vld [vmem:[#allocation17 + $0x148] sm:$0xff]
    %v2006 = vld [vmem:[#allocation17 + $0x150] sm:$0xff]
    %v2007 = vld [vmem:[#allocation17 + $0x158] sm:$0xff]
    %v2008 = vld [vmem:[#allocation17 + $0x160] sm:$0xff]
    %v2009 = vld [vmem:[#allocation17 + $0x168] sm:$0xff]
    %v2010 = vld [vmem:[#allocation17 + $0x170] sm:$0xff]
    %v2011 = vld [vmem:[#allocation17 + $0x178] sm:$0xff]
    %v2012 = vld [vmem:[#allocation17 + $0x180] sm:$0xff]
    %v2013 = vld [vmem:[#allocation17 + $0x188] sm:$0xff]
    %v2014 = vld [vmem:[#allocation17 + $0x190] sm:$0xff]
    %v2015 = vld [vmem:[#allocation17 + $0x198] sm:$0xff]
    %v2016 = vld [vmem:[#allocation17 + $0x1a0] sm:$0xff]
    %v2017 = vld [vmem:[#allocation17 + $0x1a8] sm:$0xff]
    %v2018 = vld [vmem:[#allocation17 + $0x1b0] sm:$0xff]
    %v2019 = vld [vmem:[#allocation17 + $0x1b8] sm:$0xff]
    %v2020 = vld [vmem:[#allocation17 + $0x1c0] sm:$0xff]
    %v2021 = vld [vmem:[#allocation17 + $0x1c8] sm:$0xff]
    %v2022 = vld [vmem:[#allocation17 + $0x1d0] sm:$0xff]
    %v2023 = vld [vmem:[#allocation17 + $0x1d8] sm:$0xff]
    %v2024 = vld [vmem:[#allocation17 + $0x1e0] sm:$0xff]
    %v2025 = vld [vmem:[#allocation17 + $0x1e8] sm:$0xff]
    %v2026 = vld [vmem:[#allocation17 + $0x1f0] sm:$0xff]
    %v2027 = vld [vmem:[#allocation17 + $0x1f8] sm:$0xff]
    %v2028 = vld [vmem:[#allocation17 + $0x200] sm:$0xff]
    %v2029 = vld [vmem:[#allocation17 + $0x208] sm:$0xff]
    %v2030 = vld [vmem:[#allocation17 + $0x210] sm:$0xff]
    %v2031 = vld [vmem:[#allocation17 + $0x218] sm:$0xff]
    %v2032 = vld [vmem:[#allocation17 + $0x220] sm:$0xff]
    %v2033 = vld [vmem:[#allocation17 + $0x228] sm:$0xff]
    %v2034 = vld [vmem:[#allocation17 + $0x230] sm:$0xff]
    %v2035 = vld [vmem:[#allocation17 + $0x238] sm:$0xff]
    %v2036 = vld [vmem:[#allocation17 + $0x240] sm:$0xff]
    %v2037 = vld [vmem:[#allocation17 + $0x248] sm:$0xff]
    %v2038 = vld [vmem:[#allocation17 + $0x250] sm:$0xff]
    %v2039 = vld [vmem:[#allocation17 + $0x258] sm:$0xff]
    %v2040 = vld [vmem:[#allocation17 + $0x260] sm:$0xff]
    %v2041 = vld [vmem:[#allocation17 + $0x268] sm:$0xff]
    %v2042 = vld [vmem:[#allocation17 + $0x270] sm:$0xff]
    %v2043 = vld [vmem:[#allocation17 + $0x278] sm:$0xff]
    %v2044 = vld [vmem:[#allocation17 + $0x280] sm:$0xff]
    %v2045 = vld [vmem:[#allocation17 + $0x288] sm:$0xff]
    %v2046 = vld [vmem:[#allocation17 + $0x290] sm:$0xff]
    %v2047 = vld [vmem:[#allocation17 + $0x298] sm:$0xff]
    %v2048 = vld [vmem:[#allocation17 + $0x2a0] sm:$0xff]
    %v2049 = vld [vmem:[#allocation17 + $0x2a8] sm:$0xff]
    %v2050 = vld [vmem:[#allocation17 + $0x2b0] sm:$0xff]
    %v2051 = vld [vmem:[#allocation17 + $0x2b8] sm:$0xff]
    %v2052 = vld [vmem:[#allocation17 + $0x2c0] sm:$0xff]
    %v2053 = vld [vmem:[#allocation17 + $0x2c8] sm:$0xff]
    %v2054 = vld [vmem:[#allocation17 + $0x2d0] sm:$0xff]
    %v2055 = vld [vmem:[#allocation17 + $0x2d8] sm:$0xff]
    %v2056 = vld [vmem:[#allocation17 + $0x2e0] sm:$0xff]
    %v2057 = vld [vmem:[#allocation17 + $0x2e8] sm:$0xff]
    %v2058 = vld [vmem:[#allocation17 + $0x2f0] sm:$0xff]
    %v2059 = vld [vmem:[#allocation17 + $0x2f8] sm:$0xff]
    %v2060 = vld [vmem:[#allocation17 + $0x300] sm:$0xff]
    %v2061 = vld [vmem:[#allocation17 + $0x308] sm:$0xff]
    %v2062 = vld [vmem:[#allocation17 + $0x310] sm:$0xff]
    %v2063 = vld [vmem:[#allocation17 + $0x318] sm:$0xff]
    %v2064 = vld [vmem:[#allocation17 + $0x320] sm:$0xff]
    %v2065 = vld [vmem:[#allocation17 + $0x328] sm:$0xff]
    %v2066 = vld [vmem:[#allocation17 + $0x330] sm:$0xff]
    %v2067 = vld [vmem:[#allocation17 + $0x338] sm:$0xff]
    %v2068 = vld [vmem:[#allocation17 + $0x340] sm:$0xff]
    %v2069 = vld [vmem:[#allocation17 + $0x348] sm:$0xff]
    %v2070 = vld [vmem:[#allocation17 + $0x350] sm:$0xff]
    %v2071 = vld [vmem:[#allocation17 + $0x358] sm:$0xff]
    %v2072 = vld [vmem:[#allocation17 + $0x360] sm:$0xff]
    %v2073 = vld [vmem:[#allocation17 + $0x368] sm:$0xff]
    %v2074 = vld [vmem:[#allocation17 + $0x370] sm:$0xff]
    %v2075 = vld [vmem:[#allocation17 + $0x378] sm:$0xff]
    %v2076 = vld [vmem:[#allocation17 + $0x380] sm:$0xff]
    %v2077 = vld [vmem:[#allocation17 + $0x388] sm:$0xff]
    %v2078 = vld [vmem:[#allocation17 + $0x390] sm:$0xff]
    %v2079 = vld [vmem:[#allocation17 + $0x398] sm:$0xff]
    %v2080 = vld [vmem:[#allocation17 + $0x3a0] sm:$0xff]
    %v2081 = vld [vmem:[#allocation17 + $0x3a8] sm:$0xff]
    %v2082 = vld [vmem:[#allocation17 + $0x3b0] sm:$0xff]
    %v2083 = vld [vmem:[#allocation17 + $0x3b8] sm:$0xff]
    %v2084 = vld [vmem:[#allocation17 + $0x3c0] sm:$0xff]
    %v2085 = vld [vmem:[#allocation17 + $0x3c8] sm:$0xff]
    %v2086 = vld [vmem:[#allocation17 + $0x3d0] sm:$0xff]
    %v2087 = vld [vmem:[#allocation17 + $0x3d8] sm:$0xff]
    %v2088 = vld [vmem:[#allocation17 + $0x3e0] sm:$0xff]
    %v2089 = vld [vmem:[#allocation17 + $0x3e8] sm:$0xff]
    %v2090 = vld [vmem:[#allocation17 + $0x3f0] sm:$0xff]
    %v2091 = vld [vmem:[#allocation17 + $0x3f8] sm:$0xff]
    %v2092 = vld [vmem:[#allocation17 + $0x400] sm:$0xff]
    %v2093 = vld [vmem:[#allocation17 + $0x408] sm:$0xff]
    %v2094 = vld [vmem:[#allocation17 + $0x410] sm:$0xff]
    %v2095 = vld [vmem:[#allocation17 + $0x418] sm:$0xff]
    %v2096 = vld [vmem:[#allocation17 + $0x420] sm:$0xff]
    %v2097 = vld [vmem:[#allocation17 + $0x428] sm:$0xff]
    %v2098 = vld [vmem:[#allocation17 + $0x430] sm:$0xff]
    %v2099 = vld [vmem:[#allocation17 + $0x438] sm:$0xff]
    %v2100 = vld [vmem:[#allocation17 + $0x440] sm:$0xff]
    %v2101 = vld [vmem:[#allocation17 + $0x448] sm:$0xff]
    %v2102 = vld [vmem:[#allocation17 + $0x450] sm:$0xff]
    %v2103 = vld [vmem:[#allocation17 + $0x458] sm:$0xff]
    %v2104 = vld [vmem:[#allocation17 + $0x460] sm:$0xff]
    %v2105 = vld [vmem:[#allocation17 + $0x468] sm:$0xff]
    %v2106 = vld [vmem:[#allocation17 + $0x470] sm:$0xff]
    %v2107 = vld [vmem:[#allocation17 + $0x478] sm:$0xff]
    %v2108 = vld [vmem:[%s10] sm:$0x7]
    %v2110 = vlaneseq
    %v2111 = vshrl.u32 %v2110, 7
    %v2112 = vsub.s32 0, %v2111
    %v2113 = vrot.slane %v2108, %v2112
    %v2114 = vlaneseq
    %v2115 = vshrl.u32 %v2114, 7
    %v2116 = vsub.s32 1, %v2115
    %v2117 = vrot.slane %v2108, %v2116
    %v2118 = vlaneseq
    %v2119 = vshrl.u32 %v2118, 7
    %v2120 = vsub.s32 2, %v2119
    %v2121 = vrot.slane %v2108, %v2120
    %2125 = vmatprep.subr.mxu0 %v1965
    %2126 = vmatpush1.msra.mxu0 %v1964
    %2127 = vmatprep.subr.mxu0 %v1968
    %2128 = vmatpush1.msra.mxu0 %v1967
    %2129 = vmatprep.subr.mxu0 %v1971
    %2130 = vmatpush1.msra.mxu0 %v1970
    %2131 = vmatprep.subr.mxu0 %v1974
    %2132 = vmatpush1.msra.mxu0 %v1973
    %2133 = vmatprep.subr.mxu0 %v1977
    %2134 = vmatpush1.msra.mxu0 %v1976
    %2135 = vmatprep.subr.mxu0 %v1980
    %2136 = vmatpush1.msra.mxu0 %v1979
    %2137 = vmatprep.subr.mxu0 %v1983
    %2138 = vmatpush1.msra.mxu0 %v1982
    %2139 = vmatprep.subr.mxu0 %v1986
    %2140 = vmatpush1.msra.mxu0 %v1985
    %2141 = vmatprep.subr.mxu0 %v1989
    %2142 = vmatpush1.msra.mxu0 %v1988
    %2143 = vmatprep.subr.mxu0 %v1992
    %2144 = vmatpush1.msra.mxu0 %v1991
    %2145 = vmatprep.subr.mxu0 %v1995
    %2146 = vmatpush1.msra.mxu0 %v1994
    %2147 = vmatprep.subr.mxu0 %v1998
    %2148 = vmatpush1.msra.mxu0 %v1997
    %2149 = vmatprep.subr.mxu0 %v2001
    %2150 = vmatpush1.msra.mxu0 %v2000
    %2151 = vmatprep.subr.mxu0 %v2004
    %2152 = vmatpush1.msra.mxu0 %v2003
    %2153 = vmatprep.subr.mxu0 %v2007
    %2154 = vmatpush1.msra.mxu0 %v2006
    %2155 = vmatprep.subr.mxu0 %v2010
    %2156 = vmatpush1.msra.mxu0 %v2009
    %2157 = vmatprep.subr.mxu0 %v2013
    %2158 = vmatpush1.msra.mxu0 %v2012
    %2159 = vmatprep.subr.mxu0 %v2016
    %2160 = vmatpush1.msra.mxu0 %v2015
    %2161 = vmatprep.subr.mxu0 %v2019
    %2162 = vmatpush1.msra.mxu0 %v2018
    %2163 = vmatprep.subr.mxu0 %v2022
    %2164 = vmatpush1.msra.mxu0 %v2021
    %2165 = vmatprep.subr.mxu0 %v2025
    %2166 = vmatpush1.msra.mxu0 %v2024
    %2167 = vmatprep.subr.mxu0 %v2028
    %2168 = vmatpush1.msra.mxu0 %v2027
    %2169 = vmatprep.subr.mxu0 %v2031
    %2170 = vmatpush1.msra.mxu0 %v2030
    %2171 = vmatprep.subr.mxu0 %v2034
    %2172 = vmatpush1.msra.mxu0 %v2033
    %2173 = vmatprep.subr.mxu0 %v2037
    %2174 = vmatpush1.msra.mxu0 %v2036
    %2175 = vmatprep.subr.mxu0 %v2040
    %2176 = vmatpush1.msra.mxu0 %v2039
    %2177 = vmatprep.subr.mxu0 %v2043
    %2178 = vmatpush1.msra.mxu0 %v2042
    %2179 = vmatprep.subr.mxu0 %v2046
    %2180 = vmatpush1.msra.mxu0 %v2045
    %2181 = vmatprep.subr.mxu0 %v2049
    %2182 = vmatpush1.msra.mxu0 %v2048
    %2183 = vmatprep.subr.mxu0 %v2052
    %2184 = vmatpush1.msra.mxu0 %v2051
    %2185 = vmatprep.subr.mxu0 %v2055
    %2186 = vmatpush1.msra.mxu0 %v2054
    %2187 = vmatprep.subr.mxu0 %v2058
    %2188 = vmatpush1.msra.mxu0 %v2057
    %2189 = vmatprep.mubr.f32.mxu0 %v1959
    %2190 = vmatmul.mubr.f32.gmra.mrb[0].mxu0 %v1958
    %v2191 = vpop.f32.mrb[0].mxu0
    %v2192 = vadd.f32 %v2113, %v2191
    %v2193 = vpop.f32.mrb[0].mxu0
    %v2194 = vadd.f32 %v2117, %v2193
    %2195 = vdwg.mxu0
    %2196 = vmatprep.subr.mxu0 %v2061
    %2197 = vmatpush1.msra.mxu0 %v2060
    %2198 = vmatprep.subr.mxu0 %v2064
    %2199 = vmatpush1.msra.mxu0 %v2063
    %2200 = vmatprep.subr.mxu0 %v2067
    %2201 = vmatpush1.msra.mxu0 %v2066
    %2202 = vmatprep.subr.mxu0 %v2070
    %2203 = vmatpush1.msra.mxu0 %v2069
    %2204 = vmatprep.subr.mxu0 %v2073
    %2205 = vmatpush1.msra.mxu0 %v2072
    %2206 = vmatprep.subr.mxu0 %v2076
    %2207 = vmatpush1.msra.mxu0 %v2075
    %2208 = vmatprep.subr.mxu0 %v2079
    %2209 = vmatpush1.msra.mxu0 %v2078
    %2210 = vmatprep.subr.mxu0 %v2082
    %2211 = vmatpush1.msra.mxu0 %v2081
    %2212 = vmatprep.subr.mxu0 %v2085
    %2213 = vmatpush1.msra.mxu0 %v2084
    %2214 = vmatprep.subr.mxu0 %v2088
    %2215 = vmatpush1.msra.mxu0 %v2087
    %2216 = vmatprep.subr.mxu0 %v2091
    %2217 = vmatpush1.msra.mxu0 %v2090
    %2218 = vmatprep.subr.mxu0 %v2094
    %2219 = vmatpush1.msra.mxu0 %v2093
    %2220 = vmatprep.subr.mxu0 %v2097
    %2221 = vmatpush1.msra.mxu0 %v2096
    %2222 = vmatprep.subr.mxu0 %v2100
    %2223 = vmatpush1.msra.mxu0 %v2099
    %2224 = vmatprep.subr.mxu0 %v2103
    %2225 = vmatpush1.msra.mxu0 %v2102
    %2226 = vmatprep.subr.mxu0 %v2106
    %2227 = vmatpush1.msra.mxu0 %v2105
    %2228 = vmatprep.subr.mxu0 0.0
    %2229 = vmatpush1.msra.mxu0 0.0
    %2230 = vmatprep.subr.mxu0 0.0
    %2231 = vmatpush1.msra.mxu0 0.0
    %2232 = vmatprep.subr.mxu0 0.0
    %2233 = vmatpush1.msra.mxu0 0.0
    %2234 = vmatprep.subr.mxu0 0.0
    %2235 = vmatpush1.msra.mxu0 0.0
    %2236 = vmatprep.subr.mxu0 0.0
    %2237 = vmatpush1.msra.mxu0 0.0
    %2238 = vmatprep.subr.mxu0 0.0
    %2239 = vmatpush1.msra.mxu0 0.0
    %2240 = vmatprep.subr.mxu0 0.0
    %2241 = vmatpush1.msra.mxu0 0.0
    %2242 = vmatprep.subr.mxu0 0.0
    %2243 = vmatpush1.msra.mxu0 0.0
    %2244 = vmatprep.subr.mxu0 0.0
    %2245 = vmatpush1.msra.mxu0 0.0
    %2246 = vmatprep.subr.mxu0 0.0
    %2247 = vmatpush1.msra.mxu0 0.0
    %2248 = vmatprep.subr.mxu0 0.0
    %2249 = vmatpush1.msra.mxu0 0.0
    %2250 = vmatprep.subr.mxu0 0.0
    %2251 = vmatpush1.msra.mxu0 0.0
    %2252 = vmatprep.subr.mxu0 0.0
    %2253 = vmatpush1.msra.mxu0 0.0
    %2254 = vmatprep.subr.mxu0 0.0
    %2255 = vmatpush1.msra.mxu0 0.0
    %2256 = vmatprep.subr.mxu0 0.0
    %2257 = vmatpush1.msra.mxu0 0.0
    %2258 = vmatprep.subr.mxu0 0.0
    %2259 = vmatpush1.msra.mxu0 0.0
    %2260 = vmatprep.mubr.f32.mxu0 0.0
    %2261 = vmatmul.mubr.f32.gmra.mrb[0].mxu0 %v1960
    %v2262 = vpop.f32.mrb[0].mxu0
    %v2263 = vadd.f32 %v2192, %v2262
    %v2264 = vpop.f32.mrb[0].mxu0
    %v2265 = vadd.f32 %v2194, %v2264
    %2266 = vdwg.mxu0
    %2267 = vmatprep.subr.mxu0 0.0
    %2268 = vmatpush1.msra.mxu0 %v1966
    %2269 = vmatprep.subr.mxu0 0.0
    %2270 = vmatpush1.msra.mxu0 %v1969
    %2271 = vmatprep.subr.mxu0 0.0
    %2272 = vmatpush1.msra.mxu0 %v1972
    %2273 = vmatprep.subr.mxu0 0.0
    %2274 = vmatpush1.msra.mxu0 %v1975
    %2275 = vmatprep.subr.mxu0 0.0
    %2276 = vmatpush1.msra.mxu0 %v1978
    %2277 = vmatprep.subr.mxu0 0.0
    %2278 = vmatpush1.msra.mxu0 %v1981
    %2279 = vmatprep.subr.mxu0 0.0
    %2280 = vmatpush1.msra.mxu0 %v1984
    %2281 = vmatprep.subr.mxu0 0.0
    %2282 = vmatpush1.msra.mxu0 %v1987
    %2283 = vmatprep.subr.mxu0 0.0
    %2284 = vmatpush1.msra.mxu0 %v1990
    %2285 = vmatprep.subr.mxu0 0.0
    %2286 = vmatpush1.msra.mxu0 %v1993
    %2287 = vmatprep.subr.mxu0 0.0
    %2288 = vmatpush1.msra.mxu0 %v1996
    %2289 = vmatprep.subr.mxu0 0.0
    %2290 = vmatpush1.msra.mxu0 %v1999
    %2291 = vmatprep.subr.mxu0 0.0
    %2292 = vmatpush1.msra.mxu0 %v2002
    %2293 = vmatprep.subr.mxu0 0.0
    %2294 = vmatpush1.msra.mxu0 %v2005
    %2295 = vmatprep.subr.mxu0 0.0
    %2296 = vmatpush1.msra.mxu0 %v2008
    %2297 = vmatprep.subr.mxu0 0.0
    %2298 = vmatpush1.msra.mxu0 %v2011
    %2299 = vmatprep.subr.mxu0 0.0
    %2300 = vmatpush1.msra.mxu0 %v2014
    %2301 = vmatprep.subr.mxu0 0.0
    %2302 = vmatpush1.msra.mxu0 %v2017
    %2303 = vmatprep.subr.mxu0 0.0
    %2304 = vmatpush1.msra.mxu0 %v2020
    %2305 = vmatprep.subr.mxu0 0.0
    %2306 = vmatpush1.msra.mxu0 %v2023
    %2307 = vmatprep.subr.mxu0 0.0
    %2308 = vmatpush1.msra.mxu0 %v2026
    %2309 = vmatprep.subr.mxu0 0.0
    %2310 = vmatpush1.msra.mxu0 %v2029
    %2311 = vmatprep.subr.mxu0 0.0
    %2312 = vmatpush1.msra.mxu0 %v2032
    %2313 = vmatprep.subr.mxu0 0.0
    %2314 = vmatpush1.msra.mxu0 %v2035
    %2315 = vmatprep.subr.mxu0 0.0
    %2316 = vmatpush1.msra.mxu0 %v2038
    %2317 = vmatprep.subr.mxu0 0.0
    %2318 = vmatpush1.msra.mxu0 %v2041
    %2319 = vmatprep.subr.mxu0 0.0
    %2320 = vmatpush1.msra.mxu0 %v2044
    %2321 = vmatprep.subr.mxu0 0.0
    %2322 = vmatpush1.msra.mxu0 %v2047
    %2323 = vmatprep.subr.mxu0 0.0
    %2324 = vmatpush1.msra.mxu0 %v2050
    %2325 = vmatprep.subr.mxu0 0.0
    %2326 = vmatpush1.msra.mxu0 %v2053
    %2327 = vmatprep.subr.mxu0 0.0
    %2328 = vmatpush1.msra.mxu0 %v2056
    %2329 = vmatprep.subr.mxu0 0.0
    %2330 = vmatpush1.msra.mxu0 %v2059
    %2331 = vmatprep.mubr.f32.mxu0 %v1959
    %2332 = vmatmul.mubr.f32.gmra.mrb[0].mxu0 %v1958
    %v2333 = vpop.f32.mrb[0].mxu0
    %v2334 = vadd.f32 %v2121, %v2333
    %v2335 = vpop.f32.mrb[0].mxu0
    %2336 = vdwg.mxu0
    %2337 = vmatprep.subr.mxu0 0.0
    %2338 = vmatpush1.msra.mxu0 %v2062
    %2339 = vmatprep.subr.mxu0 0.0
    %2340 = vmatpush1.msra.mxu0 %v2065
    %2341 = vmatprep.subr.mxu0 0.0
    %2342 = vmatpush1.msra.mxu0 %v2068
    %2343 = vmatprep.subr.mxu0 0.0
    %2344 = vmatpush1.msra.mxu0 %v2071
    %2345 = vmatprep.subr.mxu0 0.0
    %2346 = vmatpush1.msra.mxu0 %v2074
    %2347 = vmatprep.subr.mxu0 0.0
    %2348 = vmatpush1.msra.mxu0 %v2077
    %2349 = vmatprep.subr.mxu0 0.0
    %2350 = vmatpush1.msra.mxu0 %v2080
    %2351 = vmatprep.subr.mxu0 0.0
    %2352 = vmatpush1.msra.mxu0 %v2083
    %2353 = vmatprep.subr.mxu0 0.0
    %2354 = vmatpush1.msra.mxu0 %v2086
    %2355 = vmatprep.subr.mxu0 0.0
    %2356 = vmatpush1.msra.mxu0 %v2089
    %2357 = vmatprep.subr.mxu0 0.0
    %2358 = vmatpush1.msra.mxu0 %v2092
    %2359 = vmatprep.subr.mxu0 0.0
    %2360 = vmatpush1.msra.mxu0 %v2095
    %2361 = vmatprep.subr.mxu0 0.0
    %2362 = vmatpush1.msra.mxu0 %v2098
    %2363 = vmatprep.subr.mxu0 0.0
    %2364 = vmatpush1.msra.mxu0 %v2101
    %2365 = vmatprep.subr.mxu0 0.0
    %2366 = vmatpush1.msra.mxu0 %v2104
    %2367 = vmatprep.subr.mxu0 0.0
    %2368 = vmatpush1.msra.mxu0 %v2107
    %2369 = vmatprep.subr.mxu0 0.0
    %2370 = vmatpush1.msra.mxu0 0.0
    %2371 = vmatprep.subr.mxu0 0.0
    %2372 = vmatpush1.msra.mxu0 0.0
    %2373 = vmatprep.subr.mxu0 0.0
    %2374 = vmatpush1.msra.mxu0 0.0
    %2375 = vmatprep.subr.mxu0 0.0
    %2376 = vmatpush1.msra.mxu0 0.0
    %2377 = vmatprep.subr.mxu0 0.0
    %2378 = vmatpush1.msra.mxu0 0.0
    %2379 = vmatprep.subr.mxu0 0.0
    %2380 = vmatpush1.msra.mxu0 0.0
    %2381 = vmatprep.subr.mxu0 0.0
    %2382 = vmatpush1.msra.mxu0 0.0
    %2383 = vmatprep.subr.mxu0 0.0
    %2384 = vmatpush1.msra.mxu0 0.0
    %2385 = vmatprep.subr.mxu0 0.0
    %2386 = vmatpush1.msra.mxu0 0.0
    %2387 = vmatprep.subr.mxu0 0.0
    %2388 = vmatpush1.msra.mxu0 0.0
    %2389 = vmatprep.subr.mxu0 0.0
    %2390 = vmatpush1.msra.mxu0 0.0
    %2391 = vmatprep.subr.mxu0 0.0
    %2392 = vmatpush1.msra.mxu0 0.0
    %2393 = vmatprep.subr.mxu0 0.0
    %2394 = vmatpush1.msra.mxu0 0.0
    %2395 = vmatprep.subr.mxu0 0.0
    %2396 = vmatpush1.msra.mxu0 0.0
    %2397 = vmatprep.subr.mxu0 0.0
    %2398 = vmatpush1.msra.mxu0 0.0
    %2399 = vmatprep.subr.mxu0 0.0
    %2400 = vmatpush1.msra.mxu0 0.0
    %2401 = vmatprep.mubr.f32.mxu0 0.0
    %2402 = vmatmul.mubr.f32.gmra.mrb[0].mxu0 %v1960
    %v2403 = vpop.f32.mrb[0].mxu0
    %v2404 = vadd.f32 %v2334, %v2403
    %v2405 = vpop.f32.mrb[0].mxu0
    %2406 = vdwg.mxu0
    %2407 = vst [vmem:[#allocation19] sm:$0xff] %v2263
    %2408 = vst [vmem:[#allocation19 + $0x8] sm:$0xff] %v2265
    %2409 = vst [vmem:[#allocation19 + $0x10] sm:$0xff] %v2404
    // Predicated region
    $region82: #{tpu_custom_call.1} parent=1 // pred_check
      _
    $region83: #{tpu_custom_call.1} parent=1 // pred_check_branch
      %2411 = sbr.rel (0) target = $region85
    $region84: #{tpu_custom_call.1} parent=1 // pred_region
      %s2413 = ssub.s32 384, 384
      %2414 = vsyncadd [#allocation5], %s2413
      %s2416 = sshll.u32 [#allocation19], 4
      %s2417 = int_to_ptr.vmem [resolvable:$true] %s2416
      %2419 = dma.vmem_to_hbm [thread:$0]  %s2417, 384, %s11, [#allocation5]
    $region85: #{tpu_custom_call.1} parent=1 // pred_fallthru
      _
    // Predicated region
    $region86: #{tpu_custom_call.1} parent=1 // pred_check
      _
    $region87: #{tpu_custom_call.1} parent=1 // pred_check_branch
      %2421 = sbr.rel (0) target = $region89
    $region88: #{tpu_custom_call.1} parent=1 // pred_region
      %s2423 = ssub.s32 384, 384
      %2424 = vsyncadd [#allocation21], %s2423
      %s2426 = sshll.u32 [#allocation20], 4
      %s2427 = int_to_ptr.vmem [resolvable:$true] %s2426
      %2429 = dma.vmem_to_hbm [thread:$0]  %s2427, 384, %s12, [#allocation21]
    $region89: #{tpu_custom_call.1} parent=1 // pred_fallthru
      _
    // Predicated region
    $region90: #{tpu_custom_call.1} parent=1 // pred_check
      _
    $region91: #{tpu_custom_call.1} parent=1 // pred_check_branch
      %2431 = sbr.rel (0) target = $region93
    $region92: #{tpu_custom_call.1} parent=1 // pred_region
      %2432 = dma.done [#allocation5], 384
    $region93: #{tpu_custom_call.1} parent=1 // pred_fallthru
      _
    // Predicated region
    $region94: #{tpu_custom_call.1} parent=1 // pred_check
      _
    $region95: #{tpu_custom_call.1} parent=1 // pred_check_branch
      %2434 = sbr.rel (0) target = $region97
    $region96: #{tpu_custom_call.1} parent=1 // pred_region
      %2435 = dma.done [#allocation21], 384
    $region97: #{tpu_custom_call.1} parent=1 // pred_fallthru
      _
    %2436 = vsyncpa [#allocation4], 1
    %2437 = vsyncpa [#allocation18], 1
    %2438 = vsyncpa [#allocation5], 1
    %2439 = vsyncpa [#allocation21], 1
    %2440 = vsyncpa [#allocation6], 1
    %2441 = vsyncpa [#allocation9], 1
    %2442 = vsyncpa [#allocation12], 1
    %2443 = vsyncpa [#allocation15], 1

</llo_original>
